<compile_context>
chip_gen: v6e
topology: v6e:2x2x1
jax: 0.10.0
libtpu: 0.0.40
codegen_flags: <defaults>
</compile_context>

<pallas_src>
import numpy as np
import jax
import jax.numpy as jnp
from jax import lax
from jax.experimental import pallas as pl
from jax.experimental.pallas import tpu as pltpu


# ----------------------------- Fused kernel --------------------------------


def quickthoughts_fused_kernel(sent_ref, emb_ref, wih_ref, whh_ref,
                               bih_ref, bhh_ref, counts_ref, mask_ref,
                               loss_ref, gir_sc, giz_sc, gin_sc):
    """Embedding + GRU + per-problem score matmul + summed CE, one launch.

    sent_ref   : (T*Gp*B, 1) int32  time-major flattened token ids for the Gp
                                    problems handled by this grid step
                                    (index = t*Gp*B + g*B + b)
    emb_ref    : (V, E)   f32       embedding table (VMEM resident)
    wih_ref    : (3, E, H) f32      per-gate input weights   [r, z, n]
    whh_ref    : (3, H, H) f32      per-gate hidden weights  [r, z, n]
    bih_ref    : (3, 1, H) f32
    bhh_ref    : (3, 1, H) f32
    counts_ref : (B, B)   f32       counts[i,c] = #{rows r : target[r,i] == c}
    mask_ref   : (B, B)   f32       1 - eye(B)  (zeroes the score diagonal)
    loss_ref   : (Gp, 1)  f32       one summed-CE loss per problem
    g*_sc      : (T*Gp*B, H) f32    VMEM scratch: hoisted per-gate input proj.
    """
    TB = sent_ref.shape[0]
    V = emb_ref.shape[0]
    H = whh_ref.shape[2]
    B = counts_ref.shape[0]
    Gp = loss_ref.shape[0]
    GB = Gp * B
    T = TB // GB

    # ---- Embedding lookup as a one-hot matmul (exact; MXU-friendly) -------
    # TODO(synk): for large vocabularies replace with an in-VMEM jnp.take or
    # an HBM row-gather DMA (memory_space=pl.ANY + make_async_copy); the
    # (TB, V) one-hot is O(TB*V) VMEM and only sensible while tiny (breaks
    # first on v7x's 64 MiB VMEM).
    ids = sent_ref[...]                                          # (TB, 1)
    vocab_iota = lax.broadcasted_iota(jnp.int32, (TB, V), 1)
    onehot = (vocab_iota == ids).astype(jnp.float32)             # (TB, V)
    x_all = jnp.dot(onehot, emb_ref[...],
                    preferred_element_type=jnp.float32)          # (TB, E)

    # ---- Hoisted input projection: one matmul per gate for ALL timesteps --
    # b_hh for the r and z gates is folded in here (they always add to the
    # input-projection term), removing two adds per serial step.  The n gate's
    # hidden bias must stay inside r * (h @ W_hn + b_hn) — NOT folded.
    gir_sc[...] = (jnp.dot(x_all, wih_ref[0], preferred_element_type=jnp.float32)
                   + (bih_ref[0] + bhh_ref[0]))
    giz_sc[...] = (jnp.dot(x_all, wih_ref[1], preferred_element_type=jnp.float32)
                   + (bih_ref[1] + bhh_ref[1]))
    gin_sc[...] = (jnp.dot(x_all, wih_ref[2], preferred_element_type=jnp.float32)
                   + bih_ref[2])

    # ---- Serial GRU recurrence: only h @ W_hh remains on the dep chain ----
    # Kept as three lane-dense per-gate matmuls (review-endorsed tradeoff vs.
    # a fused (H,3H) push that would need 32-lane splits of a 96-lane result).
    whh_r, whh_z, whh_n = whh_ref[0], whh_ref[1], whh_ref[2]
    bhh_n = jnp.broadcast_to(bhh_ref[2], (GB, H))   # broadcast ONCE, pre-loop

    def step(t, h):
        off = pl.multiple_of(t * GB, GB)
        gi_r = gir_sc[pl.ds(off, GB), :]
        gi_z = giz_sc[pl.ds(off, GB), :]
        gi_n = gin_sc[pl.ds(off, GB), :]
        gh_r = jnp.dot(h, whh_r, preferred_element_type=jnp.float32)
        gh_z = jnp.dot(h, whh_z, preferred_element_type=jnp.float32)
        gh_n = jnp.dot(h, whh_n, preferred_element_type=jnp.float32) + bhh_n
        r = jax.nn.sigmoid(gi_r + gh_r)
        z = jax.nn.sigmoid(gi_z + gh_z)
        n = jnp.tanh(gi_n + r * gh_n)
        return (1.0 - z) * n + z * h

    h0 = jnp.zeros((GB, H), jnp.float32)
    tv = lax.fori_loop(0, T, step, h0, unroll=True)              # (GB, H)

    # ---- Per-problem scores / log-softmax / summed cross-entropy ----------
    counts = counts_ref[...]
    mask = mask_ref[...]
    neg_inv_b = -1.0 / B
    for g in range(Gp):                                          # static loop
        tv_g = tv[g * B:(g + 1) * B, :]                          # (B, H)
        # scores = tv_g @ tv_g^T (no explicit transpose), zero the diagonal
        scores = lax.dot_general(tv_g, tv_g, (((1,), (1,)), ((), ())),
                                 preferred_element_type=jnp.float32)  # (B, B)
        scores = scores * mask
        m = jnp.max(scores, axis=-1, keepdims=True)
        lse = m + jnp.log(jnp.sum(jnp.exp(scores - m), axis=-1, keepdims=True))
        logp = scores - lse
        loss_11 = jnp.sum(counts * logp, axis=(0, 1),
                          keepdims=True) * neg_inv_b             # (1, 1)
        loss_ref[pl.ds(g, 1), :] = loss_11


# ----------------------------- Wrappers --------------------------------------


def quickthoughts_forward_batched(sent_stack, embedding, wih_g, whh_g,
                                  bih_g, bhh_g, counts, mask, *,
                                  core_splits=1):
    """Run G independent QuickThoughts problems in one fused kernel launch.

    sent_stack: (G, B, T) int32.  Returns (G,) f32 losses.
    core_splits: leading "parallel" grid axis — set 2 on v7x to use both
    TensorCores; keep 1 on single-core v5e/v6e (a split there just serializes
    two recurrences).
    """
    G, B, T = sent_stack.shape
    V, E = embedding.shape
    H = whh_g.shape[2]
    NC = core_splits
    assert G % NC == 0, "core_splits must divide the number of problems"
    Gp = G // NC

    # split-major / time-major / (group, batch) flattened token ids:
    #   sent[c, t*Gp*B + g*B + b, 0] == sent_stack[c*Gp + g, b, t]
    sent = (sent_stack.astype(jnp.int32)
            .reshape(NC, Gp, B, T)
            .transpose(0, 3, 1, 2)
            .reshape(NC, T * Gp * B, 1))

    def replicated(shape):
        rank = len(shape)
        return pl.BlockSpec(shape, lambda c, _r=rank: (0,) * _r)

    # TODO(synk): a per-problem scalar SMEM output would avoid the lane-masked
    # (Gp, 1) VMEM store + tiny writeback DMA; kept in VMEM because storing a
    # vector-reduced scalar to SMEM is the riskier lowering and the cost here
    # is one small DMA per launch.
    # TODO(synk): when scaling T*B or H, block the time axis with a grid and a
    # bounded scratch (and set vmem_limit_bytes) so the three (T*Gp*B, H)
    # scratch buffers stay under v7x's 64 MiB VMEM.  If weights go bf16, keep
    # activations/elementwise math f32 on v5e (no bf16 VPU/EUP there).
    out = pl.pallas_call(
        quickthoughts_fused_kernel,
        out_shape=jax.ShapeDtypeStruct((NC, Gp, 1), jnp.float32),
        grid=(NC,),
        in_specs=[
            pl.BlockSpec((None, T * Gp * B, 1), lambda c: (c, 0, 0)),  # ids
            replicated((V, E)),        # embedding
            replicated((3, E, H)),     # W_ih per gate
            replicated((3, H, H)),     # W_hh per gate
            replicated((3, 1, H)),     # b_ih
            replicated((3, 1, H)),     # b_hh
            replicated((B, B)),        # counts
            replicated((B, B)),        # mask
        ],
        out_specs=pl.BlockSpec((None, Gp, 1), lambda c: (c, 0, 0)),
        scratch_shapes=[pltpu.VMEM((T * Gp * B, H), jnp.float32),
                        pltpu.VMEM((T * Gp * B, H), jnp.float32),
                        pltpu.VMEM((T * Gp * B, H), jnp.float32)],
        compiler_params=pltpu.CompilerParams(
            dimension_semantics=("parallel",)),
    )(sent, embedding, wih_g, whh_g, bih_g, bhh_g, counts, mask)
    return out.reshape(G)


def quickthoughts_forward(sentences, embedding, wih_g, whh_g, bih_g, bhh_g,
                          counts, mask):
    """Canonical single-problem forward (matches the PyTorch module)."""
    losses = quickthoughts_forward_batched(sentences[None], embedding, wih_g,
                                           whh_g, bih_g, bhh_g, counts, mask,
                                           core_splits=1)
    return losses[0]


quickthoughts_forward_jit = jax.jit(quickthoughts_forward)
quickthoughts_forward_batched_jit = jax.jit(
    quickthoughts_forward_batched, static_argnames=("core_splits",))


# ----------------------------- Host-side constants ---------------------------


def build_target(batch_size, context_size):
    """numpy target construction from the module (incl. the .long() truncation)."""
    target_np = np.zeros((batch_size, batch_size), dtype=np.int64)
    for i in range(1, context_size + 1):
        target_np += np.eye(batch_size, k=-i, dtype=np.int64)
        target_np += np.eye(batch_size, k=i, dtype=np.int64)
    target_np_sum = np.sum(target_np, axis=1, keepdims=True)
    target_np = target_np / target_np_sum
    # torch .type(LongTensor) truncates toward zero.
    # TODO(synk): faithfully reproduces the upstream bug -- for context_size >= 2
    # every entry truncates to class 0.
    return target_np.astype(np.int64)


def build_counts_and_mask(batch_size, context_size):
    """counts[i, c] = #{rows r of target : target[r, i] == c};  mask = 1 - I."""
    tgt = build_target(batch_size, context_size)
    counts = np.zeros((batch_size, batch_size), dtype=np.float32)
    for r in range(batch_size):
        for i in range(batch_size):
            counts[i, tgt[r, i]] += 1.0
    mask = (1.0 - np.eye(batch_size)).astype(np.float32)
    return counts, mask


# ----------------------------- Reference (pure JAX) --------------------------


def reference_forward(sentences, embedding, w_ih, w_hh, b_ih, b_hh, context_size):
    emb = embedding[sentences]                       # (B, T, E)
    x = jnp.transpose(emb, (1, 0, 2))                # (T, B, E)
    B = sentences.shape[0]
    H = w_hh.shape[1]
    wih_t = w_ih.T
    whh_t = w_hh.T
    h = jnp.zeros((B, H), jnp.float32)
    for t in range(x.shape[0]):
        gi = x[t] @ wih_t + b_ih
        gh = h @ whh_t + b_hh
        r = jax.nn.sigmoid(gi[:, :H] + gh[:, :H])
        z = jax.nn.sigmoid(gi[:, H:2 * H] + gh[:, H:2 * H])
        n = jnp.tanh(gi[:, 2 * H:] + r * gh[:, 2 * H:])
        h = (1.0 - z) * n + z * h
    scores = h @ h.T
    scores = scores * (1.0 - jnp.eye(B, dtype=jnp.float32))
    logp = jax.nn.log_softmax(scores, axis=-1)
    target = jnp.asarray(build_target(B, context_size), jnp.int32)
    loss = 0.0
    for r_ in range(B):
        t_ = target[r_]
        loss = loss + jnp.mean(-jnp.take_along_axis(logp, t_[:, None], axis=1))
    return loss


# ----------------------------- Main ------------------------------------------


if __name__ == "__main__":
    VOCAB, EMBED, HIDDEN = 64, 32, 32
    BATCH, SEQ, CONTEXT = 8, 8, 2
    GROUPS = 8          # independent mini-batches packed into one launch
    CORE_SPLITS = 2     # exercises the "parallel" grid path (2 TCs on v7x)

    key = jax.random.PRNGKey(0)
    k_emb, k_ih, k_hh, k_sent = jax.random.split(key, 4)

    # Mirrors the module's _init_weights: embedding ~ U(-0.1, 0.1);
    # GRU weights xavier_uniform; GRU biases = 1.0.
    embedding = jax.random.uniform(k_emb, (VOCAB, EMBED), jnp.float32, -0.1, 0.1)

    def xavier(k, shape):
        fan_out, fan_in = shape
        bound = float(np.sqrt(6.0 / (fan_in + fan_out)))
        return jax.random.uniform(k, shape, jnp.float32, -bound, bound)

    w_ih = xavier(k_ih, (3 * HIDDEN, EMBED))    # PyTorch layout (3H, E), gates [r, z, n]
    w_hh = xavier(k_hh, (3 * HIDDEN, HIDDEN))   # (3H, H)
    b_ih = jnp.ones((3 * HIDDEN,), jnp.float32)
    b_hh = jnp.ones((3 * HIDDEN,), jnp.float32)

    # Per-gate, pre-transposed layouts for the kernel (lane-aligned tiles).
    wih_g = jnp.stack([w_ih[g * HIDDEN:(g + 1) * HIDDEN, :].T for g in range(3)])  # (3, E, H)
    whh_g = jnp.stack([w_hh[g * HIDDEN:(g + 1) * HIDDEN, :].T for g in range(3)])  # (3, H, H)
    bih_g = b_ih.reshape(3, 1, HIDDEN)
    bhh_g = b_hh.reshape(3, 1, HIDDEN)

    counts_np, mask_np = build_counts_and_mask(BATCH, CONTEXT)
    counts = jnp.asarray(counts_np)
    mask = jnp.asarray(mask_np)

    sent_stack = jax.random.randint(k_sent, (GROUPS, BATCH, SEQ), 0, VOCAB, jnp.int32)

    # Batched path: GROUPS problems per launch, split across a parallel grid axis.
    losses = jax.block_until_ready(
        quickthoughts_forward_batched_jit(sent_stack, embedding, wih_g, whh_g,
                                          bih_g, bhh_g, counts, mask,
                                          core_splits=CORE_SPLITS))
    # Canonical single-problem forward (matches the PyTorch module exactly).
    loss0 = jax.block_until_ready(
        quickthoughts_forward_jit(sent_stack[0], embedding, wih_g, whh_g,
                                  bih_g, bhh_g, counts, mask))

    refs = np.array([np.asarray(reference_forward(sent_stack[g], embedding,
                                                  w_ih, w_hh, b_ih, b_hh,
                                                  CONTEXT))
                     for g in range(GROUPS)], dtype=np.float32)

    np.testing.assert_allclose(np.asarray(losses), refs, rtol=1e-5, atol=1e-5)
    np.testing.assert_allclose(np.asarray(loss0), refs[0], rtol=1e-5, atol=1e-5)
    print("KERNEL_OK")
</pallas_src>

<mosaic_0001>
module attributes {stable_mosaic.version = 11 : i64} {
  func.func @quickthoughts_fused_kernel(%arg0: i32, %arg1: memref<1x256x1xi32, #tpu.memory_space<vmem>>, %arg2: memref<64x32xf32, #tpu.memory_space<vmem>>, %arg3: memref<3x32x32xf32, #tpu.memory_space<vmem>>, %arg4: memref<3x32x32xf32, #tpu.memory_space<vmem>>, %arg5: memref<3x1x32xf32, #tpu.memory_space<vmem>>, %arg6: memref<3x1x32xf32, #tpu.memory_space<vmem>>, %arg7: memref<8x8xf32, #tpu.memory_space<vmem>>, %arg8: memref<8x8xf32, #tpu.memory_space<vmem>>, %arg9: memref<1x4x1xf32, #tpu.memory_space<vmem>>, %arg10: memref<256x32xf32, #tpu.memory_space<vmem>>, %arg11: memref<256x32xf32, #tpu.memory_space<vmem>>, %arg12: memref<256x32xf32, #tpu.memory_space<vmem>>) attributes {dimension_semantics = [#tpu.dimension_semantics<parallel>], iteration_bounds = array<i64: 2>, scalar_prefetch = 0 : i64, scratch_operands = 3 : i64, tpu.core_type = #tpu.core_type<tc>, window_params = [{transform_indices = @transform_0, window_bounds = array<i64: 1, 256, 1>}, {pipeline_mode = #tpu.pipeline_mode<synchronous>, transform_indices = @transform_1, window_bounds = array<i64: 64, 32>}, {pipeline_mode = #tpu.pipeline_mode<synchronous>, transform_indices = @transform_2, window_bounds = array<i64: 3, 32, 32>}, {pipeline_mode = #tpu.pipeline_mode<synchronous>, transform_indices = @transform_3, window_bounds = array<i64: 3, 32, 32>}, {pipeline_mode = #tpu.pipeline_mode<synchronous>, transform_indices = @transform_4, window_bounds = array<i64: 3, 1, 32>}, {pipeline_mode = #tpu.pipeline_mode<synchronous>, transform_indices = @transform_5, window_bounds = array<i64: 3, 1, 32>}, {pipeline_mode = #tpu.pipeline_mode<synchronous>, transform_indices = @transform_6, window_bounds = array<i64: 8, 8>}, {pipeline_mode = #tpu.pipeline_mode<synchronous>, transform_indices = @transform_7, window_bounds = array<i64: 8, 8>}, {transform_indices = @transform_8, window_bounds = array<i64: 1, 4, 1>}]} {
    %c0 = arith.constant 0 : index
    %c0_0 = arith.constant 0 : index
    %c0_1 = arith.constant 0 : index
    %0 = vector.load %arg1[%c0, %c0_0, %c0_1] : memref<1x256x1xi32, #tpu.memory_space<vmem>>, vector<1x256x1xi32>
    %1 = vector.shape_cast %0 : vector<1x256x1xi32> to vector<256x1xi32>
    %2 = tpu.iota {dimensions = array<i32: 1>} : vector<256x64xi32>
    %3 = vector.broadcast %1 : vector<256x1xi32> to vector<256x64xi32>
    %4 = arith.cmpi eq, %2, %3 : vector<256x64xi32>
    %5 = arith.extui %4 : vector<256x64xi1> to vector<256x64xi32>
    %6 = arith.sitofp %5 : vector<256x64xi32> to vector<256x64xf32>
    %c0_2 = arith.constant 0 : index
    %c0_3 = arith.constant 0 : index
    %7 = vector.load %arg2[%c0_2, %c0_3] : memref<64x32xf32, #tpu.memory_space<vmem>>, vector<64x32xf32>
    %cst = arith.constant dense<0.000000e+00> : vector<256x32xf32>
    %8 = tpu.matmul %6, %7, %cst {dimension_numbers = #tpu.dot_dimension_numbers<[1], [0], [0], [1], [0, 0, 1, 1], [], []>} : vector<256x64xf32>, vector<64x32xf32>, vector<256x32xf32> -> vector<256x32xf32>
    %c0_4 = arith.constant 0 : index
    %c0_5 = arith.constant 0 : index
    %c0_6 = arith.constant 0 : index
    %9 = vector.load %arg3[%c0_4, %c0_5, %c0_6] : memref<3x32x32xf32, #tpu.memory_space<vmem>>, vector<1x32x32xf32>
    %10 = vector.shape_cast %9 : vector<1x32x32xf32> to vector<32x32xf32>
    %cst_7 = arith.constant dense<0.000000e+00> : vector<256x32xf32>
    %11 = tpu.matmul %8, %10, %cst_7 {dimension_numbers = #tpu.dot_dimension_numbers<[1], [0], [0], [1], [0, 0, 1, 1], [], []>} : vector<256x32xf32>, vector<32x32xf32>, vector<256x32xf32> -> vector<256x32xf32>
    %c0_8 = arith.constant 0 : index
    %c0_9 = arith.constant 0 : index
    %c0_10 = arith.constant 0 : index
    %12 = vector.load %arg5[%c0_8, %c0_9, %c0_10] : memref<3x1x32xf32, #tpu.memory_space<vmem>>, vector<1x1x32xf32>
    %13 = vector.shape_cast %12 : vector<1x1x32xf32> to vector<1x32xf32>
    %c0_11 = arith.constant 0 : index
    %c0_12 = arith.constant 0 : index
    %c0_13 = arith.constant 0 : index
    %14 = vector.load %arg6[%c0_11, %c0_12, %c0_13] : memref<3x1x32xf32, #tpu.memory_space<vmem>>, vector<1x1x32xf32>
    %15 = vector.shape_cast %14 : vector<1x1x32xf32> to vector<1x32xf32>
    %16 = arith.addf %13, %15 : vector<1x32xf32>
    %17 = vector.broadcast %16 : vector<1x32xf32> to vector<256x32xf32>
    %18 = arith.addf %11, %17 : vector<256x32xf32>
    %c0_14 = arith.constant 0 : index
    %c0_15 = arith.constant 0 : index
    %19 = vector.load %arg10[%c0_14, %c0_15] : memref<256x32xf32, #tpu.memory_space<vmem>>, vector<256x32xf32>
    tpu.vector_store %arg10[%c0_14, %c0_15], %18 {strides = array<i32>} : memref<256x32xf32, #tpu.memory_space<vmem>>, vector<256x32xf32>,
    %c1 = arith.constant 1 : index
    %c0_16 = arith.constant 0 : index
    %c0_17 = arith.constant 0 : index
    %20 = vector.load %arg3[%c1, %c0_16, %c0_17] : memref<3x32x32xf32, #tpu.memory_space<vmem>>, vector<1x32x32xf32>
    %21 = vector.shape_cast %20 : vector<1x32x32xf32> to vector<32x32xf32>
    %cst_18 = arith.constant dense<0.000000e+00> : vector<256x32xf32>
    %22 = tpu.matmul %8, %21, %cst_18 {dimension_numbers = #tpu.dot_dimension_numbers<[1], [0], [0], [1], [0, 0, 1, 1], [], []>} : vector<256x32xf32>, vector<32x32xf32>, vector<256x32xf32> -> vector<256x32xf32>
    %c1_19 = arith.constant 1 : index
    %c0_20 = arith.constant 0 : index
    %c0_21 = arith.constant 0 : index
    %23 = vector.load %arg5[%c1_19, %c0_20, %c0_21] : memref<3x1x32xf32, #tpu.memory_space<vmem>>, vector<1x1x32xf32>
    %24 = vector.shape_cast %23 : vector<1x1x32xf32> to vector<1x32xf32>
    %c1_22 = arith.constant 1 : index
    %c0_23 = arith.constant 0 : index
    %c0_24 = arith.constant 0 : index
    %25 = vector.load %arg6[%c1_22, %c0_23, %c0_24] : memref<3x1x32xf32, #tpu.memory_space<vmem>>, vector<1x1x32xf32>
    %26 = vector.shape_cast %25 : vector<1x1x32xf32> to vector<1x32xf32>
    %27 = arith.addf %24, %26 : vector<1x32xf32>
    %28 = vector.broadcast %27 : vector<1x32xf32> to vector<256x32xf32>
    %29 = arith.addf %22, %28 : vector<256x32xf32>
    %c0_25 = arith.constant 0 : index
    %c0_26 = arith.constant 0 : index
    %30 = vector.load %arg11[%c0_25, %c0_26] : memref<256x32xf32, #tpu.memory_space<vmem>>, vector<256x32xf32>
    tpu.vector_store %arg11[%c0_25, %c0_26], %29 {strides = array<i32>} : memref<256x32xf32, #tpu.memory_space<vmem>>, vector<256x32xf32>,
    %c2 = arith.constant 2 : index
    %c0_27 = arith.constant 0 : index
    %c0_28 = arith.constant 0 : index
    %31 = vector.load %arg3[%c2, %c0_27, %c0_28] : memref<3x32x32xf32, #tpu.memory_space<vmem>>, vector<1x32x32xf32>
    %32 = vector.shape_cast %31 : vector<1x32x32xf32> to vector<32x32xf32>
    %cst_29 = arith.constant dense<0.000000e+00> : vector<256x32xf32>
    %33 = tpu.matmul %8, %32, %cst_29 {dimension_numbers = #tpu.dot_dimension_numbers<[1], [0], [0], [1], [0, 0, 1, 1], [], []>} : vector<256x32xf32>, vector<32x32xf32>, vector<256x32xf32> -> vector<256x32xf32>
    %c2_30 = arith.constant 2 : index
    %c0_31 = arith.constant 0 : index
    %c0_32 = arith.constant 0 : index
    %34 = vector.load %arg5[%c2_30, %c0_31, %c0_32] : memref<3x1x32xf32, #tpu.memory_space<vmem>>, vector<1x1x32xf32>
    %35 = vector.shape_cast %34 : vector<1x1x32xf32> to vector<1x32xf32>
    %36 = vector.broadcast %35 : vector<1x32xf32> to vector<256x32xf32>
    %37 = arith.addf %33, %36 : vector<256x32xf32>
    %c0_33 = arith.constant 0 : index
    %c0_34 = arith.constant 0 : index
    %38 = vector.load %arg12[%c0_33, %c0_34] : memref<256x32xf32, #tpu.memory_space<vmem>>, vector<256x32xf32>
    tpu.vector_store %arg12[%c0_33, %c0_34], %37 {strides = array<i32>} : memref<256x32xf32, #tpu.memory_space<vmem>>, vector<256x32xf32>,
    %c0_35 = arith.constant 0 : index
    %c0_36 = arith.constant 0 : index
    %c0_37 = arith.constant 0 : index
    %39 = vector.load %arg4[%c0_35, %c0_36, %c0_37] : memref<3x32x32xf32, #tpu.memory_space<vmem>>, vector<1x32x32xf32>
    %40 = vector.shape_cast %39 : vector<1x32x32xf32> to vector<32x32xf32>
    %c1_38 = arith.constant 1 : index
    %c0_39 = arith.constant 0 : index
    %c0_40 = arith.constant 0 : index
    %41 = vector.load %arg4[%c1_38, %c0_39, %c0_40] : memref<3x32x32xf32, #tpu.memory_space<vmem>>, vector<1x32x32xf32>
    %42 = vector.shape_cast %41 : vector<1x32x32xf32> to vector<32x32xf32>
    %c2_41 = arith.constant 2 : index
    %c0_42 = arith.constant 0 : index
    %c0_43 = arith.constant 0 : index
    %43 = vector.load %arg4[%c2_41, %c0_42, %c0_43] : memref<3x32x32xf32, #tpu.memory_space<vmem>>, vector<1x32x32xf32>
    %44 = vector.shape_cast %43 : vector<1x32x32xf32> to vector<32x32xf32>
    %c2_44 = arith.constant 2 : index
    %c0_45 = arith.constant 0 : index
    %c0_46 = arith.constant 0 : index
    %45 = vector.load %arg6[%c2_44, %c0_45, %c0_46] : memref<3x1x32xf32, #tpu.memory_space<vmem>>, vector<1x1x32xf32>
    %46 = vector.shape_cast %45 : vector<1x1x32xf32> to vector<1x32xf32>
    %47 = vector.shape_cast %46 : vector<1x32xf32> to vector<1x32xf32>
    %48 = vector.broadcast %47 : vector<1x32xf32> to vector<32x32xf32>
    %cst_47 = arith.constant 0.000000e+00 : f32
    %49 = vector.broadcast %cst_47 : f32 to vector<32x32xf32>
    %c0_i32 = arith.constant 0 : i32
    %c32_i32 = arith.constant 32 : i32
    %50 = arith.muli %c0_i32, %c32_i32 : i32
    %51 = tpu.assume_multiple %50, 32 : i32
    %52 = arith.index_cast %51 : i32 to index
    %c0_48 = arith.constant 0 : index
    %53 = vector.load %arg10[%52, %c0_48] : memref<256x32xf32, #tpu.memory_space<vmem>>, vector<32x32xf32>
    %54 = arith.index_cast %51 : i32 to index
    %c0_49 = arith.constant 0 : index
    %55 = vector.load %arg11[%54, %c0_49] : memref<256x32xf32, #tpu.memory_space<vmem>>, vector<32x32xf32>
    %56 = arith.index_cast %51 : i32 to index
    %c0_50 = arith.constant 0 : index
    %57 = vector.load %arg12[%56, %c0_50] : memref<256x32xf32, #tpu.memory_space<vmem>>, vector<32x32xf32>
    %cst_51 = arith.constant dense<0.000000e+00> : vector<32x32xf32>
    %58 = tpu.matmul %49, %40, %cst_51 {dimension_numbers = #tpu.dot_dimension_numbers<[1], [0], [0], [1], [0, 0, 1, 1], [], []>} : vector<32x32xf32>, vector<32x32xf32>, vector<32x32xf32> -> vector<32x32xf32>
    %cst_52 = arith.constant dense<0.000000e+00> : vector<32x32xf32>
    %59 = tpu.matmul %49, %42, %cst_52 {dimension_numbers = #tpu.dot_dimension_numbers<[1], [0], [0], [1], [0, 0, 1, 1], [], []>} : vector<32x32xf32>, vector<32x32xf32>, vector<32x32xf32> -> vector<32x32xf32>
    %cst_53 = arith.constant dense<0.000000e+00> : vector<32x32xf32>
    %60 = tpu.matmul %49, %44, %cst_53 {dimension_numbers = #tpu.dot_dimension_numbers<[1], [0], [0], [1], [0, 0, 1, 1], [], []>} : vector<32x32xf32>, vector<32x32xf32>, vector<32x32xf32> -> vector<32x32xf32>
    %61 = arith.addf %60, %48 : vector<32x32xf32>
    %62 = arith.addf %53, %58 : vector<32x32xf32>
    %63 = arith.negf %62 : vector<32x32xf32>
    %64 = math.exp %63 : vector<32x32xf32>
    %cst_54 = arith.constant 1.000000e+00 : f32
    %65 = vector.broadcast %cst_54 : f32 to vector<32x32xf32>
    %66 = arith.addf %65, %64 : vector<32x32xf32>
    %67 = arith.divf %65, %66 : vector<32x32xf32>
    %68 = arith.addf %55, %59 : vector<32x32xf32>
    %69 = arith.negf %68 : vector<32x32xf32>
    %70 = math.exp %69 : vector<32x32xf32>
    %cst_55 = arith.constant 1.000000e+00 : f32
    %71 = vector.broadcast %cst_55 : f32 to vector<32x32xf32>
    %72 = arith.addf %71, %70 : vector<32x32xf32>
    %73 = arith.divf %71, %72 : vector<32x32xf32>
    %74 = arith.mulf %67, %61 : vector<32x32xf32>
    %75 = arith.addf %57, %74 : vector<32x32xf32>
    %76 = math.tanh %75 : vector<32x32xf32>
    %cst_56 = arith.constant 1.000000e+00 : f32
    %77 = vector.broadcast %cst_56 : f32 to vector<32x32xf32>
    %78 = arith.subf %77, %73 : vector<32x32xf32>
    %79 = arith.mulf %78, %76 : vector<32x32xf32>
    %80 = arith.mulf %73, %49 : vector<32x32xf32>
    %81 = arith.addf %79, %80 : vector<32x32xf32>
    %c1_i32 = arith.constant 1 : i32
    %c32_i32_57 = arith.constant 32 : i32
    %82 = arith.muli %c1_i32, %c32_i32_57 : i32
    %83 = tpu.assume_multiple %82, 32 : i32
    %84 = arith.index_cast %83 : i32 to index
    %c0_58 = arith.constant 0 : index
    %85 = vector.load %arg10[%84, %c0_58] : memref<256x32xf32, #tpu.memory_space<vmem>>, vector<32x32xf32>
    %86 = arith.index_cast %83 : i32 to index
    %c0_59 = arith.constant 0 : index
    %87 = vector.load %arg11[%86, %c0_59] : memref<256x32xf32, #tpu.memory_space<vmem>>, vector<32x32xf32>
    %88 = arith.index_cast %83 : i32 to index
    %c0_60 = arith.constant 0 : index
    %89 = vector.load %arg12[%88, %c0_60] : memref<256x32xf32, #tpu.memory_space<vmem>>, vector<32x32xf32>
    %cst_61 = arith.constant dense<0.000000e+00> : vector<32x32xf32>
    %90 = tpu.matmul %81, %40, %cst_61 {dimension_numbers = #tpu.dot_dimension_numbers<[1], [0], [0], [1], [0, 0, 1, 1], [], []>} : vector<32x32xf32>, vector<32x32xf32>, vector<32x32xf32> -> vector<32x32xf32>
    %cst_62 = arith.constant dense<0.000000e+00> : vector<32x32xf32>
    %91 = tpu.matmul %81, %42, %cst_62 {dimension_numbers = #tpu.dot_dimension_numbers<[1], [0], [0], [1], [0, 0, 1, 1], [], []>} : vector<32x32xf32>, vector<32x32xf32>, vector<32x32xf32> -> vector<32x32xf32>
    %cst_63 = arith.constant dense<0.000000e+00> : vector<32x32xf32>
    %92 = tpu.matmul %81, %44, %cst_63 {dimension_numbers = #tpu.dot_dimension_numbers<[1], [0], [0], [1], [0, 0, 1, 1], [], []>} : vector<32x32xf32>, vector<32x32xf32>, vector<32x32xf32> -> vector<32x32xf32>
    %93 = arith.addf %92, %48 : vector<32x32xf32>
    %94 = arith.addf %85, %90 : vector<32x32xf32>
    %95 = arith.negf %94 : vector<32x32xf32>
    %96 = math.exp %95 : vector<32x32xf32>
    %cst_64 = arith.constant 1.000000e+00 : f32
    %97 = vector.broadcast %cst_64 : f32 to vector<32x32xf32>
    %98 = arith.addf %97, %96 : vector<32x32xf32>
    %99 = arith.divf %97, %98 : vector<32x32xf32>
    %100 = arith.addf %87, %91 : vector<32x32xf32>
    %101 = arith.negf %100 : vector<32x32xf32>
    %102 = math.exp %101 : vector<32x32xf32>
    %cst_65 = arith.constant 1.000000e+00 : f32
    %103 = vector.broadcast %cst_65 : f32 to vector<32x32xf32>
    %104 = arith.addf %103, %102 : vector<32x32xf32>
    %105 = arith.divf %103, %104 : vector<32x32xf32>
    %106 = arith.mulf %99, %93 : vector<32x32xf32>
    %107 = arith.addf %89, %106 : vector<32x32xf32>
    %108 = math.tanh %107 : vector<32x32xf32>
    %cst_66 = arith.constant 1.000000e+00 : f32
    %109 = vector.broadcast %cst_66 : f32 to vector<32x32xf32>
    %110 = arith.subf %109, %105 : vector<32x32xf32>
    %111 = arith.mulf %110, %108 : vector<32x32xf32>
    %112 = arith.mulf %105, %81 : vector<32x32xf32>
    %113 = arith.addf %111, %112 : vector<32x32xf32>
    %c2_i32 = arith.constant 2 : i32
    %c32_i32_67 = arith.constant 32 : i32
    %114 = arith.muli %c2_i32, %c32_i32_67 : i32
    %115 = tpu.assume_multiple %114, 32 : i32
    %116 = arith.index_cast %115 : i32 to index
    %c0_68 = arith.constant 0 : index
    %117 = vector.load %arg10[%116, %c0_68] : memref<256x32xf32, #tpu.memory_space<vmem>>, vector<32x32xf32>
    %118 = arith.index_cast %115 : i32 to index
    %c0_69 = arith.constant 0 : index
    %119 = vector.load %arg11[%118, %c0_69] : memref<256x32xf32, #tpu.memory_space<vmem>>, vector<32x32xf32>
    %120 = arith.index_cast %115 : i32 to index
    %c0_70 = arith.constant 0 : index
    %121 = vector.load %arg12[%120, %c0_70] : memref<256x32xf32, #tpu.memory_space<vmem>>, vector<32x32xf32>
    %cst_71 = arith.constant dense<0.000000e+00> : vector<32x32xf32>
    %122 = tpu.matmul %113, %40, %cst_71 {dimension_numbers = #tpu.dot_dimension_numbers<[1], [0], [0], [1], [0, 0, 1, 1], [], []>} : vector<32x32xf32>, vector<32x32xf32>, vector<32x32xf32> -> vector<32x32xf32>
    %cst_72 = arith.constant dense<0.000000e+00> : vector<32x32xf32>
    %123 = tpu.matmul %113, %42, %cst_72 {dimension_numbers = #tpu.dot_dimension_numbers<[1], [0], [0], [1], [0, 0, 1, 1], [], []>} : vector<32x32xf32>, vector<32x32xf32>, vector<32x32xf32> -> vector<32x32xf32>
    %cst_73 = arith.constant dense<0.000000e+00> : vector<32x32xf32>
    %124 = tpu.matmul %113, %44, %cst_73 {dimension_numbers = #tpu.dot_dimension_numbers<[1], [0], [0], [1], [0, 0, 1, 1], [], []>} : vector<32x32xf32>, vector<32x32xf32>, vector<32x32xf32> -> vector<32x32xf32>
    %125 = arith.addf %124, %48 : vector<32x32xf32>
    %126 = arith.addf %117, %122 : vector<32x32xf32>
    %127 = arith.negf %126 : vector<32x32xf32>
    %128 = math.exp %127 : vector<32x32xf32>
    %cst_74 = arith.constant 1.000000e+00 : f32
    %129 = vector.broadcast %cst_74 : f32 to vector<32x32xf32>
    %130 = arith.addf %129, %128 : vector<32x32xf32>
    %131 = arith.divf %129, %130 : vector<32x32xf32>
    %132 = arith.addf %119, %123 : vector<32x32xf32>
    %133 = arith.negf %132 : vector<32x32xf32>
    %134 = math.exp %133 : vector<32x32xf32>
    %cst_75 = arith.constant 1.000000e+00 : f32
    %135 = vector.broadcast %cst_75 : f32 to vector<32x32xf32>
    %136 = arith.addf %135, %134 : vector<32x32xf32>
    %137 = arith.divf %135, %136 : vector<32x32xf32>
    %138 = arith.mulf %131, %125 : vector<32x32xf32>
    %139 = arith.addf %121, %138 : vector<32x32xf32>
    %140 = math.tanh %139 : vector<32x32xf32>
    %cst_76 = arith.constant 1.000000e+00 : f32
    %141 = vector.broadcast %cst_76 : f32 to vector<32x32xf32>
    %142 = arith.subf %141, %137 : vector<32x32xf32>
    %143 = arith.mulf %142, %140 : vector<32x32xf32>
    %144 = arith.mulf %137, %113 : vector<32x32xf32>
    %145 = arith.addf %143, %144 : vector<32x32xf32>
    %c3_i32 = arith.constant 3 : i32
    %c32_i32_77 = arith.constant 32 : i32
    %146 = arith.muli %c3_i32, %c32_i32_77 : i32
    %147 = tpu.assume_multiple %146, 32 : i32
    %148 = arith.index_cast %147 : i32 to index
    %c0_78 = arith.constant 0 : index
    %149 = vector.load %arg10[%148, %c0_78] : memref<256x32xf32, #tpu.memory_space<vmem>>, vector<32x32xf32>
    %150 = arith.index_cast %147 : i32 to index
    %c0_79 = arith.constant 0 : index
    %151 = vector.load %arg11[%150, %c0_79] : memref<256x32xf32, #tpu.memory_space<vmem>>, vector<32x32xf32>
    %152 = arith.index_cast %147 : i32 to index
    %c0_80 = arith.constant 0 : index
    %153 = vector.load %arg12[%152, %c0_80] : memref<256x32xf32, #tpu.memory_space<vmem>>, vector<32x32xf32>
    %cst_81 = arith.constant dense<0.000000e+00> : vector<32x32xf32>
    %154 = tpu.matmul %145, %40, %cst_81 {dimension_numbers = #tpu.dot_dimension_numbers<[1], [0], [0], [1], [0, 0, 1, 1], [], []>} : vector<32x32xf32>, vector<32x32xf32>, vector<32x32xf32> -> vector<32x32xf32>
    %cst_82 = arith.constant dense<0.000000e+00> : vector<32x32xf32>
    %155 = tpu.matmul %145, %42, %cst_82 {dimension_numbers = #tpu.dot_dimension_numbers<[1], [0], [0], [1], [0, 0, 1, 1], [], []>} : vector<32x32xf32>, vector<32x32xf32>, vector<32x32xf32> -> vector<32x32xf32>
    %cst_83 = arith.constant dense<0.000000e+00> : vector<32x32xf32>
    %156 = tpu.matmul %145, %44, %cst_83 {dimension_numbers = #tpu.dot_dimension_numbers<[1], [0], [0], [1], [0, 0, 1, 1], [], []>} : vector<32x32xf32>, vector<32x32xf32>, vector<32x32xf32> -> vector<32x32xf32>
    %157 = arith.addf %156, %48 : vector<32x32xf32>
    %158 = arith.addf %149, %154 : vector<32x32xf32>
    %159 = arith.negf %158 : vector<32x32xf32>
    %160 = math.exp %159 : vector<32x32xf32>
    %cst_84 = arith.constant 1.000000e+00 : f32
    %161 = vector.broadcast %cst_84 : f32 to vector<32x32xf32>
    %162 = arith.addf %161, %160 : vector<32x32xf32>
    %163 = arith.divf %161, %162 : vector<32x32xf32>
    %164 = arith.addf %151, %155 : vector<32x32xf32>
    %165 = arith.negf %164 : vector<32x32xf32>
    %166 = math.exp %165 : vector<32x32xf32>
    %cst_85 = arith.constant 1.000000e+00 : f32
    %167 = vector.broadcast %cst_85 : f32 to vector<32x32xf32>
    %168 = arith.addf %167, %166 : vector<32x32xf32>
    %169 = arith.divf %167, %168 : vector<32x32xf32>
    %170 = arith.mulf %163, %157 : vector<32x32xf32>
    %171 = arith.addf %153, %170 : vector<32x32xf32>
    %172 = math.tanh %171 : vector<32x32xf32>
    %cst_86 = arith.constant 1.000000e+00 : f32
    %173 = vector.broadcast %cst_86 : f32 to vector<32x32xf32>
    %174 = arith.subf %173, %169 : vector<32x32xf32>
    %175 = arith.mulf %174, %172 : vector<32x32xf32>
    %176 = arith.mulf %169, %145 : vector<32x32xf32>
    %177 = arith.addf %175, %176 : vector<32x32xf32>
    %c4_i32 = arith.constant 4 : i32
    %c32_i32_87 = arith.constant 32 : i32
    %178 = arith.muli %c4_i32, %c32_i32_87 : i32
    %179 = tpu.assume_multiple %178, 32 : i32
    %180 = arith.index_cast %179 : i32 to index
    %c0_88 = arith.constant 0 : index
    %181 = vector.load %arg10[%180, %c0_88] : memref<256x32xf32, #tpu.memory_space<vmem>>, vector<32x32xf32>
    %182 = arith.index_cast %179 : i32 to index
    %c0_89 = arith.constant 0 : index
    %183 = vector.load %arg11[%182, %c0_89] : memref<256x32xf32, #tpu.memory_space<vmem>>, vector<32x32xf32>
    %184 = arith.index_cast %179 : i32 to index
    %c0_90 = arith.constant 0 : index
    %185 = vector.load %arg12[%184, %c0_90] : memref<256x32xf32, #tpu.memory_space<vmem>>, vector<32x32xf32>
    %cst_91 = arith.constant dense<0.000000e+00> : vector<32x32xf32>
    %186 = tpu.matmul %177, %40, %cst_91 {dimension_numbers = #tpu.dot_dimension_numbers<[1], [0], [0], [1], [0, 0, 1, 1], [], []>} : vector<32x32xf32>, vector<32x32xf32>, vector<32x32xf32> -> vector<32x32xf32>
    %cst_92 = arith.constant dense<0.000000e+00> : vector<32x32xf32>
    %187 = tpu.matmul %177, %42, %cst_92 {dimension_numbers = #tpu.dot_dimension_numbers<[1], [0], [0], [1], [0, 0, 1, 1], [], []>} : vector<32x32xf32>, vector<32x32xf32>, vector<32x32xf32> -> vector<32x32xf32>
    %cst_93 = arith.constant dense<0.000000e+00> : vector<32x32xf32>
    %188 = tpu.matmul %177, %44, %cst_93 {dimension_numbers = #tpu.dot_dimension_numbers<[1], [0], [0], [1], [0, 0, 1, 1], [], []>} : vector<32x32xf32>, vector<32x32xf32>, vector<32x32xf32> -> vector<32x32xf32>
    %189 = arith.addf %188, %48 : vector<32x32xf32>
    %190 = arith.addf %181, %186 : vector<32x32xf32>
    %191 = arith.negf %190 : vector<32x32xf32>
    %192 = math.exp %191 : vector<32x32xf32>
    %cst_94 = arith.constant 1.000000e+00 : f32
    %193 = vector.broadcast %cst_94 : f32 to vector<32x32xf32>
    %194 = arith.addf %193, %192 : vector<32x32xf32>
    %195 = arith.divf %193, %194 : vector<32x32xf32>
    %196 = arith.addf %183, %187 : vector<32x32xf32>
    %197 = arith.negf %196 : vector<32x32xf32>
    %198 = math.exp %197 : vector<32x32xf32>
    %cst_95 = arith.constant 1.000000e+00 : f32
    %199 = vector.broadcast %cst_95 : f32 to vector<32x32xf32>
    %200 = arith.addf %199, %198 : vector<32x32xf32>
    %201 = arith.divf %199, %200 : vector<32x32xf32>
    %202 = arith.mulf %195, %189 : vector<32x32xf32>
    %203 = arith.addf %185, %202 : vector<32x32xf32>
    %204 = math.tanh %203 : vector<32x32xf32>
    %cst_96 = arith.constant 1.000000e+00 : f32
    %205 = vector.broadcast %cst_96 : f32 to vector<32x32xf32>
    %206 = arith.subf %205, %201 : vector<32x32xf32>
    %207 = arith.mulf %206, %204 : vector<32x32xf32>
    %208 = arith.mulf %201, %177 : vector<32x32xf32>
    %209 = arith.addf %207, %208 : vector<32x32xf32>
    %c5_i32 = arith.constant 5 : i32
    %c32_i32_97 = arith.constant 32 : i32
    %210 = arith.muli %c5_i32, %c32_i32_97 : i32
    %211 = tpu.assume_multiple %210, 32 : i32
    %212 = arith.index_cast %211 : i32 to index
    %c0_98 = arith.constant 0 : index
    %213 = vector.load %arg10[%212, %c0_98] : memref<256x32xf32, #tpu.memory_space<vmem>>, vector<32x32xf32>
    %214 = arith.index_cast %211 : i32 to index
    %c0_99 = arith.constant 0 : index
    %215 = vector.load %arg11[%214, %c0_99] : memref<256x32xf32, #tpu.memory_space<vmem>>, vector<32x32xf32>
    %216 = arith.index_cast %211 : i32 to index
    %c0_100 = arith.constant 0 : index
    %217 = vector.load %arg12[%216, %c0_100] : memref<256x32xf32, #tpu.memory_space<vmem>>, vector<32x32xf32>
    %cst_101 = arith.constant dense<0.000000e+00> : vector<32x32xf32>
    %218 = tpu.matmul %209, %40, %cst_101 {dimension_numbers = #tpu.dot_dimension_numbers<[1], [0], [0], [1], [0, 0, 1, 1], [], []>} : vector<32x32xf32>, vector<32x32xf32>, vector<32x32xf32> -> vector<32x32xf32>
    %cst_102 = arith.constant dense<0.000000e+00> : vector<32x32xf32>
    %219 = tpu.matmul %209, %42, %cst_102 {dimension_numbers = #tpu.dot_dimension_numbers<[1], [0], [0], [1], [0, 0, 1, 1], [], []>} : vector<32x32xf32>, vector<32x32xf32>, vector<32x32xf32> -> vector<32x32xf32>
    %cst_103 = arith.constant dense<0.000000e+00> : vector<32x32xf32>
    %220 = tpu.matmul %209, %44, %cst_103 {dimension_numbers = #tpu.dot_dimension_numbers<[1], [0], [0], [1], [0, 0, 1, 1], [], []>} : vector<32x32xf32>, vector<32x32xf32>, vector<32x32xf32> -> vector<32x32xf32>
    %221 = arith.addf %220, %48 : vector<32x32xf32>
    %222 = arith.addf %213, %218 : vector<32x32xf32>
    %223 = arith.negf %222 : vector<32x32xf32>
    %224 = math.exp %223 : vector<32x32xf32>
    %cst_104 = arith.constant 1.000000e+00 : f32
    %225 = vector.broadcast %cst_104 : f32 to vector<32x32xf32>
    %226 = arith.addf %225, %224 : vector<32x32xf32>
    %227 = arith.divf %225, %226 : vector<32x32xf32>
    %228 = arith.addf %215, %219 : vector<32x32xf32>
    %229 = arith.negf %228 : vector<32x32xf32>
    %230 = math.exp %229 : vector<32x32xf32>
    %cst_105 = arith.constant 1.000000e+00 : f32
    %231 = vector.broadcast %cst_105 : f32 to vector<32x32xf32>
    %232 = arith.addf %231, %230 : vector<32x32xf32>
    %233 = arith.divf %231, %232 : vector<32x32xf32>
    %234 = arith.mulf %227, %221 : vector<32x32xf32>
    %235 = arith.addf %217, %234 : vector<32x32xf32>
    %236 = math.tanh %235 : vector<32x32xf32>
    %cst_106 = arith.constant 1.000000e+00 : f32
    %237 = vector.broadcast %cst_106 : f32 to vector<32x32xf32>
    %238 = arith.subf %237, %233 : vector<32x32xf32>
    %239 = arith.mulf %238, %236 : vector<32x32xf32>
    %240 = arith.mulf %233, %209 : vector<32x32xf32>
    %241 = arith.addf %239, %240 : vector<32x32xf32>
    %c6_i32 = arith.constant 6 : i32
    %c32_i32_107 = arith.constant 32 : i32
    %242 = arith.muli %c6_i32, %c32_i32_107 : i32
    %243 = tpu.assume_multiple %242, 32 : i32
    %244 = arith.index_cast %243 : i32 to index
    %c0_108 = arith.constant 0 : index
    %245 = vector.load %arg10[%244, %c0_108] : memref<256x32xf32, #tpu.memory_space<vmem>>, vector<32x32xf32>
    %246 = arith.index_cast %243 : i32 to index
    %c0_109 = arith.constant 0 : index
    %247 = vector.load %arg11[%246, %c0_109] : memref<256x32xf32, #tpu.memory_space<vmem>>, vector<32x32xf32>
    %248 = arith.index_cast %243 : i32 to index
    %c0_110 = arith.constant 0 : index
    %249 = vector.load %arg12[%248, %c0_110] : memref<256x32xf32, #tpu.memory_space<vmem>>, vector<32x32xf32>
    %cst_111 = arith.constant dense<0.000000e+00> : vector<32x32xf32>
    %250 = tpu.matmul %241, %40, %cst_111 {dimension_numbers = #tpu.dot_dimension_numbers<[1], [0], [0], [1], [0, 0, 1, 1], [], []>} : vector<32x32xf32>, vector<32x32xf32>, vector<32x32xf32> -> vector<32x32xf32>
    %cst_112 = arith.constant dense<0.000000e+00> : vector<32x32xf32>
    %251 = tpu.matmul %241, %42, %cst_112 {dimension_numbers = #tpu.dot_dimension_numbers<[1], [0], [0], [1], [0, 0, 1, 1], [], []>} : vector<32x32xf32>, vector<32x32xf32>, vector<32x32xf32> -> vector<32x32xf32>
    %cst_113 = arith.constant dense<0.000000e+00> : vector<32x32xf32>
    %252 = tpu.matmul %241, %44, %cst_113 {dimension_numbers = #tpu.dot_dimension_numbers<[1], [0], [0], [1], [0, 0, 1, 1], [], []>} : vector<32x32xf32>, vector<32x32xf32>, vector<32x32xf32> -> vector<32x32xf32>
    %253 = arith.addf %252, %48 : vector<32x32xf32>
    %254 = arith.addf %245, %250 : vector<32x32xf32>
    %255 = arith.negf %254 : vector<32x32xf32>
    %256 = math.exp %255 : vector<32x32xf32>
    %cst_114 = arith.constant 1.000000e+00 : f32
    %257 = vector.broadcast %cst_114 : f32 to vector<32x32xf32>
    %258 = arith.addf %257, %256 : vector<32x32xf32>
    %259 = arith.divf %257, %258 : vector<32x32xf32>
    %260 = arith.addf %247, %251 : vector<32x32xf32>
    %261 = arith.negf %260 : vector<32x32xf32>
    %262 = math.exp %261 : vector<32x32xf32>
    %cst_115 = arith.constant 1.000000e+00 : f32
    %263 = vector.broadcast %cst_115 : f32 to vector<32x32xf32>
    %264 = arith.addf %263, %262 : vector<32x32xf32>
    %265 = arith.divf %263, %264 : vector<32x32xf32>
    %266 = arith.mulf %259, %253 : vector<32x32xf32>
    %267 = arith.addf %249, %266 : vector<32x32xf32>
    %268 = math.tanh %267 : vector<32x32xf32>
    %cst_116 = arith.constant 1.000000e+00 : f32
    %269 = vector.broadcast %cst_116 : f32 to vector<32x32xf32>
    %270 = arith.subf %269, %265 : vector<32x32xf32>
    %271 = arith.mulf %270, %268 : vector<32x32xf32>
    %272 = arith.mulf %265, %241 : vector<32x32xf32>
    %273 = arith.addf %271, %272 : vector<32x32xf32>
    %c7_i32 = arith.constant 7 : i32
    %c32_i32_117 = arith.constant 32 : i32
    %274 = arith.muli %c7_i32, %c32_i32_117 : i32
    %275 = tpu.assume_multiple %274, 32 : i32
    %276 = arith.index_cast %275 : i32 to index
    %c0_118 = arith.constant 0 : index
    %277 = vector.load %arg10[%276, %c0_118] : memref<256x32xf32, #tpu.memory_space<vmem>>, vector<32x32xf32>
    %278 = arith.index_cast %275 : i32 to index
    %c0_119 = arith.constant 0 : index
    %279 = vector.load %arg11[%278, %c0_119] : memref<256x32xf32, #tpu.memory_space<vmem>>, vector<32x32xf32>
    %280 = arith.index_cast %275 : i32 to index
    %c0_120 = arith.constant 0 : index
    %281 = vector.load %arg12[%280, %c0_120] : memref<256x32xf32, #tpu.memory_space<vmem>>, vector<32x32xf32>
    %cst_121 = arith.constant dense<0.000000e+00> : vector<32x32xf32>
    %282 = tpu.matmul %273, %40, %cst_121 {dimension_numbers = #tpu.dot_dimension_numbers<[1], [0], [0], [1], [0, 0, 1, 1], [], []>} : vector<32x32xf32>, vector<32x32xf32>, vector<32x32xf32> -> vector<32x32xf32>
    %cst_122 = arith.constant dense<0.000000e+00> : vector<32x32xf32>
    %283 = tpu.matmul %273, %42, %cst_122 {dimension_numbers = #tpu.dot_dimension_numbers<[1], [0], [0], [1], [0, 0, 1, 1], [], []>} : vector<32x32xf32>, vector<32x32xf32>, vector<32x32xf32> -> vector<32x32xf32>
    %cst_123 = arith.constant dense<0.000000e+00> : vector<32x32xf32>
    %284 = tpu.matmul %273, %44, %cst_123 {dimension_numbers = #tpu.dot_dimension_numbers<[1], [0], [0], [1], [0, 0, 1, 1], [], []>} : vector<32x32xf32>, vector<32x32xf32>, vector<32x32xf32> -> vector<32x32xf32>
    %285 = arith.addf %284, %48 : vector<32x32xf32>
    %286 = arith.addf %277, %282 : vector<32x32xf32>
    %287 = arith.negf %286 : vector<32x32xf32>
    %288 = math.exp %287 : vector<32x32xf32>
    %cst_124 = arith.constant 1.000000e+00 : f32
    %289 = vector.broadcast %cst_124 : f32 to vector<32x32xf32>
    %290 = arith.addf %289, %288 : vector<32x32xf32>
    %291 = arith.divf %289, %290 : vector<32x32xf32>
    %292 = arith.addf %279, %283 : vector<32x32xf32>
    %293 = arith.negf %292 : vector<32x32xf32>
    %294 = math.exp %293 : vector<32x32xf32>
    %cst_125 = arith.constant 1.000000e+00 : f32
    %295 = vector.broadcast %cst_125 : f32 to vector<32x32xf32>
    %296 = arith.addf %295, %294 : vector<32x32xf32>
    %297 = arith.divf %295, %296 : vector<32x32xf32>
    %298 = arith.mulf %291, %285 : vector<32x32xf32>
    %299 = arith.addf %281, %298 : vector<32x32xf32>
    %300 = math.tanh %299 : vector<32x32xf32>
    %cst_126 = arith.constant 1.000000e+00 : f32
    %301 = vector.broadcast %cst_126 : f32 to vector<32x32xf32>
    %302 = arith.subf %301, %297 : vector<32x32xf32>
    %303 = arith.mulf %302, %300 : vector<32x32xf32>
    %304 = arith.mulf %297, %273 : vector<32x32xf32>
    %305 = arith.addf %303, %304 : vector<32x32xf32>
    %c8_i32 = arith.constant 8 : i32
    %c0_127 = arith.constant 0 : index
    %c0_128 = arith.constant 0 : index
    %306 = vector.load %arg7[%c0_127, %c0_128] : memref<8x8xf32, #tpu.memory_space<vmem>>, vector<8x8xf32>
    %c0_129 = arith.constant 0 : index
    %c0_130 = arith.constant 0 : index
    %307 = vector.load %arg8[%c0_129, %c0_130] : memref<8x8xf32, #tpu.memory_space<vmem>>, vector<8x8xf32>
    %308 = vector.extract_strided_slice %305 {offsets = [0, 0], sizes = [8, 32], strides = [1, 1]} : vector<32x32xf32> to vector<8x32xf32>
    %cst_131 = arith.constant dense<0.000000e+00> : vector<8x8xf32>
    %309 = tpu.matmul %308, %308, %cst_131 {dimension_numbers = #tpu.dot_dimension_numbers<[1], [1], [0], [0], [0, 0, 1, 0], [], []>} : vector<8x32xf32>, vector<8x32xf32>, vector<8x8xf32> -> vector<8x8xf32>
    %310 = arith.mulf %309, %307 : vector<8x8xf32>
    %cst_132 = arith.constant dense<0xFF800000> : vector<8xf32>
    %311 = vector.multi_reduction <maximumf>, %310, %cst_132 [1] : vector<8x8xf32> to vector<8xf32>
    %312 = vector.shape_cast %311 : vector<8xf32> to vector<8x1xf32>
    %313 = vector.broadcast %312 : vector<8x1xf32> to vector<8x8xf32>
    %314 = arith.subf %310, %313 : vector<8x8xf32>
    %315 = math.exp %314 : vector<8x8xf32>
    %cst_133 = arith.constant dense<0.000000e+00> : vector<8xf32>
    %316 = vector.multi_reduction <add>, %315, %cst_133 [1] : vector<8x8xf32> to vector<8xf32>
    %317 = vector.shape_cast %316 : vector<8xf32> to vector<8x1xf32>
    %318 = math.log %317 : vector<8x1xf32>
    %319 = arith.addf %312, %318 : vector<8x1xf32>
    %320 = vector.broadcast %319 : vector<8x1xf32> to vector<8x8xf32>
    %321 = arith.subf %310, %320 : vector<8x8xf32>
    %322 = arith.mulf %306, %321 : vector<8x8xf32>
    %323 = vector.shape_cast %322 : vector<8x8xf32> to vector<1x8x8xf32>
    %cst_134 = arith.constant dense<0.000000e+00> : vector<1xf32>
    %324 = vector.multi_reduction <add>, %323, %cst_134 [1, 2] : vector<1x8x8xf32> to vector<1xf32>
    %325 = vector.shape_cast %324 : vector<1xf32> to vector<1x1x1xf32>
    %326 = vector.extract %325[0, 0, 0] : f32 from vector<1x1x1xf32>
    %327 = vector.broadcast %326 : f32 to vector<1x1xf32>
    %cst_135 = arith.constant -1.250000e-01 : f32
    %328 = vector.broadcast %cst_135 : f32 to vector<1x1xf32>
    %329 = arith.mulf %327, %328 : vector<1x1xf32>
    %c0_136 = arith.constant 0 : index
    %c0_137 = arith.constant 0 : index
    %c0_138 = arith.constant 0 : index
    %330 = vector.load %arg9[%c0_136, %c0_137, %c0_138] : memref<1x4x1xf32, #tpu.memory_space<vmem>>, vector<1x1x1xf32>
    %331 = vector.shape_cast %330 : vector<1x1x1xf32> to vector<1x1xf32>
    %332 = vector.shape_cast %329 : vector<1x1xf32> to vector<1x1x1xf32>
    tpu.vector_store %arg9[%c0_136, %c0_137, %c0_138], %332 {strides = array<i32>} : memref<1x4x1xf32, #tpu.memory_space<vmem>>, vector<1x1x1xf32>,
    %333 = vector.extract_strided_slice %305 {offsets = [8, 0], sizes = [8, 32], strides = [1, 1]} : vector<32x32xf32> to vector<8x32xf32>
    %cst_139 = arith.constant dense<0.000000e+00> : vector<8x8xf32>
    %334 = tpu.matmul %333, %333, %cst_139 {dimension_numbers = #tpu.dot_dimension_numbers<[1], [1], [0], [0], [0, 0, 1, 0], [], []>} : vector<8x32xf32>, vector<8x32xf32>, vector<8x8xf32> -> vector<8x8xf32>
    %335 = arith.mulf %334, %307 : vector<8x8xf32>
    %cst_140 = arith.constant dense<0xFF800000> : vector<8xf32>
    %336 = vector.multi_reduction <maximumf>, %335, %cst_140 [1] : vector<8x8xf32> to vector<8xf32>
    %337 = vector.shape_cast %336 : vector<8xf32> to vector<8x1xf32>
    %338 = vector.broadcast %337 : vector<8x1xf32> to vector<8x8xf32>
    %339 = arith.subf %335, %338 : vector<8x8xf32>
    %340 = math.exp %339 : vector<8x8xf32>
    %cst_141 = arith.constant dense<0.000000e+00> : vector<8xf32>
    %341 = vector.multi_reduction <add>, %340, %cst_141 [1] : vector<8x8xf32> to vector<8xf32>
    %342 = vector.shape_cast %341 : vector<8xf32> to vector<8x1xf32>
    %343 = math.log %342 : vector<8x1xf32>
    %344 = arith.addf %337, %343 : vector<8x1xf32>
    %345 = vector.broadcast %344 : vector<8x1xf32> to vector<8x8xf32>
    %346 = arith.subf %335, %345 : vector<8x8xf32>
    %347 = arith.mulf %306, %346 : vector<8x8xf32>
    %348 = vector.shape_cast %347 : vector<8x8xf32> to vector<1x8x8xf32>
    %cst_142 = arith.constant dense<0.000000e+00> : vector<1xf32>
    %349 = vector.multi_reduction <add>, %348, %cst_142 [1, 2] : vector<1x8x8xf32> to vector<1xf32>
    %350 = vector.shape_cast %349 : vector<1xf32> to vector<1x1x1xf32>
    %351 = vector.extract %350[0, 0, 0] : f32 from vector<1x1x1xf32>
    %352 = vector.broadcast %351 : f32 to vector<1x1xf32>
    %cst_143 = arith.constant -1.250000e-01 : f32
    %353 = vector.broadcast %cst_143 : f32 to vector<1x1xf32>
    %354 = arith.mulf %352, %353 : vector<1x1xf32>
    %c0_144 = arith.constant 0 : index
    %c1_145 = arith.constant 1 : index
    %c0_146 = arith.constant 0 : index
    %355 = vector.load %arg9[%c0_144, %c1_145, %c0_146] : memref<1x4x1xf32, #tpu.memory_space<vmem>>, vector<1x1x1xf32>
    %356 = vector.shape_cast %355 : vector<1x1x1xf32> to vector<1x1xf32>
    %357 = vector.shape_cast %354 : vector<1x1xf32> to vector<1x1x1xf32>
    tpu.vector_store %arg9[%c0_144, %c1_145, %c0_146], %357 {strides = array<i32>} : memref<1x4x1xf32, #tpu.memory_space<vmem>>, vector<1x1x1xf32>,
    %358 = vector.extract_strided_slice %305 {offsets = [16, 0], sizes = [8, 32], strides = [1, 1]} : vector<32x32xf32> to vector<8x32xf32>
    %cst_147 = arith.constant dense<0.000000e+00> : vector<8x8xf32>
    %359 = tpu.matmul %358, %358, %cst_147 {dimension_numbers = #tpu.dot_dimension_numbers<[1], [1], [0], [0], [0, 0, 1, 0], [], []>} : vector<8x32xf32>, vector<8x32xf32>, vector<8x8xf32> -> vector<8x8xf32>
    %360 = arith.mulf %359, %307 : vector<8x8xf32>
    %cst_148 = arith.constant dense<0xFF800000> : vector<8xf32>
    %361 = vector.multi_reduction <maximumf>, %360, %cst_148 [1] : vector<8x8xf32> to vector<8xf32>
    %362 = vector.shape_cast %361 : vector<8xf32> to vector<8x1xf32>
    %363 = vector.broadcast %362 : vector<8x1xf32> to vector<8x8xf32>
    %364 = arith.subf %360, %363 : vector<8x8xf32>
    %365 = math.exp %364 : vector<8x8xf32>
    %cst_149 = arith.constant dense<0.000000e+00> : vector<8xf32>
    %366 = vector.multi_reduction <add>, %365, %cst_149 [1] : vector<8x8xf32> to vector<8xf32>
    %367 = vector.shape_cast %366 : vector<8xf32> to vector<8x1xf32>
    %368 = math.log %367 : vector<8x1xf32>
    %369 = arith.addf %362, %368 : vector<8x1xf32>
    %370 = vector.broadcast %369 : vector<8x1xf32> to vector<8x8xf32>
    %371 = arith.subf %360, %370 : vector<8x8xf32>
    %372 = arith.mulf %306, %371 : vector<8x8xf32>
    %373 = vector.shape_cast %372 : vector<8x8xf32> to vector<1x8x8xf32>
    %cst_150 = arith.constant dense<0.000000e+00> : vector<1xf32>
    %374 = vector.multi_reduction <add>, %373, %cst_150 [1, 2] : vector<1x8x8xf32> to vector<1xf32>
    %375 = vector.shape_cast %374 : vector<1xf32> to vector<1x1x1xf32>
    %376 = vector.extract %375[0, 0, 0] : f32 from vector<1x1x1xf32>
    %377 = vector.broadcast %376 : f32 to vector<1x1xf32>
    %cst_151 = arith.constant -1.250000e-01 : f32
    %378 = vector.broadcast %cst_151 : f32 to vector<1x1xf32>
    %379 = arith.mulf %377, %378 : vector<1x1xf32>
    %c0_152 = arith.constant 0 : index
    %c2_153 = arith.constant 2 : index
    %c0_154 = arith.constant 0 : index
    %380 = vector.load %arg9[%c0_152, %c2_153, %c0_154] : memref<1x4x1xf32, #tpu.memory_space<vmem>>, vector<1x1x1xf32>
    %381 = vector.shape_cast %380 : vector<1x1x1xf32> to vector<1x1xf32>
    %382 = vector.shape_cast %379 : vector<1x1xf32> to vector<1x1x1xf32>
    tpu.vector_store %arg9[%c0_152, %c2_153, %c0_154], %382 {strides = array<i32>} : memref<1x4x1xf32, #tpu.memory_space<vmem>>, vector<1x1x1xf32>,
    %383 = vector.extract_strided_slice %305 {offsets = [24, 0], sizes = [8, 32], strides = [1, 1]} : vector<32x32xf32> to vector<8x32xf32>
    %cst_155 = arith.constant dense<0.000000e+00> : vector<8x8xf32>
    %384 = tpu.matmul %383, %383, %cst_155 {dimension_numbers = #tpu.dot_dimension_numbers<[1], [1], [0], [0], [0, 0, 1, 0], [], []>} : vector<8x32xf32>, vector<8x32xf32>, vector<8x8xf32> -> vector<8x8xf32>
    %385 = arith.mulf %384, %307 : vector<8x8xf32>
    %cst_156 = arith.constant dense<0xFF800000> : vector<8xf32>
    %386 = vector.multi_reduction <maximumf>, %385, %cst_156 [1] : vector<8x8xf32> to vector<8xf32>
    %387 = vector.shape_cast %386 : vector<8xf32> to vector<8x1xf32>
    %388 = vector.broadcast %387 : vector<8x1xf32> to vector<8x8xf32>
    %389 = arith.subf %385, %388 : vector<8x8xf32>
    %390 = math.exp %389 : vector<8x8xf32>
    %cst_157 = arith.constant dense<0.000000e+00> : vector<8xf32>
    %391 = vector.multi_reduction <add>, %390, %cst_157 [1] : vector<8x8xf32> to vector<8xf32>
    %392 = vector.shape_cast %391 : vector<8xf32> to vector<8x1xf32>
    %393 = math.log %392 : vector<8x1xf32>
    %394 = arith.addf %387, %393 : vector<8x1xf32>
    %395 = vector.broadcast %394 : vector<8x1xf32> to vector<8x8xf32>
    %396 = arith.subf %385, %395 : vector<8x8xf32>
    %397 = arith.mulf %306, %396 : vector<8x8xf32>
    %398 = vector.shape_cast %397 : vector<8x8xf32> to vector<1x8x8xf32>
    %cst_158 = arith.constant dense<0.000000e+00> : vector<1xf32>
    %399 = vector.multi_reduction <add>, %398, %cst_158 [1, 2] : vector<1x8x8xf32> to vector<1xf32>
    %400 = vector.shape_cast %399 : vector<1xf32> to vector<1x1x1xf32>
    %401 = vector.extract %400[0, 0, 0] : f32 from vector<1x1x1xf32>
    %402 = vector.broadcast %401 : f32 to vector<1x1xf32>
    %cst_159 = arith.constant -1.250000e-01 : f32
    %403 = vector.broadcast %cst_159 : f32 to vector<1x1xf32>
    %404 = arith.mulf %402, %403 : vector<1x1xf32>
    %c0_160 = arith.constant 0 : index
    %c3 = arith.constant 3 : index
    %c0_161 = arith.constant 0 : index
    %405 = vector.load %arg9[%c0_160, %c3, %c0_161] : memref<1x4x1xf32, #tpu.memory_space<vmem>>, vector<1x1x1xf32>
    %406 = vector.shape_cast %405 : vector<1x1x1xf32> to vector<1x1xf32>
    %407 = vector.shape_cast %404 : vector<1x1xf32> to vector<1x1x1xf32>
    tpu.vector_store %arg9[%c0_160, %c3, %c0_161], %407 {strides = array<i32>} : memref<1x4x1xf32, #tpu.memory_space<vmem>>, vector<1x1x1xf32>,
    return
  }
  func.func @transform_0(%arg0: i32) -> (i32, i32, i32) {
    %c0_i32 = arith.constant 0 : i32
    %c0_i32_0 = arith.constant 0 : i32
    %c0_i32_1 = arith.constant 0 : i32
    return %arg0, %c0_i32, %c0_i32_0 : i32, i32, i32
  }
  func.func @transform_1(%arg0: i32) -> (i32, i32) {
    %c0_i32 = arith.constant 0 : i32
    %c0_i32_0 = arith.constant 0 : i32
    %c0_i32_1 = arith.constant 0 : i32
    return %c0_i32, %c0_i32_0 : i32, i32
  }
  func.func @transform_2(%arg0: i32) -> (i32, i32, i32) {
    %c0_i32 = arith.constant 0 : i32
    %c0_i32_0 = arith.constant 0 : i32
    %c0_i32_1 = arith.constant 0 : i32
    %c0_i32_2 = arith.constant 0 : i32
    return %c0_i32, %c0_i32_0, %c0_i32_1 : i32, i32, i32
  }
  func.func @transform_3(%arg0: i32) -> (i32, i32, i32) {
    %c0_i32 = arith.constant 0 : i32
    %c0_i32_0 = arith.constant 0 : i32
    %c0_i32_1 = arith.constant 0 : i32
    %c0_i32_2 = arith.constant 0 : i32
    return %c0_i32, %c0_i32_0, %c0_i32_1 : i32, i32, i32
  }
  func.func @transform_4(%arg0: i32) -> (i32, i32, i32) {
    %c0_i32 = arith.constant 0 : i32
    %c0_i32_0 = arith.constant 0 : i32
    %c0_i32_1 = arith.constant 0 : i32
    %c0_i32_2 = arith.constant 0 : i32
    return %c0_i32, %c0_i32_0, %c0_i32_1 : i32, i32, i32
  }
  func.func @transform_5(%arg0: i32) -> (i32, i32, i32) {
    %c0_i32 = arith.constant 0 : i32
    %c0_i32_0 = arith.constant 0 : i32
    %c0_i32_1 = arith.constant 0 : i32
    %c0_i32_2 = arith.constant 0 : i32
    return %c0_i32, %c0_i32_0, %c0_i32_1 : i32, i32, i32
  }
  func.func @transform_6(%arg0: i32) -> (i32, i32) {
    %c0_i32 = arith.constant 0 : i32
    %c0_i32_0 = arith.constant 0 : i32
    %c0_i32_1 = arith.constant 0 : i32
    return %c0_i32, %c0_i32_0 : i32, i32
  }
  func.func @transform_7(%arg0: i32) -> (i32, i32) {
    %c0_i32 = arith.constant 0 : i32
    %c0_i32_0 = arith.constant 0 : i32
    %c0_i32_1 = arith.constant 0 : i32
    return %c0_i32, %c0_i32_0 : i32, i32
  }
  func.func @transform_8(%arg0: i32) -> (i32, i32, i32) {
    %c0_i32 = arith.constant 0 : i32
    %c0_i32_0 = arith.constant 0 : i32
    %c0_i32_1 = arith.constant 0 : i32
    return %arg0, %c0_i32, %c0_i32_0 : i32, i32, i32
  }
}

</mosaic_0001>

<llo_original>
// kernel: quickthoughts_forward_batched.1
$region0: #{quickthoughts_forward_batched.1}
  #allocation0 [shape = 'u32[]', space=smem, size = 0x4, offset = 0x4, fixed_abs, tag = 'smem constant byte address 0x4 - core index']
  #allocation1 [shape = 'u32[144,128]{1,0:T(1,128)}', space=vmem, size = 0x12000, scoped, tag = 'internal scratch']
  #allocation2 [shape = 'f32[256,32]{1,0:T(8,128)}', space=vmem, size = 0x20000, scoped, tag = 'scratch operand']
  #allocation3 [shape = 'f32[256,32]{1,0:T(8,128)}', space=vmem, size = 0x20000, scoped, tag = 'scratch operand']
  #allocation4 [shape = 'f32[256,32]{1,0:T(8,128)}', space=vmem, size = 0x20000, scoped, tag = 'scratch operand']
  %s0 = inlined_call_operand.vmem [shape: s32[2,256,1], index: 0, kind: input, shape index: {}]
  %s1 = inlined_call_operand.vmem [shape: f32[64,32], index: 1, kind: input, shape index: {}]
  %s2 = inlined_call_operand.vmem [shape: f32[3,32,32], index: 2, kind: input, shape index: {}]
  %s3 = inlined_call_operand.vmem [shape: f32[3,32,32], index: 3, kind: input, shape index: {}]
  %s4 = inlined_call_operand.vmem [shape: f32[3,1,32], index: 4, kind: input, shape index: {}]
  %s5 = inlined_call_operand.vmem [shape: f32[3,1,32], index: 5, kind: input, shape index: {}]
  %s6 = inlined_call_operand.vmem [shape: f32[8,8], index: 6, kind: input, shape index: {}]
  %s7 = inlined_call_operand.vmem [shape: f32[8,8], index: 7, kind: input, shape index: {}]
  %s8 = inlined_call_operand.vmem [shape: f32[2,4,1], index: 8, kind: output, shape index: {}]
  %s9 = sld [smem:[#allocation0]]
  $region65: #{quickthoughts_forward_batched.1} parent=0
    _
  %s11 = ssub.s32 1, %s9
  %s12 = scalar_select 0, %s11, %s9
  loop: start=0, step=1, limit=4
  $region2: #{quickthoughts_forward_batched.1} parent=0 // loop_pre_header
    _
  $region3: #{quickthoughts_forward_batched.1} parent=0 // loop_header
    %s14 = sphi 0, %s18
    %p15 = scmp.ge.s32.totalorder %s14, 4
    %s24 = sphi 0, %s26
    %s27 = sphi 0, %s24
    %s28 = sphi 0, %s27
    %s44 = sphi 0, %s28
    %s48 = sphi 0, %s48
    %s50 = sphi 0, %s48
    %s51 = sphi 0, %s50
    %s65 = sphi 0, %s51
    %s69 = sphi 0, %s69
    %s71 = sphi 0, %s69
    %s72 = sphi 0, %s71
    %s86 = sphi 0, %s72
    %s90 = sphi 0, %s90
    %s92 = sphi 0, %s90
    %s93 = sphi 0, %s92
    %s107 = sphi 0, %s93
    %s111 = sphi 0, %s111
    %s113 = sphi 0, %s111
    %s114 = sphi 0, %s113
    %s128 = sphi 0, %s114
    %s132 = sphi 0, %s132
    %s134 = sphi 0, %s132
    %s135 = sphi 0, %s134
    %s149 = sphi 0, %s135
    %s153 = sphi 0, %s153
    %s155 = sphi 0, %s153
    %s156 = sphi 0, %s155
    %s170 = sphi 0, %s156
    %s174 = sphi 0, %s174
    %s176 = sphi 0, %s174
    %s177 = sphi 0, %s176
    %s191 = sphi 0, %s177
    %s197 = sphi 0, %s199
    %s200 = sphi 0, %s197
    %s201 = sphi 0, %s200
    %s217 = sphi 0, %s201
  $region4: #{quickthoughts_forward_batched.1} parent=0 // loop_header_branch
    %17 = sbr.rel (%p15) target = $region8
  $region5: #{quickthoughts_forward_batched.1} parent=0 // loop_body
    %s19 = ssub.s32 %s14, 1
    %s20 = ssub.s32 %s14, 2
    %s21 = sadd.s32 %s14, 1
    %s22 = ssub.s32 %s14, %s21
    %p23 = scmp.eq.s32.totalorder %s22, 0
    %s25 = sadd.s32 %s24, 1
    %s26 = scalar_select %p23, %s24, %s25
    %p29 = pneg %p23
    %p30 = scmp.eq.s32.totalorder %s14, 1
    %p31 = por %p29, %p30
    %p32 = scmp.ne.s32.totalorder %s24, %s27
    %p33 = scmp.eq.s32.totalorder %s14, 0
    %p34 = por %p32, %p33
    %p35 = scmp.ne.s32.totalorder %s24, %s27
    %p36 = scmp.eq.s32.totalorder %s19, 1
    %p37 = por %p35, %p36
    %p38 = scmp.ne.s32.totalorder %s27, %s28
    %p39 = scmp.eq.s32.totalorder %s19, 0
    %p40 = por %p38, %p39
    %p41 = scmp.ne.s32.totalorder %s27, %s28
    %p42 = scmp.eq.s32.totalorder %s20, 1
    %p43 = por %p41, %p42
    %p45 = scmp.ne.s32.totalorder %s28, %s44
    %p46 = scmp.eq.s32.totalorder %s20, 0
    %p47 = por %p45, %p46
    %s49 = sadd.s32 %s48, 1
    %p52 = scmp.eq.s32.totalorder %s14, 1
    %p53 = scmp.ne.s32.totalorder %s48, %s50
    %p54 = scmp.eq.s32.totalorder %s14, 0
    %p55 = por %p53, %p54
    %p56 = scmp.ne.s32.totalorder %s48, %s50
    %p57 = scmp.eq.s32.totalorder %s19, 1
    %p58 = por %p56, %p57
    %p59 = scmp.ne.s32.totalorder %s50, %s51
    %p60 = scmp.eq.s32.totalorder %s19, 0
    %p61 = por %p59, %p60
    %p62 = scmp.ne.s32.totalorder %s50, %s51
    %p63 = scmp.eq.s32.totalorder %s20, 1
    %p64 = por %p62, %p63
    %p66 = scmp.ne.s32.totalorder %s51, %s65
    %p67 = scmp.eq.s32.totalorder %s20, 0
    %p68 = por %p66, %p67
    %s70 = sadd.s32 %s69, 1
    %p73 = scmp.eq.s32.totalorder %s14, 1
    %p74 = scmp.ne.s32.totalorder %s69, %s71
    %p75 = scmp.eq.s32.totalorder %s14, 0
    %p76 = por %p74, %p75
    %p77 = scmp.ne.s32.totalorder %s69, %s71
    %p78 = scmp.eq.s32.totalorder %s19, 1
    %p79 = por %p77, %p78
    %p80 = scmp.ne.s32.totalorder %s71, %s72
    %p81 = scmp.eq.s32.totalorder %s19, 0
    %p82 = por %p80, %p81
    %p83 = scmp.ne.s32.totalorder %s71, %s72
    %p84 = scmp.eq.s32.totalorder %s20, 1
    %p85 = por %p83, %p84
    %p87 = scmp.ne.s32.totalorder %s72, %s86
    %p88 = scmp.eq.s32.totalorder %s20, 0
    %p89 = por %p87, %p88
    %s91 = sadd.s32 %s90, 1
    %p94 = scmp.eq.s32.totalorder %s14, 1
    %p95 = scmp.ne.s32.totalorder %s90, %s92
    %p96 = scmp.eq.s32.totalorder %s14, 0
    %p97 = por %p95, %p96
    %p98 = scmp.ne.s32.totalorder %s90, %s92
    %p99 = scmp.eq.s32.totalorder %s19, 1
    %p100 = por %p98, %p99
    %p101 = scmp.ne.s32.totalorder %s92, %s93
    %p102 = scmp.eq.s32.totalorder %s19, 0
    %p103 = por %p101, %p102
    %p104 = scmp.ne.s32.totalorder %s92, %s93
    %p105 = scmp.eq.s32.totalorder %s20, 1
    %p106 = por %p104, %p105
    %p108 = scmp.ne.s32.totalorder %s93, %s107
    %p109 = scmp.eq.s32.totalorder %s20, 0
    %p110 = por %p108, %p109
    %s112 = sadd.s32 %s111, 1
    %p115 = scmp.eq.s32.totalorder %s14, 1
    %p116 = scmp.ne.s32.totalorder %s111, %s113
    %p117 = scmp.eq.s32.totalorder %s14, 0
    %p118 = por %p116, %p117
    %p119 = scmp.ne.s32.totalorder %s111, %s113
    %p120 = scmp.eq.s32.totalorder %s19, 1
    %p121 = por %p119, %p120
    %p122 = scmp.ne.s32.totalorder %s113, %s114
    %p123 = scmp.eq.s32.totalorder %s19, 0
    %p124 = por %p122, %p123
    %p125 = scmp.ne.s32.totalorder %s113, %s114
    %p126 = scmp.eq.s32.totalorder %s20, 1
    %p127 = por %p125, %p126
    %p129 = scmp.ne.s32.totalorder %s114, %s128
    %p130 = scmp.eq.s32.totalorder %s20, 0
    %p131 = por %p129, %p130
    %s133 = sadd.s32 %s132, 1
    %p136 = scmp.eq.s32.totalorder %s14, 1
    %p137 = scmp.ne.s32.totalorder %s132, %s134
    %p138 = scmp.eq.s32.totalorder %s14, 0
    %p139 = por %p137, %p138
    %p140 = scmp.ne.s32.totalorder %s132, %s134
    %p141 = scmp.eq.s32.totalorder %s19, 1
    %p142 = por %p140, %p141
    %p143 = scmp.ne.s32.totalorder %s134, %s135
    %p144 = scmp.eq.s32.totalorder %s19, 0
    %p145 = por %p143, %p144
    %p146 = scmp.ne.s32.totalorder %s134, %s135
    %p147 = scmp.eq.s32.totalorder %s20, 1
    %p148 = por %p146, %p147
    %p150 = scmp.ne.s32.totalorder %s135, %s149
    %p151 = scmp.eq.s32.totalorder %s20, 0
    %p152 = por %p150, %p151
    %s154 = sadd.s32 %s153, 1
    %p157 = scmp.eq.s32.totalorder %s14, 1
    %p158 = scmp.ne.s32.totalorder %s153, %s155
    %p159 = scmp.eq.s32.totalorder %s14, 0
    %p160 = por %p158, %p159
    %p161 = scmp.ne.s32.totalorder %s153, %s155
    %p162 = scmp.eq.s32.totalorder %s19, 1
    %p163 = por %p161, %p162
    %p164 = scmp.ne.s32.totalorder %s155, %s156
    %p165 = scmp.eq.s32.totalorder %s19, 0
    %p166 = por %p164, %p165
    %p167 = scmp.ne.s32.totalorder %s155, %s156
    %p168 = scmp.eq.s32.totalorder %s20, 1
    %p169 = por %p167, %p168
    %p171 = scmp.ne.s32.totalorder %s156, %s170
    %p172 = scmp.eq.s32.totalorder %s20, 0
    %p173 = por %p171, %p172
    %s175 = sadd.s32 %s174, 1
    %p178 = scmp.eq.s32.totalorder %s14, 1
    %p179 = scmp.ne.s32.totalorder %s174, %s176
    %p180 = scmp.eq.s32.totalorder %s14, 0
    %p181 = por %p179, %p180
    %p182 = scmp.ne.s32.totalorder %s174, %s176
    %p183 = scmp.eq.s32.totalorder %s19, 1
    %p184 = por %p182, %p183
    %p185 = scmp.ne.s32.totalorder %s176, %s177
    %p186 = scmp.eq.s32.totalorder %s19, 0
    %p187 = por %p185, %p186
    %p188 = scmp.ne.s32.totalorder %s176, %s177
    %p189 = scmp.eq.s32.totalorder %s20, 1
    %p190 = por %p188, %p189
    %p192 = scmp.ne.s32.totalorder %s177, %s191
    %p193 = scmp.eq.s32.totalorder %s20, 0
    %p194 = por %p192, %p193
    %s195 = ssub.s32 %s14, %s21
    %p196 = scmp.eq.s32.totalorder %s195, 0
    %s198 = sadd.s32 %s197, 1
    %s199 = scalar_select %p196, %s197, %s198
    %p202 = pneg %p196
    %p203 = scmp.eq.s32.totalorder %s14, 1
    %p204 = por %p202, %p203
    %p205 = scmp.ne.s32.totalorder %s197, %s200
    %p206 = scmp.eq.s32.totalorder %s14, 0
    %p207 = por %p205, %p206
    %p208 = scmp.ne.s32.totalorder %s197, %s200
    %p209 = scmp.eq.s32.totalorder %s19, 1
    %p210 = por %p208, %p209
    %p211 = scmp.ne.s32.totalorder %s200, %s201
    %p212 = scmp.eq.s32.totalorder %s19, 0
    %p213 = por %p211, %p212
    %p214 = scmp.ne.s32.totalorder %s200, %s201
    %p215 = scmp.eq.s32.totalorder %s20, 1
    %p216 = por %p214, %p215
    %p218 = scmp.ne.s32.totalorder %s201, %s217
    %p219 = scmp.eq.s32.totalorder %s20, 0
    %p220 = por %p218, %p219
    %p221 = scmp.le.s32.totalorder 1, %s14
    %p222 = scmp.lt.s32.totalorder %s14, 3
    %p223 = pnand %p221, %p222
    %p224 = pneg %p223
    // Predicated region
    $region9: #{quickthoughts_forward_batched.1} parent=5 // pred_check
      _
    $region10: #{quickthoughts_forward_batched.1} parent=5 // pred_check_branch
      %226 = sbr.rel (%p223) target = $region12
    $region11: #{quickthoughts_forward_batched.1} parent=5 // pred_region
      %s227 = ssub.s32 %s14, 1
      // Predicated region
      $region13: #{quickthoughts_forward_batched.1} parent=11 // pred_check
        %p228 = pneg %p61
      $region14: #{quickthoughts_forward_batched.1} parent=11 // pred_check_branch
        %230 = sbr.rel (%p228) target = $region16
      $region15: #{quickthoughts_forward_batched.1} parent=11 // pred_region
        _
      $region16: #{quickthoughts_forward_batched.1} parent=11 // pred_fallthru
        _
      // Predicated region
      $region17: #{quickthoughts_forward_batched.1} parent=11 // pred_check
        %p231 = pneg %p82
      $region18: #{quickthoughts_forward_batched.1} parent=11 // pred_check_branch
        %233 = sbr.rel (%p231) target = $region20
      $region19: #{quickthoughts_forward_batched.1} parent=11 // pred_region
        _
      $region20: #{quickthoughts_forward_batched.1} parent=11 // pred_fallthru
        _
      // Predicated region
      $region21: #{quickthoughts_forward_batched.1} parent=11 // pred_check
        %p234 = pneg %p103
      $region22: #{quickthoughts_forward_batched.1} parent=11 // pred_check_branch
        %236 = sbr.rel (%p234) target = $region24
      $region23: #{quickthoughts_forward_batched.1} parent=11 // pred_region
        _
      $region24: #{quickthoughts_forward_batched.1} parent=11 // pred_fallthru
        _
      // Predicated region
      $region25: #{quickthoughts_forward_batched.1} parent=11 // pred_check
        %p237 = pneg %p124
      $region26: #{quickthoughts_forward_batched.1} parent=11 // pred_check_branch
        %239 = sbr.rel (%p237) target = $region28
      $region27: #{quickthoughts_forward_batched.1} parent=11 // pred_region
        _
      $region28: #{quickthoughts_forward_batched.1} parent=11 // pred_fallthru
        _
      // Predicated region
      $region29: #{quickthoughts_forward_batched.1} parent=11 // pred_check
        %p240 = pneg %p145
      $region30: #{quickthoughts_forward_batched.1} parent=11 // pred_check_branch
        %242 = sbr.rel (%p240) target = $region32
      $region31: #{quickthoughts_forward_batched.1} parent=11 // pred_region
        _
      $region32: #{quickthoughts_forward_batched.1} parent=11 // pred_fallthru
        _
      // Predicated region
      $region33: #{quickthoughts_forward_batched.1} parent=11 // pred_check
        %p243 = pneg %p166
      $region34: #{quickthoughts_forward_batched.1} parent=11 // pred_check_branch
        %245 = sbr.rel (%p243) target = $region36
      $region35: #{quickthoughts_forward_batched.1} parent=11 // pred_region
        _
      $region36: #{quickthoughts_forward_batched.1} parent=11 // pred_fallthru
        _
      // Predicated region
      $region37: #{quickthoughts_forward_batched.1} parent=11 // pred_check
        %p246 = pneg %p187
      $region38: #{quickthoughts_forward_batched.1} parent=11 // pred_check_branch
        %248 = sbr.rel (%p246) target = $region40
      $region39: #{quickthoughts_forward_batched.1} parent=11 // pred_region
        _
      $region40: #{quickthoughts_forward_batched.1} parent=11 // pred_fallthru
        _
    $region12: #{quickthoughts_forward_batched.1} parent=5 // pred_fallthru
      _
    %p249 = scmp.lt.s32.totalorder %s14, 2
    // Predicated region
    $region41: #{quickthoughts_forward_batched.1} parent=5 // pred_check
      %p250 = pneg %p249
    $region42: #{quickthoughts_forward_batched.1} parent=5 // pred_check_branch
      %252 = sbr.rel (%p250) target = $region44
    $region43: #{quickthoughts_forward_batched.1} parent=5 // pred_region
      // Predicated region
      $region45: #{quickthoughts_forward_batched.1} parent=43 // pred_check
        %p253 = pneg %p34
      $region46: #{quickthoughts_forward_batched.1} parent=43 // pred_check_branch
        %255 = sbr.rel (%p253) target = $region48
      $region47: #{quickthoughts_forward_batched.1} parent=43 // pred_region
        %p256 = scmp.lt.s32.totalorder %s14, 1
        %s257 = scalar_select %p256, %s14, 1
        %s258 = smul.addr %s257, 32
        %s259 = smul.addr %s258, 8
        %s260 = scalar_lea.vmem %s0, %s259
      $region48: #{quickthoughts_forward_batched.1} parent=43 // pred_fallthru
        _
    $region44: #{quickthoughts_forward_batched.1} parent=5 // pred_fallthru
      _
    %p261 = scmp.le.s32.totalorder 1, %s14
    %p262 = scmp.lt.s32.totalorder %s14, 3
    %p263 = pnand %p261, %p262
    %p264 = pneg %p263
    // Predicated region
    $region49: #{quickthoughts_forward_batched.1} parent=5 // pred_check
      _
    $region50: #{quickthoughts_forward_batched.1} parent=5 // pred_check_branch
      %266 = sbr.rel (%p263) target = $region52
    $region51: #{quickthoughts_forward_batched.1} parent=5 // pred_region
      %s267 = ssub.s32 %s14, 1
      %p268 = scmp.lt.s32.totalorder %s19, 1
      %s269 = scalar_select %p268, %s19, 1
      %s270 = smul.addr %s269, 32
      %s271 = smul.addr %s270, 8
      %s272 = scalar_lea.vmem %s0, %s271
      %p273 = pneg %p40
      %p274 = pneg %p37
      %p275 = pneg %p61
      %p276 = pneg %p58
      %p277 = pneg %p82
      %p278 = pneg %p79
      %p279 = pneg %p103
      %p280 = pneg %p100
      %p281 = pneg %p124
      %p282 = pneg %p121
      %p283 = pneg %p145
      %p284 = pneg %p142
      %p285 = pneg %p166
      %p286 = pneg %p163
      %p287 = pneg %p187
      %p288 = pneg %p184
      %p289 = pneg %p213
      %p290 = pneg %p210
      %p291 = scmp.lt.s32.totalorder %s19, 1
      %s292 = scalar_select %p291, %s19, 1
      %s293 = smul.addr %s292, 4
      %s294 = scalar_lea.vmem %s8, %s293
      %p295 = scmp.lt.s32.totalorder %s19, 1
      %s296 = scalar_select %p295, %s19, 1
      %s297 = smul.addr %s296, 32
      %s298 = smul.addr %s297, 8
      %s299 = scalar_lea.vmem %s0, %s298
      %p300 = scmp.lt.s32.totalorder %s19, 1
      %s301 = scalar_select %p300, %s19, 1
      %s302 = smul.addr %s301, 4
      %s303 = scalar_lea.vmem %s8, %s302
      %v304 = vld [vmem:[%s299] sm:$0xff]
      %v305 = vld [vmem:[%s299 + $0x8] sm:$0xff]
      %v306 = vld [vmem:[%s299 + $0x10] sm:$0xff]
      %v307 = vld [vmem:[%s299 + $0x18] sm:$0xff]
      %v308 = vld [vmem:[%s299 + $0x20] sm:$0xff]
      %v309 = vld [vmem:[%s299 + $0x28] sm:$0xff]
      %v310 = vld [vmem:[%s299 + $0x30] sm:$0xff]
      %v311 = vld [vmem:[%s299 + $0x38] sm:$0xff]
      %v312 = vld [vmem:[%s299 + $0x40] sm:$0xff]
      %v313 = vld [vmem:[%s299 + $0x48] sm:$0xff]
      %v314 = vld [vmem:[%s299 + $0x50] sm:$0xff]
      %v315 = vld [vmem:[%s299 + $0x58] sm:$0xff]
      %v316 = vld [vmem:[%s299 + $0x60] sm:$0xff]
      %v317 = vld [vmem:[%s299 + $0x68] sm:$0xff]
      %v318 = vld [vmem:[%s299 + $0x70] sm:$0xff]
      %v319 = vld [vmem:[%s299 + $0x78] sm:$0xff]
      %v320 = vld [vmem:[%s299 + $0x80] sm:$0xff]
      %v321 = vld [vmem:[%s299 + $0x88] sm:$0xff]
      %v322 = vld [vmem:[%s299 + $0x90] sm:$0xff]
      %v323 = vld [vmem:[%s299 + $0x98] sm:$0xff]
      %v324 = vld [vmem:[%s299 + $0xa0] sm:$0xff]
      %v325 = vld [vmem:[%s299 + $0xa8] sm:$0xff]
      %v326 = vld [vmem:[%s299 + $0xb0] sm:$0xff]
      %v327 = vld [vmem:[%s299 + $0xb8] sm:$0xff]
      %v328 = vld [vmem:[%s299 + $0xc0] sm:$0xff]
      %v329 = vld [vmem:[%s299 + $0xc8] sm:$0xff]
      %v330 = vld [vmem:[%s299 + $0xd0] sm:$0xff]
      %v331 = vld [vmem:[%s299 + $0xd8] sm:$0xff]
      %v332 = vld [vmem:[%s299 + $0xe0] sm:$0xff]
      %v333 = vld [vmem:[%s299 + $0xe8] sm:$0xff]
      %v334 = vld [vmem:[%s299 + $0xf0] sm:$0xff]
      %v335 = vld [vmem:[%s299 + $0xf8] sm:$0xff]
      %v336 = vlaneseq
      %v337 = vand.u32 %v336, 127
      %338 = vset.pattern.permute.xlu0 0
      %339 = vperm.xlu0 %338, %v304
      %v340 = vpop.permute.xlu0 %339
      %341 = vset.pattern.permute.xlu0 0
      %342 = vperm.xlu0 %341, %v305
      %v343 = vpop.permute.xlu0 %342
      %344 = vset.pattern.permute.xlu0 0
      %345 = vperm.xlu0 %344, %v306
      %v346 = vpop.permute.xlu0 %345
      %347 = vset.pattern.permute.xlu0 0
      %348 = vperm.xlu0 %347, %v307
      %v349 = vpop.permute.xlu0 %348
      %350 = vset.pattern.permute.xlu0 0
      %351 = vperm.xlu0 %350, %v308
      %v352 = vpop.permute.xlu0 %351
      %353 = vset.pattern.permute.xlu0 0
      %354 = vperm.xlu0 %353, %v309
      %v355 = vpop.permute.xlu0 %354
      %356 = vset.pattern.permute.xlu0 0
      %357 = vperm.xlu0 %356, %v310
      %v358 = vpop.permute.xlu0 %357
      %359 = vset.pattern.permute.xlu0 0
      %360 = vperm.xlu0 %359, %v311
      %v361 = vpop.permute.xlu0 %360
      %362 = vset.pattern.permute.xlu0 0
      %363 = vperm.xlu0 %362, %v312
      %v364 = vpop.permute.xlu0 %363
      %365 = vset.pattern.permute.xlu0 0
      %366 = vperm.xlu0 %365, %v313
      %v367 = vpop.permute.xlu0 %366
      %368 = vset.pattern.permute.xlu0 0
      %369 = vperm.xlu0 %368, %v314
      %v370 = vpop.permute.xlu0 %369
      %371 = vset.pattern.permute.xlu0 0
      %372 = vperm.xlu0 %371, %v315
      %v373 = vpop.permute.xlu0 %372
      %374 = vset.pattern.permute.xlu0 0
      %375 = vperm.xlu0 %374, %v316
      %v376 = vpop.permute.xlu0 %375
      %377 = vset.pattern.permute.xlu0 0
      %378 = vperm.xlu0 %377, %v317
      %v379 = vpop.permute.xlu0 %378
      %380 = vset.pattern.permute.xlu0 0
      %381 = vperm.xlu0 %380, %v318
      %v382 = vpop.permute.xlu0 %381
      %383 = vset.pattern.permute.xlu0 0
      %384 = vperm.xlu0 %383, %v319
      %v385 = vpop.permute.xlu0 %384
      %386 = vset.pattern.permute.xlu0 0
      %387 = vperm.xlu0 %386, %v320
      %v388 = vpop.permute.xlu0 %387
      %389 = vset.pattern.permute.xlu0 0
      %390 = vperm.xlu0 %389, %v321
      %v391 = vpop.permute.xlu0 %390
      %392 = vset.pattern.permute.xlu0 0
      %393 = vperm.xlu0 %392, %v322
      %v394 = vpop.permute.xlu0 %393
      %395 = vset.pattern.permute.xlu0 0
      %396 = vperm.xlu0 %395, %v323
      %v397 = vpop.permute.xlu0 %396
      %398 = vset.pattern.permute.xlu0 0
      %399 = vperm.xlu0 %398, %v324
      %v400 = vpop.permute.xlu0 %399
      %401 = vset.pattern.permute.xlu0 0
      %402 = vperm.xlu0 %401, %v325
      %v403 = vpop.permute.xlu0 %402
      %404 = vset.pattern.permute.xlu0 0
      %405 = vperm.xlu0 %404, %v326
      %v406 = vpop.permute.xlu0 %405
      %407 = vset.pattern.permute.xlu0 0
      %408 = vperm.xlu0 %407, %v327
      %v409 = vpop.permute.xlu0 %408
      %410 = vset.pattern.permute.xlu0 0
      %411 = vperm.xlu0 %410, %v328
      %v412 = vpop.permute.xlu0 %411
      %413 = vset.pattern.permute.xlu0 0
      %414 = vperm.xlu0 %413, %v329
      %v415 = vpop.permute.xlu0 %414
      %416 = vset.pattern.permute.xlu0 0
      %417 = vperm.xlu0 %416, %v330
      %v418 = vpop.permute.xlu0 %417
      %419 = vset.pattern.permute.xlu0 0
      %420 = vperm.xlu0 %419, %v331
      %v421 = vpop.permute.xlu0 %420
      %422 = vset.pattern.permute.xlu0 0
      %423 = vperm.xlu0 %422, %v332
      %v424 = vpop.permute.xlu0 %423
      %425 = vset.pattern.permute.xlu0 0
      %426 = vperm.xlu0 %425, %v333
      %v427 = vpop.permute.xlu0 %426
      %428 = vset.pattern.permute.xlu0 0
      %429 = vperm.xlu0 %428, %v334
      %v430 = vpop.permute.xlu0 %429
      %431 = vset.pattern.permute.xlu0 0
      %432 = vperm.xlu0 %431, %v335
      %v433 = vpop.permute.xlu0 %432
      %vm434 = vcmp.eq.s32.totalorder %v337, %v340
      %vm435 = vcmp.eq.s32.totalorder %v337, %v343
      %vm436 = vcmp.eq.s32.totalorder %v337, %v346
      %vm437 = vcmp.eq.s32.totalorder %v337, %v349
      %vm438 = vcmp.eq.s32.totalorder %v337, %v352
      %vm439 = vcmp.eq.s32.totalorder %v337, %v355
      %vm440 = vcmp.eq.s32.totalorder %v337, %v358
      %vm441 = vcmp.eq.s32.totalorder %v337, %v361
      %vm442 = vcmp.eq.s32.totalorder %v337, %v364
      %vm443 = vcmp.eq.s32.totalorder %v337, %v367
      %vm444 = vcmp.eq.s32.totalorder %v337, %v370
      %vm445 = vcmp.eq.s32.totalorder %v337, %v373
      %vm446 = vcmp.eq.s32.totalorder %v337, %v376
      %vm447 = vcmp.eq.s32.totalorder %v337, %v379
      %vm448 = vcmp.eq.s32.totalorder %v337, %v382
      %vm449 = vcmp.eq.s32.totalorder %v337, %v385
      %vm450 = vcmp.eq.s32.totalorder %v337, %v388
      %vm451 = vcmp.eq.s32.totalorder %v337, %v391
      %vm452 = vcmp.eq.s32.totalorder %v337, %v394
      %vm453 = vcmp.eq.s32.totalorder %v337, %v397
      %vm454 = vcmp.eq.s32.totalorder %v337, %v400
      %vm455 = vcmp.eq.s32.totalorder %v337, %v403
      %vm456 = vcmp.eq.s32.totalorder %v337, %v406
      %vm457 = vcmp.eq.s32.totalorder %v337, %v409
      %vm458 = vcmp.eq.s32.totalorder %v337, %v412
      %vm459 = vcmp.eq.s32.totalorder %v337, %v415
      %vm460 = vcmp.eq.s32.totalorder %v337, %v418
      %vm461 = vcmp.eq.s32.totalorder %v337, %v421
      %vm462 = vcmp.eq.s32.totalorder %v337, %v424
      %vm463 = vcmp.eq.s32.totalorder %v337, %v427
      %vm464 = vcmp.eq.s32.totalorder %v337, %v430
      %vm465 = vcmp.eq.s32.totalorder %v337, %v433
      %v466 = vsel %vm434, 1, 0
      %v467 = vsel %vm435, 1, 0
      %v468 = vsel %vm436, 1, 0
      %v469 = vsel %vm437, 1, 0
      %v470 = vsel %vm438, 1, 0
      %v471 = vsel %vm439, 1, 0
      %v472 = vsel %vm440, 1, 0
      %v473 = vsel %vm441, 1, 0
      %v474 = vsel %vm442, 1, 0
      %v475 = vsel %vm443, 1, 0
      %v476 = vsel %vm444, 1, 0
      %v477 = vsel %vm445, 1, 0
      %v478 = vsel %vm446, 1, 0
      %v479 = vsel %vm447, 1, 0
      %v480 = vsel %vm448, 1, 0
      %v481 = vsel %vm449, 1, 0
      %v482 = vsel %vm450, 1, 0
      %v483 = vsel %vm451, 1, 0
      %v484 = vsel %vm452, 1, 0
      %v485 = vsel %vm453, 1, 0
      %v486 = vsel %vm454, 1, 0
      %v487 = vsel %vm455, 1, 0
      %v488 = vsel %vm456, 1, 0
      %v489 = vsel %vm457, 1, 0
      %v490 = vsel %vm458, 1, 0
      %v491 = vsel %vm459, 1, 0
      %v492 = vsel %vm460, 1, 0
      %v493 = vsel %vm461, 1, 0
      %v494 = vsel %vm462, 1, 0
      %v495 = vsel %vm463, 1, 0
      %v496 = vsel %vm464, 1, 0
      %v497 = vsel %vm465, 1, 0
      %v498 = vcvt.s32.f32 %v466
      %v499 = vcvt.s32.f32 %v467
      %v500 = vcvt.s32.f32 %v468
      %v501 = vcvt.s32.f32 %v469
      %v502 = vcvt.s32.f32 %v470
      %v503 = vcvt.s32.f32 %v471
      %v504 = vcvt.s32.f32 %v472
      %v505 = vcvt.s32.f32 %v473
      %v506 = vcvt.s32.f32 %v474
      %v507 = vcvt.s32.f32 %v475
      %v508 = vcvt.s32.f32 %v476
      %v509 = vcvt.s32.f32 %v477
      %v510 = vcvt.s32.f32 %v478
      %v511 = vcvt.s32.f32 %v479
      %v512 = vcvt.s32.f32 %v480
      %v513 = vcvt.s32.f32 %v481
      %v514 = vcvt.s32.f32 %v482
      %v515 = vcvt.s32.f32 %v483
      %v516 = vcvt.s32.f32 %v484
      %v517 = vcvt.s32.f32 %v485
      %v518 = vcvt.s32.f32 %v486
      %v519 = vcvt.s32.f32 %v487
      %v520 = vcvt.s32.f32 %v488
      %v521 = vcvt.s32.f32 %v489
      %v522 = vcvt.s32.f32 %v490
      %v523 = vcvt.s32.f32 %v491
      %v524 = vcvt.s32.f32 %v492
      %v525 = vcvt.s32.f32 %v493
      %v526 = vcvt.s32.f32 %v494
      %v527 = vcvt.s32.f32 %v495
      %v528 = vcvt.s32.f32 %v496
      %v529 = vcvt.s32.f32 %v497
      %v530 = vld [vmem:[%s1] sm:$0xff]
      %v531 = vld [vmem:[%s1 + $0x8] sm:$0xff]
      %v532 = vld [vmem:[%s1 + $0x10] sm:$0xff]
      %v533 = vld [vmem:[%s1 + $0x18] sm:$0xff]
      %v534 = vld [vmem:[%s1 + $0x20] sm:$0xff]
      %v535 = vld [vmem:[%s1 + $0x28] sm:$0xff]
      %v536 = vld [vmem:[%s1 + $0x30] sm:$0xff]
      %v537 = vld [vmem:[%s1 + $0x38] sm:$0xff]
      %vm538 = vcmask 523264
      %v540 = vsel %vm538, %v498, 0
      %v543 = vsel %vm538, %v499, 0
      %v546 = vsel %vm538, %v500, 0
      %v549 = vsel %vm538, %v501, 0
      %v552 = vsel %vm538, %v502, 0
      %v555 = vsel %vm538, %v503, 0
      %v558 = vsel %vm538, %v504, 0
      %v561 = vsel %vm538, %v505, 0
      %v564 = vsel %vm538, %v506, 0
      %v567 = vsel %vm538, %v507, 0
      %v570 = vsel %vm538, %v508, 0
      %v573 = vsel %vm538, %v509, 0
      %v576 = vsel %vm538, %v510, 0
      %v579 = vsel %vm538, %v511, 0
      %v582 = vsel %vm538, %v512, 0
      %v585 = vsel %vm538, %v513, 0
      %v588 = vsel %vm538, %v514, 0
      %v591 = vsel %vm538, %v515, 0
      %v594 = vsel %vm538, %v516, 0
      %v597 = vsel %vm538, %v517, 0
      %v600 = vsel %vm538, %v518, 0
      %v603 = vsel %vm538, %v519, 0
      %v606 = vsel %vm538, %v520, 0
      %v609 = vsel %vm538, %v521, 0
      %v612 = vsel %vm538, %v522, 0
      %v615 = vsel %vm538, %v523, 0
      %v618 = vsel %vm538, %v524, 0
      %v621 = vsel %vm538, %v525, 0
      %v624 = vsel %vm538, %v526, 0
      %v627 = vsel %vm538, %v527, 0
      %v630 = vsel %vm538, %v528, 0
      %v633 = vsel %vm538, %v529, 0
      %635 = vmatprep.subr.mxu0 0.0
      %636 = vmatpush1.msra.mxu0 0.0
      %637 = vmatprep.subr.mxu0 0.0
      %638 = vmatpush1.msra.mxu0 0.0
      %639 = vmatprep.subr.mxu0 0.0
      %640 = vmatpush1.msra.mxu0 0.0
      %641 = vmatprep.subr.mxu0 0.0
      %642 = vmatpush1.msra.mxu0 0.0
      %643 = vmatprep.subr.mxu0 0.0
      %644 = vmatpush1.msra.mxu0 0.0
      %645 = vmatprep.subr.mxu0 0.0
      %646 = vmatpush1.msra.mxu0 0.0
      %647 = vmatprep.subr.mxu0 0.0
      %648 = vmatpush1.msra.mxu0 0.0
      %649 = vmatprep.subr.mxu0 0.0
      %650 = vmatpush1.msra.mxu0 0.0
      %651 = vmatprep.subr.mxu0 0.0
      %652 = vmatpush1.msra.mxu0 %v537
      %653 = vmatprep.subr.mxu0 0.0
      %654 = vmatpush1.msra.mxu0 %v536
      %655 = vmatprep.subr.mxu0 0.0
      %656 = vmatpush1.msra.mxu0 %v535
      %657 = vmatprep.subr.mxu0 0.0
      %658 = vmatpush1.msra.mxu0 %v534
      %659 = vmatprep.subr.mxu0 0.0
      %660 = vmatpush1.msra.mxu0 %v533
      %661 = vmatprep.subr.mxu0 0.0
      %662 = vmatpush1.msra.mxu0 %v532
      %663 = vmatprep.subr.mxu0 0.0
      %664 = vmatpush1.msra.mxu0 %v531
      %665 = vmatprep.subr.mxu0 0.0
      %666 = vmatpush1.msra.mxu0 %v530
      %667 = vmatprep.subr.mxu0 0.0
      %668 = vmatpush2.msra.mxu0 0.0
      %669 = vmatprep.subr.mxu0 0.0
      %670 = vmatpush2.msra.mxu0 0.0
      %671 = vmatprep.subr.mxu0 0.0
      %672 = vmatpush2.msra.mxu0 0.0
      %673 = vmatprep.subr.mxu0 0.0
      %674 = vmatpush2.msra.mxu0 0.0
      %675 = vmatprep.subr.mxu0 0.0
      %676 = vmatpush2.msra.mxu0 0.0
      %677 = vmatprep.subr.mxu0 0.0
      %678 = vmatpush2.msra.mxu0 0.0
      %679 = vmatprep.subr.mxu0 0.0
      %680 = vmatpush2.msra.mxu0 0.0
      %681 = vmatprep.subr.mxu0 0.0
      %682 = vmatpush2.msra.mxu0 0.0
      %683 = vmatprep.subr.mxu0 0.0
      %684 = vmatpush2.msra.mxu0 0.0
      %685 = vmatprep.subr.mxu0 0.0
      %686 = vmatpush2.msra.mxu0 0.0
      %687 = vmatprep.subr.mxu0 0.0
      %688 = vmatpush2.msra.mxu0 0.0
      %689 = vmatprep.subr.mxu0 0.0
      %690 = vmatpush2.msra.mxu0 0.0
      %691 = vmatprep.subr.mxu0 0.0
      %692 = vmatpush2.msra.mxu0 0.0
      %693 = vmatprep.subr.mxu0 0.0
      %694 = vmatpush2.msra.mxu0 0.0
      %695 = vmatprep.subr.mxu0 0.0
      %696 = vmatpush2.msra.mxu0 0.0
      %697 = vmatprep.subr.mxu0 0.0
      %698 = vmatpush2.msra.mxu0 0.0
      %699 = vmatprep.mubr.f32.mxu0 0.0
      %700 = vmatmul.mubr.f32.gmra.mxu0 %v540
      %v701 = vpop.f32.mrf.mxu0
      %v702 = vadd.f32 0.0, %v701
      %v703 = vpop.f32.mrf.mxu0
      %704 = vmatprep.mubr.f32.mxu0 0.0
      %705 = vmatmul.mubr.f32.gmra.mxu0 %v543
      %v706 = vpop.f32.mrf.mxu0
      %v707 = vadd.f32 0.0, %v706
      %v708 = vpop.f32.mrf.mxu0
      %709 = vmatprep.mubr.f32.mxu0 0.0
      %710 = vmatmul.mubr.f32.gmra.mxu0 %v546
      %v711 = vpop.f32.mrf.mxu0
      %v712 = vadd.f32 0.0, %v711
      %v713 = vpop.f32.mrf.mxu0
      %714 = vmatprep.mubr.f32.mxu0 0.0
      %715 = vmatmul.mubr.f32.gmra.mxu0 %v549
      %v716 = vpop.f32.mrf.mxu0
      %v717 = vadd.f32 0.0, %v716
      %v718 = vpop.f32.mrf.mxu0
      %719 = vmatprep.mubr.f32.mxu0 0.0
      %720 = vmatmul.mubr.f32.gmra.mxu0 %v552
      %v721 = vpop.f32.mrf.mxu0
      %v722 = vadd.f32 0.0, %v721
      %v723 = vpop.f32.mrf.mxu0
      %724 = vmatprep.mubr.f32.mxu0 0.0
      %725 = vmatmul.mubr.f32.gmra.mxu0 %v555
      %v726 = vpop.f32.mrf.mxu0
      %v727 = vadd.f32 0.0, %v726
      %v728 = vpop.f32.mrf.mxu0
      %729 = vmatprep.mubr.f32.mxu0 0.0
      %730 = vmatmul.mubr.f32.gmra.mxu0 %v558
      %v731 = vpop.f32.mrf.mxu0
      %v732 = vadd.f32 0.0, %v731
      %v733 = vpop.f32.mrf.mxu0
      %734 = vmatprep.mubr.f32.mxu0 0.0
      %735 = vmatmul.mubr.f32.gmra.mxu0 %v561
      %v736 = vpop.f32.mrf.mxu0
      %v737 = vadd.f32 0.0, %v736
      %v738 = vpop.f32.mrf.mxu0
      %739 = vmatprep.mubr.f32.mxu0 0.0
      %740 = vmatmul.mubr.f32.gmra.mxu0 %v564
      %v741 = vpop.f32.mrf.mxu0
      %v742 = vadd.f32 0.0, %v741
      %v743 = vpop.f32.mrf.mxu0
      %744 = vmatprep.mubr.f32.mxu0 0.0
      %745 = vmatmul.mubr.f32.gmra.mxu0 %v567
      %v746 = vpop.f32.mrf.mxu0
      %v747 = vadd.f32 0.0, %v746
      %v748 = vpop.f32.mrf.mxu0
      %749 = vmatprep.mubr.f32.mxu0 0.0
      %750 = vmatmul.mubr.f32.gmra.mxu0 %v570
      %v751 = vpop.f32.mrf.mxu0
      %v752 = vadd.f32 0.0, %v751
      %v753 = vpop.f32.mrf.mxu0
      %754 = vmatprep.mubr.f32.mxu0 0.0
      %755 = vmatmul.mubr.f32.gmra.mxu0 %v573
      %v756 = vpop.f32.mrf.mxu0
      %v757 = vadd.f32 0.0, %v756
      %v758 = vpop.f32.mrf.mxu0
      %759 = vmatprep.mubr.f32.mxu0 0.0
      %760 = vmatmul.mubr.f32.gmra.mxu0 %v576
      %v761 = vpop.f32.mrf.mxu0
      %v762 = vadd.f32 0.0, %v761
      %v763 = vpop.f32.mrf.mxu0
      %764 = vmatprep.mubr.f32.mxu0 0.0
      %765 = vmatmul.mubr.f32.gmra.mxu0 %v579
      %v766 = vpop.f32.mrf.mxu0
      %v767 = vadd.f32 0.0, %v766
      %v768 = vpop.f32.mrf.mxu0
      %769 = vmatprep.mubr.f32.mxu0 0.0
      %770 = vmatmul.mubr.f32.gmra.mxu0 %v582
      %v771 = vpop.f32.mrf.mxu0
      %v772 = vadd.f32 0.0, %v771
      %v773 = vpop.f32.mrf.mxu0
      %774 = vmatprep.mubr.f32.mxu0 0.0
      %775 = vmatmul.mubr.f32.gmra.mxu0 %v585
      %v776 = vpop.f32.mrf.mxu0
      %v777 = vadd.f32 0.0, %v776
      %v778 = vpop.f32.mrf.mxu0
      %779 = vmatprep.mubr.f32.mxu0 0.0
      %780 = vmatmul.mubr.f32.gmra.mxu0 %v588
      %v781 = vpop.f32.mrf.mxu0
      %v782 = vadd.f32 0.0, %v781
      %v783 = vpop.f32.mrf.mxu0
      %784 = vmatprep.mubr.f32.mxu0 0.0
      %785 = vmatmul.mubr.f32.gmra.mxu0 %v591
      %v786 = vpop.f32.mrf.mxu0
      %v787 = vadd.f32 0.0, %v786
      %v788 = vpop.f32.mrf.mxu0
      %789 = vmatprep.mubr.f32.mxu0 0.0
      %790 = vmatmul.mubr.f32.gmra.mxu0 %v594
      %v791 = vpop.f32.mrf.mxu0
      %v792 = vadd.f32 0.0, %v791
      %v793 = vpop.f32.mrf.mxu0
      %794 = vmatprep.mubr.f32.mxu0 0.0
      %795 = vmatmul.mubr.f32.gmra.mxu0 %v597
      %v796 = vpop.f32.mrf.mxu0
      %v797 = vadd.f32 0.0, %v796
      %v798 = vpop.f32.mrf.mxu0
      %799 = vmatprep.mubr.f32.mxu0 0.0
      %800 = vmatmul.mubr.f32.gmra.mxu0 %v600
      %v801 = vpop.f32.mrf.mxu0
      %v802 = vadd.f32 0.0, %v801
      %v803 = vpop.f32.mrf.mxu0
      %804 = vmatprep.mubr.f32.mxu0 0.0
      %805 = vmatmul.mubr.f32.gmra.mxu0 %v603
      %v806 = vpop.f32.mrf.mxu0
      %v807 = vadd.f32 0.0, %v806
      %v808 = vpop.f32.mrf.mxu0
      %809 = vmatprep.mubr.f32.mxu0 0.0
      %810 = vmatmul.mubr.f32.gmra.mxu0 %v606
      %v811 = vpop.f32.mrf.mxu0
      %v812 = vadd.f32 0.0, %v811
      %v813 = vpop.f32.mrf.mxu0
      %814 = vmatprep.mubr.f32.mxu0 0.0
      %815 = vmatmul.mubr.f32.gmra.mxu0 %v609
      %v816 = vpop.f32.mrf.mxu0
      %v817 = vadd.f32 0.0, %v816
      %v818 = vpop.f32.mrf.mxu0
      %819 = vmatprep.mubr.f32.mxu0 0.0
      %820 = vmatmul.mubr.f32.gmra.mxu0 %v612
      %v821 = vpop.f32.mrf.mxu0
      %v822 = vadd.f32 0.0, %v821
      %v823 = vpop.f32.mrf.mxu0
      %824 = vmatprep.mubr.f32.mxu0 0.0
      %825 = vmatmul.mubr.f32.gmra.mxu0 %v615
      %v826 = vpop.f32.mrf.mxu0
      %v827 = vadd.f32 0.0, %v826
      %v828 = vpop.f32.mrf.mxu0
      %829 = vmatprep.mubr.f32.mxu0 0.0
      %830 = vmatmul.mubr.f32.gmra.mxu0 %v618
      %v831 = vpop.f32.mrf.mxu0
      %v832 = vadd.f32 0.0, %v831
      %v833 = vpop.f32.mrf.mxu0
      %834 = vmatprep.mubr.f32.mxu0 0.0
      %835 = vmatmul.mubr.f32.gmra.mxu0 %v621
      %v836 = vpop.f32.mrf.mxu0
      %v837 = vadd.f32 0.0, %v836
      %v838 = vpop.f32.mrf.mxu0
      %839 = vmatprep.mubr.f32.mxu0 0.0
      %840 = vmatmul.mubr.f32.gmra.mxu0 %v624
      %v841 = vpop.f32.mrf.mxu0
      %v842 = vadd.f32 0.0, %v841
      %v843 = vpop.f32.mrf.mxu0
      %844 = vmatprep.mubr.f32.mxu0 0.0
      %845 = vmatmul.mubr.f32.gmra.mxu0 %v627
      %v846 = vpop.f32.mrf.mxu0
      %v847 = vadd.f32 0.0, %v846
      %v848 = vpop.f32.mrf.mxu0
      %849 = vmatprep.mubr.f32.mxu0 0.0
      %850 = vmatmul.mubr.f32.gmra.mxu0 %v630
      %v851 = vpop.f32.mrf.mxu0
      %v852 = vadd.f32 0.0, %v851
      %v853 = vpop.f32.mrf.mxu0
      %854 = vmatprep.mubr.f32.mxu0 0.0
      %855 = vmatmul.mubr.f32.gmra.mxu0 %v633
      %v856 = vpop.f32.mrf.mxu0
      %v857 = vadd.f32 0.0, %v856
      %v858 = vpop.f32.mrf.mxu0
      %859 = vdwg.mxu0
      %v860 = vld [vmem:[%s2] sm:$0xff]
      %v861 = vld [vmem:[%s2 + $0x8] sm:$0xff]
      %v862 = vld [vmem:[%s2 + $0x10] sm:$0xff]
      %v863 = vld [vmem:[%s2 + $0x18] sm:$0xff]
      %v864 = vld [vmem:[%s4] sm:$0x1]
      %v865 = vld [vmem:[%s5] sm:$0x1]
      %v866 = vadd.f32 %v864, %v865
      %v868 = vlaneseq
      %v869 = vshrl.u32 %v868, 7
      %v870 = vsub.s32 0, %v869
      %v871 = vrot.slane %v866, %v870
      %vm873 = vcmask 261120
      %v875 = vsel %vm873, %v702, 0
      %v878 = vsel %vm873, %v707, 0
      %v881 = vsel %vm873, %v712, 0
      %v884 = vsel %vm873, %v717, 0
      %v887 = vsel %vm873, %v722, 0
      %v890 = vsel %vm873, %v727, 0
      %v893 = vsel %vm873, %v732, 0
      %v896 = vsel %vm873, %v737, 0
      %v899 = vsel %vm873, %v742, 0
      %v902 = vsel %vm873, %v747, 0
      %v905 = vsel %vm873, %v752, 0
      %v908 = vsel %vm873, %v757, 0
      %v911 = vsel %vm873, %v762, 0
      %v914 = vsel %vm873, %v767, 0
      %v917 = vsel %vm873, %v772, 0
      %v920 = vsel %vm873, %v777, 0
      %v923 = vsel %vm873, %v782, 0
      %v926 = vsel %vm873, %v787, 0
      %v929 = vsel %vm873, %v792, 0
      %v932 = vsel %vm873, %v797, 0
      %v935 = vsel %vm873, %v802, 0
      %v938 = vsel %vm873, %v807, 0
      %v941 = vsel %vm873, %v812, 0
      %v944 = vsel %vm873, %v817, 0
      %v947 = vsel %vm873, %v822, 0
      %v950 = vsel %vm873, %v827, 0
      %v953 = vsel %vm873, %v832, 0
      %v956 = vsel %vm873, %v837, 0
      %v959 = vsel %vm873, %v842, 0
      %v962 = vsel %vm873, %v847, 0
      %v965 = vsel %vm873, %v852, 0
      %v968 = vsel %vm873, %v857, 0
      %970 = vmatprep.subr.mxu0 0.0
      %971 = vmatpush1.msra.mxu0 0.0
      %972 = vmatprep.subr.mxu0 0.0
      %973 = vmatpush1.msra.mxu0 0.0
      %974 = vmatprep.subr.mxu0 0.0
      %975 = vmatpush1.msra.mxu0 0.0
      %976 = vmatprep.subr.mxu0 0.0
      %977 = vmatpush1.msra.mxu0 0.0
      %978 = vmatprep.subr.mxu0 0.0
      %979 = vmatpush1.msra.mxu0 0.0
      %980 = vmatprep.subr.mxu0 0.0
      %981 = vmatpush1.msra.mxu0 0.0
      %982 = vmatprep.subr.mxu0 0.0
      %983 = vmatpush1.msra.mxu0 0.0
      %984 = vmatprep.subr.mxu0 0.0
      %985 = vmatpush1.msra.mxu0 0.0
      %986 = vmatprep.subr.mxu0 0.0
      %987 = vmatpush1.msra.mxu0 0.0
      %988 = vmatprep.subr.mxu0 0.0
      %989 = vmatpush1.msra.mxu0 0.0
      %990 = vmatprep.subr.mxu0 0.0
      %991 = vmatpush1.msra.mxu0 0.0
      %992 = vmatprep.subr.mxu0 0.0
      %993 = vmatpush1.msra.mxu0 0.0
      %994 = vmatprep.subr.mxu0 0.0
      %995 = vmatpush1.msra.mxu0 %v863
      %996 = vmatprep.subr.mxu0 0.0
      %997 = vmatpush1.msra.mxu0 %v862
      %998 = vmatprep.subr.mxu0 0.0
      %999 = vmatpush1.msra.mxu0 %v861
      %1000 = vmatprep.subr.mxu0 0.0
      %1001 = vmatpush1.msra.mxu0 %v860
      %1002 = vmatprep.subr.mxu0 0.0
      %1003 = vmatpush2.msra.mxu0 0.0
      %1004 = vmatprep.subr.mxu0 0.0
      %1005 = vmatpush2.msra.mxu0 0.0
      %1006 = vmatprep.subr.mxu0 0.0
      %1007 = vmatpush2.msra.mxu0 0.0
      %1008 = vmatprep.subr.mxu0 0.0
      %1009 = vmatpush2.msra.mxu0 0.0
      %1010 = vmatprep.subr.mxu0 0.0
      %1011 = vmatpush2.msra.mxu0 0.0
      %1012 = vmatprep.subr.mxu0 0.0
      %1013 = vmatpush2.msra.mxu0 0.0
      %1014 = vmatprep.subr.mxu0 0.0
      %1015 = vmatpush2.msra.mxu0 0.0
      %1016 = vmatprep.subr.mxu0 0.0
      %1017 = vmatpush2.msra.mxu0 0.0
      %1018 = vmatprep.subr.mxu0 0.0
      %1019 = vmatpush2.msra.mxu0 0.0
      %1020 = vmatprep.subr.mxu0 0.0
      %1021 = vmatpush2.msra.mxu0 0.0
      %1022 = vmatprep.subr.mxu0 0.0
      %1023 = vmatpush2.msra.mxu0 0.0
      %1024 = vmatprep.subr.mxu0 0.0
      %1025 = vmatpush2.msra.mxu0 0.0
      %1026 = vmatprep.subr.mxu0 0.0
      %1027 = vmatpush2.msra.mxu0 0.0
      %1028 = vmatprep.subr.mxu0 0.0
      %1029 = vmatpush2.msra.mxu0 0.0
      %1030 = vmatprep.subr.mxu0 0.0
      %1031 = vmatpush2.msra.mxu0 0.0
      %1032 = vmatprep.subr.mxu0 0.0
      %1033 = vmatpush2.msra.mxu0 0.0
      %1034 = vmatprep.mubr.f32.mxu0 0.0
      %1035 = vmatmul.mubr.f32.gmra.mxu0 %v875
      %v1036 = vpop.f32.mrf.mxu0
      %v1037 = vadd.f32 %v871, %v1036
      %v1038 = vpop.f32.mrf.mxu0
      %1039 = vmatprep.mubr.f32.mxu0 0.0
      %1040 = vmatmul.mubr.f32.gmra.mxu0 %v878
      %v1041 = vpop.f32.mrf.mxu0
      %v1042 = vadd.f32 %v871, %v1041
      %v1043 = vpop.f32.mrf.mxu0
      %1044 = vmatprep.mubr.f32.mxu0 0.0
      %1045 = vmatmul.mubr.f32.gmra.mxu0 %v881
      %v1046 = vpop.f32.mrf.mxu0
      %v1047 = vadd.f32 %v871, %v1046
      %v1048 = vpop.f32.mrf.mxu0
      %1049 = vmatprep.mubr.f32.mxu0 0.0
      %1050 = vmatmul.mubr.f32.gmra.mxu0 %v884
      %v1051 = vpop.f32.mrf.mxu0
      %v1052 = vadd.f32 %v871, %v1051
      %v1053 = vpop.f32.mrf.mxu0
      %1054 = vmatprep.mubr.f32.mxu0 0.0
      %1055 = vmatmul.mubr.f32.gmra.mxu0 %v887
      %v1056 = vpop.f32.mrf.mxu0
      %v1057 = vadd.f32 %v871, %v1056
      %v1058 = vpop.f32.mrf.mxu0
      %1059 = vmatprep.mubr.f32.mxu0 0.0
      %1060 = vmatmul.mubr.f32.gmra.mxu0 %v890
      %v1061 = vpop.f32.mrf.mxu0
      %v1062 = vadd.f32 %v871, %v1061
      %v1063 = vpop.f32.mrf.mxu0
      %1064 = vmatprep.mubr.f32.mxu0 0.0
      %1065 = vmatmul.mubr.f32.gmra.mxu0 %v893
      %v1066 = vpop.f32.mrf.mxu0
      %v1067 = vadd.f32 %v871, %v1066
      %v1068 = vpop.f32.mrf.mxu0
      %1069 = vmatprep.mubr.f32.mxu0 0.0
      %1070 = vmatmul.mubr.f32.gmra.mxu0 %v896
      %v1071 = vpop.f32.mrf.mxu0
      %v1072 = vadd.f32 %v871, %v1071
      %v1073 = vpop.f32.mrf.mxu0
      %1074 = vmatprep.mubr.f32.mxu0 0.0
      %1075 = vmatmul.mubr.f32.gmra.mxu0 %v899
      %v1076 = vpop.f32.mrf.mxu0
      %v1077 = vadd.f32 %v871, %v1076
      %v1078 = vpop.f32.mrf.mxu0
      %1079 = vmatprep.mubr.f32.mxu0 0.0
      %1080 = vmatmul.mubr.f32.gmra.mxu0 %v902
      %v1081 = vpop.f32.mrf.mxu0
      %v1082 = vadd.f32 %v871, %v1081
      %v1083 = vpop.f32.mrf.mxu0
      %1084 = vmatprep.mubr.f32.mxu0 0.0
      %1085 = vmatmul.mubr.f32.gmra.mxu0 %v905
      %v1086 = vpop.f32.mrf.mxu0
      %v1087 = vadd.f32 %v871, %v1086
      %v1088 = vpop.f32.mrf.mxu0
      %1089 = vmatprep.mubr.f32.mxu0 0.0
      %1090 = vmatmul.mubr.f32.gmra.mxu0 %v908
      %v1091 = vpop.f32.mrf.mxu0
      %v1092 = vadd.f32 %v871, %v1091
      %v1093 = vpop.f32.mrf.mxu0
      %1094 = vmatprep.mubr.f32.mxu0 0.0
      %1095 = vmatmul.mubr.f32.gmra.mxu0 %v911
      %v1096 = vpop.f32.mrf.mxu0
      %v1097 = vadd.f32 %v871, %v1096
      %v1098 = vpop.f32.mrf.mxu0
      %1099 = vmatprep.mubr.f32.mxu0 0.0
      %1100 = vmatmul.mubr.f32.gmra.mxu0 %v914
      %v1101 = vpop.f32.mrf.mxu0
      %v1102 = vadd.f32 %v871, %v1101
      %v1103 = vpop.f32.mrf.mxu0
      %1104 = vmatprep.mubr.f32.mxu0 0.0
      %1105 = vmatmul.mubr.f32.gmra.mxu0 %v917
      %v1106 = vpop.f32.mrf.mxu0
      %v1107 = vadd.f32 %v871, %v1106
      %v1108 = vpop.f32.mrf.mxu0
      %1109 = vmatprep.mubr.f32.mxu0 0.0
      %1110 = vmatmul.mubr.f32.gmra.mxu0 %v920
      %v1111 = vpop.f32.mrf.mxu0
      %v1112 = vadd.f32 %v871, %v1111
      %v1113 = vpop.f32.mrf.mxu0
      %1114 = vmatprep.mubr.f32.mxu0 0.0
      %1115 = vmatmul.mubr.f32.gmra.mxu0 %v923
      %v1116 = vpop.f32.mrf.mxu0
      %v1117 = vadd.f32 %v871, %v1116
      %v1118 = vpop.f32.mrf.mxu0
      %1119 = vmatprep.mubr.f32.mxu0 0.0
      %1120 = vmatmul.mubr.f32.gmra.mxu0 %v926
      %v1121 = vpop.f32.mrf.mxu0
      %v1122 = vadd.f32 %v871, %v1121
      %v1123 = vpop.f32.mrf.mxu0
      %1124 = vmatprep.mubr.f32.mxu0 0.0
      %1125 = vmatmul.mubr.f32.gmra.mxu0 %v929
      %v1126 = vpop.f32.mrf.mxu0
      %v1127 = vadd.f32 %v871, %v1126
      %v1128 = vpop.f32.mrf.mxu0
      %1129 = vmatprep.mubr.f32.mxu0 0.0
      %1130 = vmatmul.mubr.f32.gmra.mxu0 %v932
      %v1131 = vpop.f32.mrf.mxu0
      %v1132 = vadd.f32 %v871, %v1131
      %v1133 = vpop.f32.mrf.mxu0
      %1134 = vmatprep.mubr.f32.mxu0 0.0
      %1135 = vmatmul.mubr.f32.gmra.mxu0 %v935
      %v1136 = vpop.f32.mrf.mxu0
      %v1137 = vadd.f32 %v871, %v1136
      %v1138 = vpop.f32.mrf.mxu0
      %1139 = vmatprep.mubr.f32.mxu0 0.0
      %1140 = vmatmul.mubr.f32.gmra.mxu0 %v938
      %v1141 = vpop.f32.mrf.mxu0
      %v1142 = vadd.f32 %v871, %v1141
      %v1143 = vpop.f32.mrf.mxu0
      %1144 = vmatprep.mubr.f32.mxu0 0.0
      %1145 = vmatmul.mubr.f32.gmra.mxu0 %v941
      %v1146 = vpop.f32.mrf.mxu0
      %v1147 = vadd.f32 %v871, %v1146
      %v1148 = vpop.f32.mrf.mxu0
      %1149 = vmatprep.mubr.f32.mxu0 0.0
      %1150 = vmatmul.mubr.f32.gmra.mxu0 %v944
      %v1151 = vpop.f32.mrf.mxu0
      %v1152 = vadd.f32 %v871, %v1151
      %v1153 = vpop.f32.mrf.mxu0
      %1154 = vmatprep.mubr.f32.mxu0 0.0
      %1155 = vmatmul.mubr.f32.gmra.mxu0 %v947
      %v1156 = vpop.f32.mrf.mxu0
      %v1157 = vadd.f32 %v871, %v1156
      %v1158 = vpop.f32.mrf.mxu0
      %1159 = vmatprep.mubr.f32.mxu0 0.0
      %1160 = vmatmul.mubr.f32.gmra.mxu0 %v950
      %v1161 = vpop.f32.mrf.mxu0
      %v1162 = vadd.f32 %v871, %v1161
      %v1163 = vpop.f32.mrf.mxu0
      %1164 = vmatprep.mubr.f32.mxu0 0.0
      %1165 = vmatmul.mubr.f32.gmra.mxu0 %v953
      %v1166 = vpop.f32.mrf.mxu0
      %v1167 = vadd.f32 %v871, %v1166
      %v1168 = vpop.f32.mrf.mxu0
      %1169 = vmatprep.mubr.f32.mxu0 0.0
      %1170 = vmatmul.mubr.f32.gmra.mxu0 %v956
      %v1171 = vpop.f32.mrf.mxu0
      %v1172 = vadd.f32 %v871, %v1171
      %v1173 = vpop.f32.mrf.mxu0
      %1174 = vmatprep.mubr.f32.mxu0 0.0
      %1175 = vmatmul.mubr.f32.gmra.mxu0 %v959
      %v1176 = vpop.f32.mrf.mxu0
      %v1177 = vadd.f32 %v871, %v1176
      %v1178 = vpop.f32.mrf.mxu0
      %1179 = vmatprep.mubr.f32.mxu0 0.0
      %1180 = vmatmul.mubr.f32.gmra.mxu0 %v962
      %v1181 = vpop.f32.mrf.mxu0
      %v1182 = vadd.f32 %v871, %v1181
      %v1183 = vpop.f32.mrf.mxu0
      %1184 = vmatprep.mubr.f32.mxu0 0.0
      %1185 = vmatmul.mubr.f32.gmra.mxu0 %v965
      %v1186 = vpop.f32.mrf.mxu0
      %v1187 = vadd.f32 %v871, %v1186
      %v1188 = vpop.f32.mrf.mxu0
      %1189 = vmatprep.mubr.f32.mxu0 0.0
      %1190 = vmatmul.mubr.f32.gmra.mxu0 %v968
      %v1191 = vpop.f32.mrf.mxu0
      %v1192 = vadd.f32 %v871, %v1191
      %v1193 = vpop.f32.mrf.mxu0
      %1194 = vdwg.mxu0
      %1195 = vst.msk [vmem:[#allocation2] sm:$0xff] %vm873, %v1037
      %1196 = vst.msk [vmem:[#allocation2 + $0x8] sm:$0xff] %vm873, %v1042
      %1197 = vst.msk [vmem:[#allocation2 + $0x10] sm:$0xff] %vm873, %v1047
      %1198 = vst.msk [vmem:[#allocation2 + $0x18] sm:$0xff] %vm873, %v1052
      %1199 = vst.msk [vmem:[#allocation2 + $0x20] sm:$0xff] %vm873, %v1057
      %1200 = vst.msk [vmem:[#allocation2 + $0x28] sm:$0xff] %vm873, %v1062
      %1201 = vst.msk [vmem:[#allocation2 + $0x30] sm:$0xff] %vm873, %v1067
      %1202 = vst.msk [vmem:[#allocation2 + $0x38] sm:$0xff] %vm873, %v1072
      %1203 = vst.msk [vmem:[#allocation2 + $0x40] sm:$0xff] %vm873, %v1077
      %1204 = vst.msk [vmem:[#allocation2 + $0x48] sm:$0xff] %vm873, %v1082
      %1205 = vst.msk [vmem:[#allocation2 + $0x50] sm:$0xff] %vm873, %v1087
      %1206 = vst.msk [vmem:[#allocation2 + $0x58] sm:$0xff] %vm873, %v1092
      %1207 = vst.msk [vmem:[#allocation2 + $0x60] sm:$0xff] %vm873, %v1097
      %1208 = vst.msk [vmem:[#allocation2 + $0x68] sm:$0xff] %vm873, %v1102
      %1209 = vst.msk [vmem:[#allocation2 + $0x70] sm:$0xff] %vm873, %v1107
      %1210 = vst.msk [vmem:[#allocation2 + $0x78] sm:$0xff] %vm873, %v1112
      %1211 = vst.msk [vmem:[#allocation2 + $0x80] sm:$0xff] %vm873, %v1117
      %1212 = vst.msk [vmem:[#allocation2 + $0x88] sm:$0xff] %vm873, %v1122
      %1213 = vst.msk [vmem:[#allocation2 + $0x90] sm:$0xff] %vm873, %v1127
      %1214 = vst.msk [vmem:[#allocation2 + $0x98] sm:$0xff] %vm873, %v1132
      %1215 = vst.msk [vmem:[#allocation2 + $0xa0] sm:$0xff] %vm873, %v1137
      %1216 = vst.msk [vmem:[#allocation2 + $0xa8] sm:$0xff] %vm873, %v1142
      %1217 = vst.msk [vmem:[#allocation2 + $0xb0] sm:$0xff] %vm873, %v1147
      %1218 = vst.msk [vmem:[#allocation2 + $0xb8] sm:$0xff] %vm873, %v1152
      %1219 = vst.msk [vmem:[#allocation2 + $0xc0] sm:$0xff] %vm873, %v1157
      %1220 = vst.msk [vmem:[#allocation2 + $0xc8] sm:$0xff] %vm873, %v1162
      %1221 = vst.msk [vmem:[#allocation2 + $0xd0] sm:$0xff] %vm873, %v1167
      %1222 = vst.msk [vmem:[#allocation2 + $0xd8] sm:$0xff] %vm873, %v1172
      %1223 = vst.msk [vmem:[#allocation2 + $0xe0] sm:$0xff] %vm873, %v1177
      %1224 = vst.msk [vmem:[#allocation2 + $0xe8] sm:$0xff] %vm873, %v1182
      %1225 = vst.msk [vmem:[#allocation2 + $0xf0] sm:$0xff] %vm873, %v1187
      %1226 = vst.msk [vmem:[#allocation2 + $0xf8] sm:$0xff] %vm873, %v1192
      %s1227 = scalar_lea.vmem %s2, 32
      %v1228 = vld [vmem:[%s1227] sm:$0xff]
      %v1229 = vld [vmem:[%s1227 + $0x8] sm:$0xff]
      %v1230 = vld [vmem:[%s1227 + $0x10] sm:$0xff]
      %v1231 = vld [vmem:[%s1227 + $0x18] sm:$0xff]
      %s1232 = scalar_lea.vmem %s4, 1
      %v1233 = vld [vmem:[%s1232] sm:$0x1]
      %s1234 = scalar_lea.vmem %s5, 1
      %v1235 = vld [vmem:[%s1234] sm:$0x1]
      %v1236 = vadd.f32 %v1233, %v1235
      %v1238 = vlaneseq
      %v1239 = vshrl.u32 %v1238, 7
      %v1240 = vsub.s32 0, %v1239
      %v1241 = vrot.slane %v1236, %v1240
      %1243 = vmatprep.subr.mxu0 0.0
      %1244 = vmatpush1.msra.mxu0 0.0
      %1245 = vmatprep.subr.mxu0 0.0
      %1246 = vmatpush1.msra.mxu0 0.0
      %1247 = vmatprep.subr.mxu0 0.0
      %1248 = vmatpush1.msra.mxu0 0.0
      %1249 = vmatprep.subr.mxu0 0.0
      %1250 = vmatpush1.msra.mxu0 0.0
      %1251 = vmatprep.subr.mxu0 0.0
      %1252 = vmatpush1.msra.mxu0 0.0
      %1253 = vmatprep.subr.mxu0 0.0
      %1254 = vmatpush1.msra.mxu0 0.0
      %1255 = vmatprep.subr.mxu0 0.0
      %1256 = vmatpush1.msra.mxu0 0.0
      %1257 = vmatprep.subr.mxu0 0.0
      %1258 = vmatpush1.msra.mxu0 0.0
      %1259 = vmatprep.subr.mxu0 0.0
      %1260 = vmatpush1.msra.mxu0 0.0
      %1261 = vmatprep.subr.mxu0 0.0
      %1262 = vmatpush1.msra.mxu0 0.0
      %1263 = vmatprep.subr.mxu0 0.0
      %1264 = vmatpush1.msra.mxu0 0.0
      %1265 = vmatprep.subr.mxu0 0.0
      %1266 = vmatpush1.msra.mxu0 0.0
      %1267 = vmatprep.subr.mxu0 0.0
      %1268 = vmatpush1.msra.mxu0 %v1231
      %1269 = vmatprep.subr.mxu0 0.0
      %1270 = vmatpush1.msra.mxu0 %v1230
      %1271 = vmatprep.subr.mxu0 0.0
      %1272 = vmatpush1.msra.mxu0 %v1229
      %1273 = vmatprep.subr.mxu0 0.0
      %1274 = vmatpush1.msra.mxu0 %v1228
      %1275 = vmatprep.subr.mxu0 0.0
      %1276 = vmatpush2.msra.mxu0 0.0
      %1277 = vmatprep.subr.mxu0 0.0
      %1278 = vmatpush2.msra.mxu0 0.0
      %1279 = vmatprep.subr.mxu0 0.0
      %1280 = vmatpush2.msra.mxu0 0.0
      %1281 = vmatprep.subr.mxu0 0.0
      %1282 = vmatpush2.msra.mxu0 0.0
      %1283 = vmatprep.subr.mxu0 0.0
      %1284 = vmatpush2.msra.mxu0 0.0
      %1285 = vmatprep.subr.mxu0 0.0
      %1286 = vmatpush2.msra.mxu0 0.0
      %1287 = vmatprep.subr.mxu0 0.0
      %1288 = vmatpush2.msra.mxu0 0.0
      %1289 = vmatprep.subr.mxu0 0.0
      %1290 = vmatpush2.msra.mxu0 0.0
      %1291 = vmatprep.subr.mxu0 0.0
      %1292 = vmatpush2.msra.mxu0 0.0
      %1293 = vmatprep.subr.mxu0 0.0
      %1294 = vmatpush2.msra.mxu0 0.0
      %1295 = vmatprep.subr.mxu0 0.0
      %1296 = vmatpush2.msra.mxu0 0.0
      %1297 = vmatprep.subr.mxu0 0.0
      %1298 = vmatpush2.msra.mxu0 0.0
      %1299 = vmatprep.subr.mxu0 0.0
      %1300 = vmatpush2.msra.mxu0 0.0
      %1301 = vmatprep.subr.mxu0 0.0
      %1302 = vmatpush2.msra.mxu0 0.0
      %1303 = vmatprep.subr.mxu0 0.0
      %1304 = vmatpush2.msra.mxu0 0.0
      %1305 = vmatprep.subr.mxu0 0.0
      %1306 = vmatpush2.msra.mxu0 0.0
      %1307 = vmatprep.mubr.f32.mxu0 0.0
      %1308 = vmatmul.mubr.f32.gmra.mxu0 %v875
      %v1309 = vpop.f32.mrf.mxu0
      %v1310 = vadd.f32 %v1241, %v1309
      %v1311 = vpop.f32.mrf.mxu0
      %1312 = vmatprep.mubr.f32.mxu0 0.0
      %1313 = vmatmul.mubr.f32.gmra.mxu0 %v878
      %v1314 = vpop.f32.mrf.mxu0
      %v1315 = vadd.f32 %v1241, %v1314
      %v1316 = vpop.f32.mrf.mxu0
      %1317 = vmatprep.mubr.f32.mxu0 0.0
      %1318 = vmatmul.mubr.f32.gmra.mxu0 %v881
      %v1319 = vpop.f32.mrf.mxu0
      %v1320 = vadd.f32 %v1241, %v1319
      %v1321 = vpop.f32.mrf.mxu0
      %1322 = vmatprep.mubr.f32.mxu0 0.0
      %1323 = vmatmul.mubr.f32.gmra.mxu0 %v884
      %v1324 = vpop.f32.mrf.mxu0
      %v1325 = vadd.f32 %v1241, %v1324
      %v1326 = vpop.f32.mrf.mxu0
      %1327 = vmatprep.mubr.f32.mxu0 0.0
      %1328 = vmatmul.mubr.f32.gmra.mxu0 %v887
      %v1329 = vpop.f32.mrf.mxu0
      %v1330 = vadd.f32 %v1241, %v1329
      %v1331 = vpop.f32.mrf.mxu0
      %1332 = vmatprep.mubr.f32.mxu0 0.0
      %1333 = vmatmul.mubr.f32.gmra.mxu0 %v890
      %v1334 = vpop.f32.mrf.mxu0
      %v1335 = vadd.f32 %v1241, %v1334
      %v1336 = vpop.f32.mrf.mxu0
      %1337 = vmatprep.mubr.f32.mxu0 0.0
      %1338 = vmatmul.mubr.f32.gmra.mxu0 %v893
      %v1339 = vpop.f32.mrf.mxu0
      %v1340 = vadd.f32 %v1241, %v1339
      %v1341 = vpop.f32.mrf.mxu0
      %1342 = vmatprep.mubr.f32.mxu0 0.0
      %1343 = vmatmul.mubr.f32.gmra.mxu0 %v896
      %v1344 = vpop.f32.mrf.mxu0
      %v1345 = vadd.f32 %v1241, %v1344
      %v1346 = vpop.f32.mrf.mxu0
      %1347 = vmatprep.mubr.f32.mxu0 0.0
      %1348 = vmatmul.mubr.f32.gmra.mxu0 %v899
      %v1349 = vpop.f32.mrf.mxu0
      %v1350 = vadd.f32 %v1241, %v1349
      %v1351 = vpop.f32.mrf.mxu0
      %1352 = vmatprep.mubr.f32.mxu0 0.0
      %1353 = vmatmul.mubr.f32.gmra.mxu0 %v902
      %v1354 = vpop.f32.mrf.mxu0
      %v1355 = vadd.f32 %v1241, %v1354
      %v1356 = vpop.f32.mrf.mxu0
      %1357 = vmatprep.mubr.f32.mxu0 0.0
      %1358 = vmatmul.mubr.f32.gmra.mxu0 %v905
      %v1359 = vpop.f32.mrf.mxu0
      %v1360 = vadd.f32 %v1241, %v1359
      %v1361 = vpop.f32.mrf.mxu0
      %1362 = vmatprep.mubr.f32.mxu0 0.0
      %1363 = vmatmul.mubr.f32.gmra.mxu0 %v908
      %v1364 = vpop.f32.mrf.mxu0
      %v1365 = vadd.f32 %v1241, %v1364
      %v1366 = vpop.f32.mrf.mxu0
      %1367 = vmatprep.mubr.f32.mxu0 0.0
      %1368 = vmatmul.mubr.f32.gmra.mxu0 %v911
      %v1369 = vpop.f32.mrf.mxu0
      %v1370 = vadd.f32 %v1241, %v1369
      %v1371 = vpop.f32.mrf.mxu0
      %1372 = vmatprep.mubr.f32.mxu0 0.0
      %1373 = vmatmul.mubr.f32.gmra.mxu0 %v914
      %v1374 = vpop.f32.mrf.mxu0
      %v1375 = vadd.f32 %v1241, %v1374
      %v1376 = vpop.f32.mrf.mxu0
      %1377 = vmatprep.mubr.f32.mxu0 0.0
      %1378 = vmatmul.mubr.f32.gmra.mxu0 %v917
      %v1379 = vpop.f32.mrf.mxu0
      %v1380 = vadd.f32 %v1241, %v1379
      %v1381 = vpop.f32.mrf.mxu0
      %1382 = vmatprep.mubr.f32.mxu0 0.0
      %1383 = vmatmul.mubr.f32.gmra.mxu0 %v920
      %v1384 = vpop.f32.mrf.mxu0
      %v1385 = vadd.f32 %v1241, %v1384
      %v1386 = vpop.f32.mrf.mxu0
      %1387 = vmatprep.mubr.f32.mxu0 0.0
      %1388 = vmatmul.mubr.f32.gmra.mxu0 %v923
      %v1389 = vpop.f32.mrf.mxu0
      %v1390 = vadd.f32 %v1241, %v1389
      %v1391 = vpop.f32.mrf.mxu0
      %1392 = vmatprep.mubr.f32.mxu0 0.0
      %1393 = vmatmul.mubr.f32.gmra.mxu0 %v926
      %v1394 = vpop.f32.mrf.mxu0
      %v1395 = vadd.f32 %v1241, %v1394
      %v1396 = vpop.f32.mrf.mxu0
      %1397 = vmatprep.mubr.f32.mxu0 0.0
      %1398 = vmatmul.mubr.f32.gmra.mxu0 %v929
      %v1399 = vpop.f32.mrf.mxu0
      %v1400 = vadd.f32 %v1241, %v1399
      %v1401 = vpop.f32.mrf.mxu0
      %1402 = vmatprep.mubr.f32.mxu0 0.0
      %1403 = vmatmul.mubr.f32.gmra.mxu0 %v932
      %v1404 = vpop.f32.mrf.mxu0
      %v1405 = vadd.f32 %v1241, %v1404
      %v1406 = vpop.f32.mrf.mxu0
      %1407 = vmatprep.mubr.f32.mxu0 0.0
      %1408 = vmatmul.mubr.f32.gmra.mxu0 %v935
      %v1409 = vpop.f32.mrf.mxu0
      %v1410 = vadd.f32 %v1241, %v1409
      %v1411 = vpop.f32.mrf.mxu0
      %1412 = vmatprep.mubr.f32.mxu0 0.0
      %1413 = vmatmul.mubr.f32.gmra.mxu0 %v938
      %v1414 = vpop.f32.mrf.mxu0
      %v1415 = vadd.f32 %v1241, %v1414
      %v1416 = vpop.f32.mrf.mxu0
      %1417 = vmatprep.mubr.f32.mxu0 0.0
      %1418 = vmatmul.mubr.f32.gmra.mxu0 %v941
      %v1419 = vpop.f32.mrf.mxu0
      %v1420 = vadd.f32 %v1241, %v1419
      %v1421 = vpop.f32.mrf.mxu0
      %1422 = vmatprep.mubr.f32.mxu0 0.0
      %1423 = vmatmul.mubr.f32.gmra.mxu0 %v944
      %v1424 = vpop.f32.mrf.mxu0
      %v1425 = vadd.f32 %v1241, %v1424
      %v1426 = vpop.f32.mrf.mxu0
      %1427 = vmatprep.mubr.f32.mxu0 0.0
      %1428 = vmatmul.mubr.f32.gmra.mxu0 %v947
      %v1429 = vpop.f32.mrf.mxu0
      %v1430 = vadd.f32 %v1241, %v1429
      %v1431 = vpop.f32.mrf.mxu0
      %1432 = vmatprep.mubr.f32.mxu0 0.0
      %1433 = vmatmul.mubr.f32.gmra.mxu0 %v950
      %v1434 = vpop.f32.mrf.mxu0
      %v1435 = vadd.f32 %v1241, %v1434
      %v1436 = vpop.f32.mrf.mxu0
      %1437 = vmatprep.mubr.f32.mxu0 0.0
      %1438 = vmatmul.mubr.f32.gmra.mxu0 %v953
      %v1439 = vpop.f32.mrf.mxu0
      %v1440 = vadd.f32 %v1241, %v1439
      %v1441 = vpop.f32.mrf.mxu0
      %1442 = vmatprep.mubr.f32.mxu0 0.0
      %1443 = vmatmul.mubr.f32.gmra.mxu0 %v956
      %v1444 = vpop.f32.mrf.mxu0
      %v1445 = vadd.f32 %v1241, %v1444
      %v1446 = vpop.f32.mrf.mxu0
      %1447 = vmatprep.mubr.f32.mxu0 0.0
      %1448 = vmatmul.mubr.f32.gmra.mxu0 %v959
      %v1449 = vpop.f32.mrf.mxu0
      %v1450 = vadd.f32 %v1241, %v1449
      %v1451 = vpop.f32.mrf.mxu0
      %1452 = vmatprep.mubr.f32.mxu0 0.0
      %1453 = vmatmul.mubr.f32.gmra.mxu0 %v962
      %v1454 = vpop.f32.mrf.mxu0
      %v1455 = vadd.f32 %v1241, %v1454
      %v1456 = vpop.f32.mrf.mxu0
      %1457 = vmatprep.mubr.f32.mxu0 0.0
      %1458 = vmatmul.mubr.f32.gmra.mxu0 %v965
      %v1459 = vpop.f32.mrf.mxu0
      %v1460 = vadd.f32 %v1241, %v1459
      %v1461 = vpop.f32.mrf.mxu0
      %1462 = vmatprep.mubr.f32.mxu0 0.0
      %1463 = vmatmul.mubr.f32.gmra.mxu0 %v968
      %v1464 = vpop.f32.mrf.mxu0
      %v1465 = vadd.f32 %v1241, %v1464
      %v1466 = vpop.f32.mrf.mxu0
      %1467 = vdwg.mxu0
      %1468 = vst.msk [vmem:[#allocation3] sm:$0xff] %vm873, %v1310
      %1469 = vst.msk [vmem:[#allocation3 + $0x8] sm:$0xff] %vm873, %v1315
      %1470 = vst.msk [vmem:[#allocation3 + $0x10] sm:$0xff] %vm873, %v1320
      %1471 = vst.msk [vmem:[#allocation3 + $0x18] sm:$0xff] %vm873, %v1325
      %1472 = vst.msk [vmem:[#allocation3 + $0x20] sm:$0xff] %vm873, %v1330
      %1473 = vst.msk [vmem:[#allocation3 + $0x28] sm:$0xff] %vm873, %v1335
      %1474 = vst.msk [vmem:[#allocation3 + $0x30] sm:$0xff] %vm873, %v1340
      %1475 = vst.msk [vmem:[#allocation3 + $0x38] sm:$0xff] %vm873, %v1345
      %1476 = vst.msk [vmem:[#allocation3 + $0x40] sm:$0xff] %vm873, %v1350
      %1477 = vst.msk [vmem:[#allocation3 + $0x48] sm:$0xff] %vm873, %v1355
      %1478 = vst.msk [vmem:[#allocation3 + $0x50] sm:$0xff] %vm873, %v1360
      %1479 = vst.msk [vmem:[#allocation3 + $0x58] sm:$0xff] %vm873, %v1365
      %1480 = vst.msk [vmem:[#allocation3 + $0x60] sm:$0xff] %vm873, %v1370
      %1481 = vst.msk [vmem:[#allocation3 + $0x68] sm:$0xff] %vm873, %v1375
      %1482 = vst.msk [vmem:[#allocation3 + $0x70] sm:$0xff] %vm873, %v1380
      %1483 = vst.msk [vmem:[#allocation3 + $0x78] sm:$0xff] %vm873, %v1385
      %1484 = vst.msk [vmem:[#allocation3 + $0x80] sm:$0xff] %vm873, %v1390
      %1485 = vst.msk [vmem:[#allocation3 + $0x88] sm:$0xff] %vm873, %v1395
      %1486 = vst.msk [vmem:[#allocation3 + $0x90] sm:$0xff] %vm873, %v1400
      %1487 = vst.msk [vmem:[#allocation3 + $0x98] sm:$0xff] %vm873, %v1405
      %1488 = vst.msk [vmem:[#allocation3 + $0xa0] sm:$0xff] %vm873, %v1410
      %1489 = vst.msk [vmem:[#allocation3 + $0xa8] sm:$0xff] %vm873, %v1415
      %1490 = vst.msk [vmem:[#allocation3 + $0xb0] sm:$0xff] %vm873, %v1420
      %1491 = vst.msk [vmem:[#allocation3 + $0xb8] sm:$0xff] %vm873, %v1425
      %1492 = vst.msk [vmem:[#allocation3 + $0xc0] sm:$0xff] %vm873, %v1430
      %1493 = vst.msk [vmem:[#allocation3 + $0xc8] sm:$0xff] %vm873, %v1435
      %1494 = vst.msk [vmem:[#allocation3 + $0xd0] sm:$0xff] %vm873, %v1440
      %1495 = vst.msk [vmem:[#allocation3 + $0xd8] sm:$0xff] %vm873, %v1445
      %1496 = vst.msk [vmem:[#allocation3 + $0xe0] sm:$0xff] %vm873, %v1450
      %1497 = vst.msk [vmem:[#allocation3 + $0xe8] sm:$0xff] %vm873, %v1455
      %1498 = vst.msk [vmem:[#allocation3 + $0xf0] sm:$0xff] %vm873, %v1460
      %1499 = vst.msk [vmem:[#allocation3 + $0xf8] sm:$0xff] %vm873, %v1465
      %s1500 = scalar_lea.vmem %s2, 64
      %v1501 = vld [vmem:[%s1500] sm:$0xff]
      %v1502 = vld [vmem:[%s1500 + $0x8] sm:$0xff]
      %v1503 = vld [vmem:[%s1500 + $0x10] sm:$0xff]
      %v1504 = vld [vmem:[%s1500 + $0x18] sm:$0xff]
      %s1505 = scalar_lea.vmem %s4, 2
      %v1506 = vld [vmem:[%s1505] sm:$0x1]
      %v1508 = vlaneseq
      %v1509 = vshrl.u32 %v1508, 7
      %v1510 = vsub.s32 0, %v1509
      %v1511 = vrot.slane %v1506, %v1510
      %1513 = vmatprep.subr.mxu0 0.0
      %1514 = vmatpush1.msra.mxu0 0.0
      %1515 = vmatprep.subr.mxu0 0.0
      %1516 = vmatpush1.msra.mxu0 0.0
      %1517 = vmatprep.subr.mxu0 0.0
      %1518 = vmatpush1.msra.mxu0 0.0
      %1519 = vmatprep.subr.mxu0 0.0
      %1520 = vmatpush1.msra.mxu0 0.0
      %1521 = vmatprep.subr.mxu0 0.0
      %1522 = vmatpush1.msra.mxu0 0.0
      %1523 = vmatprep.subr.mxu0 0.0
      %1524 = vmatpush1.msra.mxu0 0.0
      %1525 = vmatprep.subr.mxu0 0.0
      %1526 = vmatpush1.msra.mxu0 0.0
      %1527 = vmatprep.subr.mxu0 0.0
      %1528 = vmatpush1.msra.mxu0 0.0
      %1529 = vmatprep.subr.mxu0 0.0
      %1530 = vmatpush1.msra.mxu0 0.0
      %1531 = vmatprep.subr.mxu0 0.0
      %1532 = vmatpush1.msra.mxu0 0.0
      %1533 = vmatprep.subr.mxu0 0.0
      %1534 = vmatpush1.msra.mxu0 0.0
      %1535 = vmatprep.subr.mxu0 0.0
      %1536 = vmatpush1.msra.mxu0 0.0
      %1537 = vmatprep.subr.mxu0 0.0
      %1538 = vmatpush1.msra.mxu0 %v1504
      %1539 = vmatprep.subr.mxu0 0.0
      %1540 = vmatpush1.msra.mxu0 %v1503
      %1541 = vmatprep.subr.mxu0 0.0
      %1542 = vmatpush1.msra.mxu0 %v1502
      %1543 = vmatprep.subr.mxu0 0.0
      %1544 = vmatpush1.msra.mxu0 %v1501
      %1545 = vmatprep.subr.mxu0 0.0
      %1546 = vmatpush2.msra.mxu0 0.0
      %1547 = vmatprep.subr.mxu0 0.0
      %1548 = vmatpush2.msra.mxu0 0.0
      %1549 = vmatprep.subr.mxu0 0.0
      %1550 = vmatpush2.msra.mxu0 0.0
      %1551 = vmatprep.subr.mxu0 0.0
      %1552 = vmatpush2.msra.mxu0 0.0
      %1553 = vmatprep.subr.mxu0 0.0
      %1554 = vmatpush2.msra.mxu0 0.0
      %1555 = vmatprep.subr.mxu0 0.0
      %1556 = vmatpush2.msra.mxu0 0.0
      %1557 = vmatprep.subr.mxu0 0.0
      %1558 = vmatpush2.msra.mxu0 0.0
      %1559 = vmatprep.subr.mxu0 0.0
      %1560 = vmatpush2.msra.mxu0 0.0
      %1561 = vmatprep.subr.mxu0 0.0
      %1562 = vmatpush2.msra.mxu0 0.0
      %1563 = vmatprep.subr.mxu0 0.0
      %1564 = vmatpush2.msra.mxu0 0.0
      %1565 = vmatprep.subr.mxu0 0.0
      %1566 = vmatpush2.msra.mxu0 0.0
      %1567 = vmatprep.subr.mxu0 0.0
      %1568 = vmatpush2.msra.mxu0 0.0
      %1569 = vmatprep.subr.mxu0 0.0
      %1570 = vmatpush2.msra.mxu0 0.0
      %1571 = vmatprep.subr.mxu0 0.0
      %1572 = vmatpush2.msra.mxu0 0.0
      %1573 = vmatprep.subr.mxu0 0.0
      %1574 = vmatpush2.msra.mxu0 0.0
      %1575 = vmatprep.subr.mxu0 0.0
      %1576 = vmatpush2.msra.mxu0 0.0
      %1577 = vmatprep.mubr.f32.mxu0 0.0
      %1578 = vmatmul.mubr.f32.gmra.mxu0 %v875
      %v1579 = vpop.f32.mrf.mxu0
      %v1580 = vadd.f32 %v1511, %v1579
      %v1581 = vpop.f32.mrf.mxu0
      %1582 = vmatprep.mubr.f32.mxu0 0.0
      %1583 = vmatmul.mubr.f32.gmra.mxu0 %v878
      %v1584 = vpop.f32.mrf.mxu0
      %v1585 = vadd.f32 %v1511, %v1584
      %v1586 = vpop.f32.mrf.mxu0
      %1587 = vmatprep.mubr.f32.mxu0 0.0
      %1588 = vmatmul.mubr.f32.gmra.mxu0 %v881
      %v1589 = vpop.f32.mrf.mxu0
      %v1590 = vadd.f32 %v1511, %v1589
      %v1591 = vpop.f32.mrf.mxu0
      %1592 = vmatprep.mubr.f32.mxu0 0.0
      %1593 = vmatmul.mubr.f32.gmra.mxu0 %v884
      %v1594 = vpop.f32.mrf.mxu0
      %v1595 = vadd.f32 %v1511, %v1594
      %v1596 = vpop.f32.mrf.mxu0
      %1597 = vmatprep.mubr.f32.mxu0 0.0
      %1598 = vmatmul.mubr.f32.gmra.mxu0 %v887
      %v1599 = vpop.f32.mrf.mxu0
      %v1600 = vadd.f32 %v1511, %v1599
      %v1601 = vpop.f32.mrf.mxu0
      %1602 = vmatprep.mubr.f32.mxu0 0.0
      %1603 = vmatmul.mubr.f32.gmra.mxu0 %v890
      %v1604 = vpop.f32.mrf.mxu0
      %v1605 = vadd.f32 %v1511, %v1604
      %v1606 = vpop.f32.mrf.mxu0
      %1607 = vmatprep.mubr.f32.mxu0 0.0
      %1608 = vmatmul.mubr.f32.gmra.mxu0 %v893
      %v1609 = vpop.f32.mrf.mxu0
      %v1610 = vadd.f32 %v1511, %v1609
      %v1611 = vpop.f32.mrf.mxu0
      %1612 = vmatprep.mubr.f32.mxu0 0.0
      %1613 = vmatmul.mubr.f32.gmra.mxu0 %v896
      %v1614 = vpop.f32.mrf.mxu0
      %v1615 = vadd.f32 %v1511, %v1614
      %v1616 = vpop.f32.mrf.mxu0
      %1617 = vmatprep.mubr.f32.mxu0 0.0
      %1618 = vmatmul.mubr.f32.gmra.mxu0 %v899
      %v1619 = vpop.f32.mrf.mxu0
      %v1620 = vadd.f32 %v1511, %v1619
      %v1621 = vpop.f32.mrf.mxu0
      %1622 = vmatprep.mubr.f32.mxu0 0.0
      %1623 = vmatmul.mubr.f32.gmra.mxu0 %v902
      %v1624 = vpop.f32.mrf.mxu0
      %v1625 = vadd.f32 %v1511, %v1624
      %v1626 = vpop.f32.mrf.mxu0
      %1627 = vmatprep.mubr.f32.mxu0 0.0
      %1628 = vmatmul.mubr.f32.gmra.mxu0 %v905
      %v1629 = vpop.f32.mrf.mxu0
      %v1630 = vadd.f32 %v1511, %v1629
      %v1631 = vpop.f32.mrf.mxu0
      %1632 = vmatprep.mubr.f32.mxu0 0.0
      %1633 = vmatmul.mubr.f32.gmra.mxu0 %v908
      %v1634 = vpop.f32.mrf.mxu0
      %v1635 = vadd.f32 %v1511, %v1634
      %v1636 = vpop.f32.mrf.mxu0
      %1637 = vmatprep.mubr.f32.mxu0 0.0
      %1638 = vmatmul.mubr.f32.gmra.mxu0 %v911
      %v1639 = vpop.f32.mrf.mxu0
      %v1640 = vadd.f32 %v1511, %v1639
      %v1641 = vpop.f32.mrf.mxu0
      %1642 = vmatprep.mubr.f32.mxu0 0.0
      %1643 = vmatmul.mubr.f32.gmra.mxu0 %v914
      %v1644 = vpop.f32.mrf.mxu0
      %v1645 = vadd.f32 %v1511, %v1644
      %v1646 = vpop.f32.mrf.mxu0
      %1647 = vmatprep.mubr.f32.mxu0 0.0
      %1648 = vmatmul.mubr.f32.gmra.mxu0 %v917
      %v1649 = vpop.f32.mrf.mxu0
      %v1650 = vadd.f32 %v1511, %v1649
      %v1651 = vpop.f32.mrf.mxu0
      %1652 = vmatprep.mubr.f32.mxu0 0.0
      %1653 = vmatmul.mubr.f32.gmra.mxu0 %v920
      %v1654 = vpop.f32.mrf.mxu0
      %v1655 = vadd.f32 %v1511, %v1654
      %v1656 = vpop.f32.mrf.mxu0
      %1657 = vmatprep.mubr.f32.mxu0 0.0
      %1658 = vmatmul.mubr.f32.gmra.mxu0 %v923
      %v1659 = vpop.f32.mrf.mxu0
      %v1660 = vadd.f32 %v1511, %v1659
      %v1661 = vpop.f32.mrf.mxu0
      %1662 = vmatprep.mubr.f32.mxu0 0.0
      %1663 = vmatmul.mubr.f32.gmra.mxu0 %v926
      %v1664 = vpop.f32.mrf.mxu0
      %v1665 = vadd.f32 %v1511, %v1664
      %v1666 = vpop.f32.mrf.mxu0
      %1667 = vmatprep.mubr.f32.mxu0 0.0
      %1668 = vmatmul.mubr.f32.gmra.mxu0 %v929
      %v1669 = vpop.f32.mrf.mxu0
      %v1670 = vadd.f32 %v1511, %v1669
      %v1671 = vpop.f32.mrf.mxu0
      %1672 = vmatprep.mubr.f32.mxu0 0.0
      %1673 = vmatmul.mubr.f32.gmra.mxu0 %v932
      %v1674 = vpop.f32.mrf.mxu0
      %v1675 = vadd.f32 %v1511, %v1674
      %v1676 = vpop.f32.mrf.mxu0
      %1677 = vmatprep.mubr.f32.mxu0 0.0
      %1678 = vmatmul.mubr.f32.gmra.mxu0 %v935
      %v1679 = vpop.f32.mrf.mxu0
      %v1680 = vadd.f32 %v1511, %v1679
      %v1681 = vpop.f32.mrf.mxu0
      %1682 = vmatprep.mubr.f32.mxu0 0.0
      %1683 = vmatmul.mubr.f32.gmra.mxu0 %v938
      %v1684 = vpop.f32.mrf.mxu0
      %v1685 = vadd.f32 %v1511, %v1684
      %v1686 = vpop.f32.mrf.mxu0
      %1687 = vmatprep.mubr.f32.mxu0 0.0
      %1688 = vmatmul.mubr.f32.gmra.mxu0 %v941
      %v1689 = vpop.f32.mrf.mxu0
      %v1690 = vadd.f32 %v1511, %v1689
      %v1691 = vpop.f32.mrf.mxu0
      %1692 = vmatprep.mubr.f32.mxu0 0.0
      %1693 = vmatmul.mubr.f32.gmra.mxu0 %v944
      %v1694 = vpop.f32.mrf.mxu0
      %v1695 = vadd.f32 %v1511, %v1694
      %v1696 = vpop.f32.mrf.mxu0
      %1697 = vmatprep.mubr.f32.mxu0 0.0
      %1698 = vmatmul.mubr.f32.gmra.mxu0 %v947
      %v1699 = vpop.f32.mrf.mxu0
      %v1700 = vadd.f32 %v1511, %v1699
      %v1701 = vpop.f32.mrf.mxu0
      %1702 = vmatprep.mubr.f32.mxu0 0.0
      %1703 = vmatmul.mubr.f32.gmra.mxu0 %v950
      %v1704 = vpop.f32.mrf.mxu0
      %v1705 = vadd.f32 %v1511, %v1704
      %v1706 = vpop.f32.mrf.mxu0
      %1707 = vmatprep.mubr.f32.mxu0 0.0
      %1708 = vmatmul.mubr.f32.gmra.mxu0 %v953
      %v1709 = vpop.f32.mrf.mxu0
      %v1710 = vadd.f32 %v1511, %v1709
      %v1711 = vpop.f32.mrf.mxu0
      %1712 = vmatprep.mubr.f32.mxu0 0.0
      %1713 = vmatmul.mubr.f32.gmra.mxu0 %v956
      %v1714 = vpop.f32.mrf.mxu0
      %v1715 = vadd.f32 %v1511, %v1714
      %v1716 = vpop.f32.mrf.mxu0
      %1717 = vmatprep.mubr.f32.mxu0 0.0
      %1718 = vmatmul.mubr.f32.gmra.mxu0 %v959
      %v1719 = vpop.f32.mrf.mxu0
      %v1720 = vadd.f32 %v1511, %v1719
      %v1721 = vpop.f32.mrf.mxu0
      %1722 = vmatprep.mubr.f32.mxu0 0.0
      %1723 = vmatmul.mubr.f32.gmra.mxu0 %v962
      %v1724 = vpop.f32.mrf.mxu0
      %v1725 = vadd.f32 %v1511, %v1724
      %v1726 = vpop.f32.mrf.mxu0
      %1727 = vmatprep.mubr.f32.mxu0 0.0
      %1728 = vmatmul.mubr.f32.gmra.mxu0 %v965
      %v1729 = vpop.f32.mrf.mxu0
      %v1730 = vadd.f32 %v1511, %v1729
      %v1731 = vpop.f32.mrf.mxu0
      %1732 = vmatprep.mubr.f32.mxu0 0.0
      %1733 = vmatmul.mubr.f32.gmra.mxu0 %v968
      %v1734 = vpop.f32.mrf.mxu0
      %v1735 = vadd.f32 %v1511, %v1734
      %v1736 = vpop.f32.mrf.mxu0
      %1737 = vdwg.mxu0
      %1738 = vst.msk [vmem:[#allocation4] sm:$0xff] %vm873, %v1580
      %1739 = vst.msk [vmem:[#allocation4 + $0x8] sm:$0xff] %vm873, %v1585
      %1740 = vst.msk [vmem:[#allocation4 + $0x10] sm:$0xff] %vm873, %v1590
      %1741 = vst.msk [vmem:[#allocation4 + $0x18] sm:$0xff] %vm873, %v1595
      %1742 = vst.msk [vmem:[#allocation4 + $0x20] sm:$0xff] %vm873, %v1600
      %1743 = vst.msk [vmem:[#allocation4 + $0x28] sm:$0xff] %vm873, %v1605
      %1744 = vst.msk [vmem:[#allocation4 + $0x30] sm:$0xff] %vm873, %v1610
      %1745 = vst.msk [vmem:[#allocation4 + $0x38] sm:$0xff] %vm873, %v1615
      %1746 = vst.msk [vmem:[#allocation4 + $0x40] sm:$0xff] %vm873, %v1620
      %1747 = vst.msk [vmem:[#allocation4 + $0x48] sm:$0xff] %vm873, %v1625
      %1748 = vst.msk [vmem:[#allocation4 + $0x50] sm:$0xff] %vm873, %v1630
      %1749 = vst.msk [vmem:[#allocation4 + $0x58] sm:$0xff] %vm873, %v1635
      %1750 = vst.msk [vmem:[#allocation4 + $0x60] sm:$0xff] %vm873, %v1640
      %1751 = vst.msk [vmem:[#allocation4 + $0x68] sm:$0xff] %vm873, %v1645
      %1752 = vst.msk [vmem:[#allocation4 + $0x70] sm:$0xff] %vm873, %v1650
      %1753 = vst.msk [vmem:[#allocation4 + $0x78] sm:$0xff] %vm873, %v1655
      %1754 = vst.msk [vmem:[#allocation4 + $0x80] sm:$0xff] %vm873, %v1660
      %1755 = vst.msk [vmem:[#allocation4 + $0x88] sm:$0xff] %vm873, %v1665
      %1756 = vst.msk [vmem:[#allocation4 + $0x90] sm:$0xff] %vm873, %v1670
      %1757 = vst.msk [vmem:[#allocation4 + $0x98] sm:$0xff] %vm873, %v1675
      %1758 = vst.msk [vmem:[#allocation4 + $0xa0] sm:$0xff] %vm873, %v1680
      %1759 = vst.msk [vmem:[#allocation4 + $0xa8] sm:$0xff] %vm873, %v1685
      %1760 = vst.msk [vmem:[#allocation4 + $0xb0] sm:$0xff] %vm873, %v1690
      %1761 = vst.msk [vmem:[#allocation4 + $0xb8] sm:$0xff] %vm873, %v1695
      %1762 = vst.msk [vmem:[#allocation4 + $0xc0] sm:$0xff] %vm873, %v1700
      %1763 = vst.msk [vmem:[#allocation4 + $0xc8] sm:$0xff] %vm873, %v1705
      %1764 = vst.msk [vmem:[#allocation4 + $0xd0] sm:$0xff] %vm873, %v1710
      %1765 = vst.msk [vmem:[#allocation4 + $0xd8] sm:$0xff] %vm873, %v1715
      %1766 = vst.msk [vmem:[#allocation4 + $0xe0] sm:$0xff] %vm873, %v1720
      %1767 = vst.msk [vmem:[#allocation4 + $0xe8] sm:$0xff] %vm873, %v1725
      %1768 = vst.msk [vmem:[#allocation4 + $0xf0] sm:$0xff] %vm873, %v1730
      %1769 = vst.msk [vmem:[#allocation4 + $0xf8] sm:$0xff] %vm873, %v1735
      %v1770 = vld [vmem:[%s3] sm:$0xff]
      %v1771 = vld [vmem:[%s3 + $0x8] sm:$0xff]
      %v1772 = vld [vmem:[%s3 + $0x10] sm:$0xff]
      %v1773 = vld [vmem:[%s3 + $0x18] sm:$0xff]
      %s1774 = scalar_lea.vmem %s3, 32
      %v1775 = vld [vmem:[%s1774] sm:$0xff]
      %v1776 = vld [vmem:[%s1774 + $0x8] sm:$0xff]
      %v1777 = vld [vmem:[%s1774 + $0x10] sm:$0xff]
      %v1778 = vld [vmem:[%s1774 + $0x18] sm:$0xff]
      %s1779 = scalar_lea.vmem %s3, 64
      %v1780 = vld [vmem:[%s1779] sm:$0xff]
      %v1781 = vld [vmem:[%s1779 + $0x8] sm:$0xff]
      %v1782 = vld [vmem:[%s1779 + $0x10] sm:$0xff]
      %v1783 = vld [vmem:[%s1779 + $0x18] sm:$0xff]
      %s1784 = scalar_lea.vmem %s5, 2
      %v1785 = vld [vmem:[%s1784] sm:$0x1]
      %v1787 = vlaneseq
      %v1788 = vshrl.u32 %v1787, 7
      %v1789 = vsub.s32 0, %v1788
      %v1790 = vrot.slane %v1785, %v1789
      %v1792 = vld [vmem:[#allocation2] sm:$0xff]
      %v1793 = vld [vmem:[#allocation2 + $0x8] sm:$0xff]
      %v1794 = vld [vmem:[#allocation2 + $0x10] sm:$0xff]
      %v1795 = vld [vmem:[#allocation2 + $0x18] sm:$0xff]
      %v1796 = vld [vmem:[#allocation3] sm:$0xff]
      %v1797 = vld [vmem:[#allocation3 + $0x8] sm:$0xff]
      %v1798 = vld [vmem:[#allocation3 + $0x10] sm:$0xff]
      %v1799 = vld [vmem:[#allocation3 + $0x18] sm:$0xff]
      %v1800 = vld [vmem:[#allocation4] sm:$0xff]
      %v1801 = vld [vmem:[#allocation4 + $0x8] sm:$0xff]
      %v1802 = vld [vmem:[#allocation4 + $0x10] sm:$0xff]
      %v1803 = vld [vmem:[#allocation4 + $0x18] sm:$0xff]
      %v1805 = vsel %vm873, 0.0, 0
      %1807 = vmatprep.subr.mxu0 0.0
      %1808 = vmatpush1.msra.mxu0 0.0
      %1809 = vmatprep.subr.mxu0 0.0
      %1810 = vmatpush1.msra.mxu0 0.0
      %1811 = vmatprep.subr.mxu0 0.0
      %1812 = vmatpush1.msra.mxu0 0.0
      %1813 = vmatprep.subr.mxu0 0.0
      %1814 = vmatpush1.msra.mxu0 0.0
      %1815 = vmatprep.subr.mxu0 0.0
      %1816 = vmatpush1.msra.mxu0 0.0
      %1817 = vmatprep.subr.mxu0 0.0
      %1818 = vmatpush1.msra.mxu0 0.0
      %1819 = vmatprep.subr.mxu0 0.0
      %1820 = vmatpush1.msra.mxu0 0.0
      %1821 = vmatprep.subr.mxu0 0.0
      %1822 = vmatpush1.msra.mxu0 0.0
      %1823 = vmatprep.subr.mxu0 0.0
      %1824 = vmatpush1.msra.mxu0 0.0
      %1825 = vmatprep.subr.mxu0 0.0
      %1826 = vmatpush1.msra.mxu0 0.0
      %1827 = vmatprep.subr.mxu0 0.0
      %1828 = vmatpush1.msra.mxu0 0.0
      %1829 = vmatprep.subr.mxu0 0.0
      %1830 = vmatpush1.msra.mxu0 0.0
      %1831 = vmatprep.subr.mxu0 0.0
      %1832 = vmatpush1.msra.mxu0 %v1773
      %1833 = vmatprep.subr.mxu0 0.0
      %1834 = vmatpush1.msra.mxu0 %v1772
      %1835 = vmatprep.subr.mxu0 0.0
      %1836 = vmatpush1.msra.mxu0 %v1771
      %1837 = vmatprep.subr.mxu0 0.0
      %1838 = vmatpush1.msra.mxu0 %v1770
      %1839 = vmatprep.subr.mxu0 0.0
      %1840 = vmatpush2.msra.mxu0 0.0
      %1841 = vmatprep.subr.mxu0 0.0
      %1842 = vmatpush2.msra.mxu0 0.0
      %1843 = vmatprep.subr.mxu0 0.0
      %1844 = vmatpush2.msra.mxu0 0.0
      %1845 = vmatprep.subr.mxu0 0.0
      %1846 = vmatpush2.msra.mxu0 0.0
      %1847 = vmatprep.subr.mxu0 0.0
      %1848 = vmatpush2.msra.mxu0 0.0
      %1849 = vmatprep.subr.mxu0 0.0
      %1850 = vmatpush2.msra.mxu0 0.0
      %1851 = vmatprep.subr.mxu0 0.0
      %1852 = vmatpush2.msra.mxu0 0.0
      %1853 = vmatprep.subr.mxu0 0.0
      %1854 = vmatpush2.msra.mxu0 0.0
      %1855 = vmatprep.subr.mxu0 0.0
      %1856 = vmatpush2.msra.mxu0 0.0
      %1857 = vmatprep.subr.mxu0 0.0
      %1858 = vmatpush2.msra.mxu0 0.0
      %1859 = vmatprep.subr.mxu0 0.0
      %1860 = vmatpush2.msra.mxu0 0.0
      %1861 = vmatprep.subr.mxu0 0.0
      %1862 = vmatpush2.msra.mxu0 0.0
      %1863 = vmatprep.subr.mxu0 0.0
      %1864 = vmatpush2.msra.mxu0 0.0
      %1865 = vmatprep.subr.mxu0 0.0
      %1866 = vmatpush2.msra.mxu0 0.0
      %1867 = vmatprep.subr.mxu0 0.0
      %1868 = vmatpush2.msra.mxu0 0.0
      %1869 = vmatprep.subr.mxu0 0.0
      %1870 = vmatpush2.msra.mxu0 0.0
      %1871 = vmatprep.mubr.f32.mxu0 0.0
      %1872 = vmatmul.mubr.f32.gmra.mxu0 %v1805
      %v1873 = vpop.f32.mrf.mxu0
      %v1874 = vadd.f32 0.0, %v1873
      %v1875 = vpop.f32.mrf.mxu0
      %1876 = vmatprep.mubr.f32.mxu0 0.0
      %1877 = vmatmul.mubr.f32.gmra.mxu0 %v1805
      %v1878 = vpop.f32.mrf.mxu0
      %v1879 = vadd.f32 0.0, %v1878
      %v1880 = vpop.f32.mrf.mxu0
      %1881 = vmatprep.mubr.f32.mxu0 0.0
      %1882 = vmatmul.mubr.f32.gmra.mxu0 %v1805
      %v1883 = vpop.f32.mrf.mxu0
      %v1884 = vadd.f32 0.0, %v1883
      %v1885 = vpop.f32.mrf.mxu0
      %1886 = vmatprep.mubr.f32.mxu0 0.0
      %1887 = vmatmul.mubr.f32.gmra.mxu0 %v1805
      %v1888 = vpop.f32.mrf.mxu0
      %v1889 = vadd.f32 0.0, %v1888
      %v1890 = vpop.f32.mrf.mxu0
      %1891 = vdwg.mxu0
      %1892 = vmatprep.subr.mxu0 0.0
      %1893 = vmatpush1.msra.mxu0 0.0
      %1894 = vmatprep.subr.mxu0 0.0
      %1895 = vmatpush1.msra.mxu0 0.0
      %1896 = vmatprep.subr.mxu0 0.0
      %1897 = vmatpush1.msra.mxu0 0.0
      %1898 = vmatprep.subr.mxu0 0.0
      %1899 = vmatpush1.msra.mxu0 0.0
      %1900 = vmatprep.subr.mxu0 0.0
      %1901 = vmatpush1.msra.mxu0 0.0
      %1902 = vmatprep.subr.mxu0 0.0
      %1903 = vmatpush1.msra.mxu0 0.0
      %1904 = vmatprep.subr.mxu0 0.0
      %1905 = vmatpush1.msra.mxu0 0.0
      %1906 = vmatprep.subr.mxu0 0.0
      %1907 = vmatpush1.msra.mxu0 0.0
      %1908 = vmatprep.subr.mxu0 0.0
      %1909 = vmatpush1.msra.mxu0 0.0
      %1910 = vmatprep.subr.mxu0 0.0
      %1911 = vmatpush1.msra.mxu0 0.0
      %1912 = vmatprep.subr.mxu0 0.0
      %1913 = vmatpush1.msra.mxu0 0.0
      %1914 = vmatprep.subr.mxu0 0.0
      %1915 = vmatpush1.msra.mxu0 0.0
      %1916 = vmatprep.subr.mxu0 0.0
      %1917 = vmatpush1.msra.mxu0 %v1778
      %1918 = vmatprep.subr.mxu0 0.0
      %1919 = vmatpush1.msra.mxu0 %v1777
      %1920 = vmatprep.subr.mxu0 0.0
      %1921 = vmatpush1.msra.mxu0 %v1776
      %1922 = vmatprep.subr.mxu0 0.0
      %1923 = vmatpush1.msra.mxu0 %v1775
      %1924 = vmatprep.subr.mxu0 0.0
      %1925 = vmatpush2.msra.mxu0 0.0
      %1926 = vmatprep.subr.mxu0 0.0
      %1927 = vmatpush2.msra.mxu0 0.0
      %1928 = vmatprep.subr.mxu0 0.0
      %1929 = vmatpush2.msra.mxu0 0.0
      %1930 = vmatprep.subr.mxu0 0.0
      %1931 = vmatpush2.msra.mxu0 0.0
      %1932 = vmatprep.subr.mxu0 0.0
      %1933 = vmatpush2.msra.mxu0 0.0
      %1934 = vmatprep.subr.mxu0 0.0
      %1935 = vmatpush2.msra.mxu0 0.0
      %1936 = vmatprep.subr.mxu0 0.0
      %1937 = vmatpush2.msra.mxu0 0.0
      %1938 = vmatprep.subr.mxu0 0.0
      %1939 = vmatpush2.msra.mxu0 0.0
      %1940 = vmatprep.subr.mxu0 0.0
      %1941 = vmatpush2.msra.mxu0 0.0
      %1942 = vmatprep.subr.mxu0 0.0
      %1943 = vmatpush2.msra.mxu0 0.0
      %1944 = vmatprep.subr.mxu0 0.0
      %1945 = vmatpush2.msra.mxu0 0.0
      %1946 = vmatprep.subr.mxu0 0.0
      %1947 = vmatpush2.msra.mxu0 0.0
      %1948 = vmatprep.subr.mxu0 0.0
      %1949 = vmatpush2.msra.mxu0 0.0
      %1950 = vmatprep.subr.mxu0 0.0
      %1951 = vmatpush2.msra.mxu0 0.0
      %1952 = vmatprep.subr.mxu0 0.0
      %1953 = vmatpush2.msra.mxu0 0.0
      %1954 = vmatprep.subr.mxu0 0.0
      %1955 = vmatpush2.msra.mxu0 0.0
      %1956 = vmatprep.mubr.f32.mxu0 0.0
      %1957 = vmatmul.mubr.f32.gmra.mxu0 %v1805
      %v1958 = vpop.f32.mrf.mxu0
      %v1959 = vadd.f32 0.0, %v1958
      %v1960 = vpop.f32.mrf.mxu0
      %1961 = vmatprep.mubr.f32.mxu0 0.0
      %1962 = vmatmul.mubr.f32.gmra.mxu0 %v1805
      %v1963 = vpop.f32.mrf.mxu0
      %v1964 = vadd.f32 0.0, %v1963
      %v1965 = vpop.f32.mrf.mxu0
      %1966 = vmatprep.mubr.f32.mxu0 0.0
      %1967 = vmatmul.mubr.f32.gmra.mxu0 %v1805
      %v1968 = vpop.f32.mrf.mxu0
      %v1969 = vadd.f32 0.0, %v1968
      %v1970 = vpop.f32.mrf.mxu0
      %1971 = vmatprep.mubr.f32.mxu0 0.0
      %1972 = vmatmul.mubr.f32.gmra.mxu0 %v1805
      %v1973 = vpop.f32.mrf.mxu0
      %v1974 = vadd.f32 0.0, %v1973
      %v1975 = vpop.f32.mrf.mxu0
      %1976 = vdwg.mxu0
      %1977 = vmatprep.subr.mxu0 0.0
      %1978 = vmatpush1.msra.mxu0 0.0
      %1979 = vmatprep.subr.mxu0 0.0
      %1980 = vmatpush1.msra.mxu0 0.0
      %1981 = vmatprep.subr.mxu0 0.0
      %1982 = vmatpush1.msra.mxu0 0.0
      %1983 = vmatprep.subr.mxu0 0.0
      %1984 = vmatpush1.msra.mxu0 0.0
      %1985 = vmatprep.subr.mxu0 0.0
      %1986 = vmatpush1.msra.mxu0 0.0
      %1987 = vmatprep.subr.mxu0 0.0
      %1988 = vmatpush1.msra.mxu0 0.0
      %1989 = vmatprep.subr.mxu0 0.0
      %1990 = vmatpush1.msra.mxu0 0.0
      %1991 = vmatprep.subr.mxu0 0.0
      %1992 = vmatpush1.msra.mxu0 0.0
      %1993 = vmatprep.subr.mxu0 0.0
      %1994 = vmatpush1.msra.mxu0 0.0
      %1995 = vmatprep.subr.mxu0 0.0
      %1996 = vmatpush1.msra.mxu0 0.0
      %1997 = vmatprep.subr.mxu0 0.0
      %1998 = vmatpush1.msra.mxu0 0.0
      %1999 = vmatprep.subr.mxu0 0.0
      %2000 = vmatpush1.msra.mxu0 0.0
      %2001 = vmatprep.subr.mxu0 0.0
      %2002 = vmatpush1.msra.mxu0 %v1783
      %2003 = vmatprep.subr.mxu0 0.0
      %2004 = vmatpush1.msra.mxu0 %v1782
      %2005 = vmatprep.subr.mxu0 0.0
      %2006 = vmatpush1.msra.mxu0 %v1781
      %2007 = vmatprep.subr.mxu0 0.0
      %2008 = vmatpush1.msra.mxu0 %v1780
      %2009 = vmatprep.subr.mxu0 0.0
      %2010 = vmatpush2.msra.mxu0 0.0
      %2011 = vmatprep.subr.mxu0 0.0
      %2012 = vmatpush2.msra.mxu0 0.0
      %2013 = vmatprep.subr.mxu0 0.0
      %2014 = vmatpush2.msra.mxu0 0.0
      %2015 = vmatprep.subr.mxu0 0.0
      %2016 = vmatpush2.msra.mxu0 0.0
      %2017 = vmatprep.subr.mxu0 0.0
      %2018 = vmatpush2.msra.mxu0 0.0
      %2019 = vmatprep.subr.mxu0 0.0
      %2020 = vmatpush2.msra.mxu0 0.0
      %2021 = vmatprep.subr.mxu0 0.0
      %2022 = vmatpush2.msra.mxu0 0.0
      %2023 = vmatprep.subr.mxu0 0.0
      %2024 = vmatpush2.msra.mxu0 0.0
      %2025 = vmatprep.subr.mxu0 0.0
      %2026 = vmatpush2.msra.mxu0 0.0
      %2027 = vmatprep.subr.mxu0 0.0
      %2028 = vmatpush2.msra.mxu0 0.0
      %2029 = vmatprep.subr.mxu0 0.0
      %2030 = vmatpush2.msra.mxu0 0.0
      %2031 = vmatprep.subr.mxu0 0.0
      %2032 = vmatpush2.msra.mxu0 0.0
      %2033 = vmatprep.subr.mxu0 0.0
      %2034 = vmatpush2.msra.mxu0 0.0
      %2035 = vmatprep.subr.mxu0 0.0
      %2036 = vmatpush2.msra.mxu0 0.0
      %2037 = vmatprep.subr.mxu0 0.0
      %2038 = vmatpush2.msra.mxu0 0.0
      %2039 = vmatprep.subr.mxu0 0.0
      %2040 = vmatpush2.msra.mxu0 0.0
      %2041 = vmatprep.mubr.f32.mxu0 0.0
      %2042 = vmatmul.mubr.f32.gmra.mxu0 %v1805
      %v2043 = vpop.f32.mrf.mxu0
      %v2044 = vadd.f32 %v1790, %v2043
      %v2045 = vpop.f32.mrf.mxu0
      %2046 = vmatprep.mubr.f32.mxu0 0.0
      %2047 = vmatmul.mubr.f32.gmra.mxu0 %v1805
      %v2048 = vpop.f32.mrf.mxu0
      %v2049 = vadd.f32 %v1790, %v2048
      %v2050 = vpop.f32.mrf.mxu0
      %2051 = vmatprep.mubr.f32.mxu0 0.0
      %2052 = vmatmul.mubr.f32.gmra.mxu0 %v1805
      %v2053 = vpop.f32.mrf.mxu0
      %v2054 = vadd.f32 %v1790, %v2053
      %v2055 = vpop.f32.mrf.mxu0
      %2056 = vmatprep.mubr.f32.mxu0 0.0
      %2057 = vmatmul.mubr.f32.gmra.mxu0 %v1805
      %v2058 = vpop.f32.mrf.mxu0
      %v2059 = vadd.f32 %v1790, %v2058
      %v2060 = vpop.f32.mrf.mxu0
      %2061 = vdwg.mxu0
      %v2062 = vadd.f32 %v1792, %v1874
      %v2063 = vadd.f32 %v1793, %v1879
      %v2064 = vadd.f32 %v1794, %v1884
      %v2065 = vadd.f32 %v1795, %v1889
      %v2066 = vxor.u32 %v2062, 2147483648
      %v2067 = vxor.u32 %v2063, 2147483648
      %v2068 = vxor.u32 %v2064, 2147483648
      %v2069 = vxor.u32 %v2065, 2147483648
      %v2070 = vmul.f32 %v2066, 1.442695
      %v2071 = vpow.pop %v2070
      %v2072 = vmul.f32 %v2067, 1.442695
      %v2073 = vpow.pop %v2072
      %v2074 = vmul.f32 %v2068, 1.442695
      %v2075 = vpow.pop %v2074
      %v2076 = vmul.f32 %v2069, 1.442695
      %v2077 = vpow.pop %v2076
      %v2078 = vadd.f32 %v2071, 1.0
      %v2079 = vadd.f32 %v2073, 1.0
      %v2080 = vadd.f32 %v2075, 1.0
      %v2081 = vadd.f32 %v2077, 1.0
      %v2082 = vrcp.pop %v2078
      %v2083 = vmul.f32 1.0, %v2082
      %v2084 = vrcp.pop %v2079
      %v2085 = vmul.f32 1.0, %v2084
      %v2086 = vrcp.pop %v2080
      %v2087 = vmul.f32 1.0, %v2086
      %v2088 = vrcp.pop %v2081
      %v2089 = vmul.f32 1.0, %v2088
      %v2090 = vadd.f32 %v1796, %v1959
      %v2091 = vadd.f32 %v1797, %v1964
      %v2092 = vadd.f32 %v1798, %v1969
      %v2093 = vadd.f32 %v1799, %v1974
      %v2094 = vxor.u32 %v2090, 2147483648
      %v2095 = vxor.u32 %v2091, 2147483648
      %v2096 = vxor.u32 %v2092, 2147483648
      %v2097 = vxor.u32 %v2093, 2147483648
      %v2098 = vmul.f32 %v2094, 1.442695
      %v2099 = vpow.pop %v2098
      %v2100 = vmul.f32 %v2095, 1.442695
      %v2101 = vpow.pop %v2100
      %v2102 = vmul.f32 %v2096, 1.442695
      %v2103 = vpow.pop %v2102
      %v2104 = vmul.f32 %v2097, 1.442695
      %v2105 = vpow.pop %v2104
      %v2106 = vadd.f32 %v2099, 1.0
      %v2107 = vadd.f32 %v2101, 1.0
      %v2108 = vadd.f32 %v2103, 1.0
      %v2109 = vadd.f32 %v2105, 1.0
      %v2110 = vrcp.pop %v2106
      %v2111 = vmul.f32 1.0, %v2110
      %v2112 = vrcp.pop %v2107
      %v2113 = vmul.f32 1.0, %v2112
      %v2114 = vrcp.pop %v2108
      %v2115 = vmul.f32 1.0, %v2114
      %v2116 = vrcp.pop %v2109
      %v2117 = vmul.f32 1.0, %v2116
      %v2118 = vmul.f32 %v2083, %v2044
      %v2119 = vmul.f32 %v2085, %v2049
      %v2120 = vmul.f32 %v2087, %v2054
      %v2121 = vmul.f32 %v2089, %v2059
      %v2122 = vadd.f32 %v1800, %v2118
      %v2123 = vadd.f32 %v1801, %v2119
      %v2124 = vadd.f32 %v1802, %v2120
      %v2125 = vadd.f32 %v1803, %v2121
      %v2126 = vtanh.pop %v2122
      %v2127 = vtanh.pop %v2123
      %v2128 = vtanh.pop %v2124
      %v2129 = vtanh.pop %v2125
      %v2130 = vsub.f32 1.0, %v2111
      %v2131 = vsub.f32 1.0, %v2113
      %v2132 = vsub.f32 1.0, %v2115
      %v2133 = vsub.f32 1.0, %v2117
      %v2134 = vmul.f32 %v2130, %v2126
      %v2135 = vmul.f32 %v2131, %v2127
      %v2136 = vmul.f32 %v2132, %v2128
      %v2137 = vmul.f32 %v2133, %v2129
      %v2138 = vmul.f32 %v2111, 0.0
      %v2139 = vmul.f32 %v2113, 0.0
      %v2140 = vmul.f32 %v2115, 0.0
      %v2141 = vmul.f32 %v2117, 0.0
      %v2142 = vadd.f32 %v2134, %v2138
      %v2143 = vadd.f32 %v2135, %v2139
      %v2144 = vadd.f32 %v2136, %v2140
      %v2145 = vadd.f32 %v2137, %v2141
      %s2146 = scalar_lea.vmem [#allocation2], 32
      %v2147 = vld [vmem:[%s2146] sm:$0xff]
      %v2148 = vld [vmem:[%s2146 + $0x8] sm:$0xff]
      %v2149 = vld [vmem:[%s2146 + $0x10] sm:$0xff]
      %v2150 = vld [vmem:[%s2146 + $0x18] sm:$0xff]
      %s2151 = scalar_lea.vmem [#allocation3], 32
      %v2152 = vld [vmem:[%s2151] sm:$0xff]
      %v2153 = vld [vmem:[%s2151 + $0x8] sm:$0xff]
      %v2154 = vld [vmem:[%s2151 + $0x10] sm:$0xff]
      %v2155 = vld [vmem:[%s2151 + $0x18] sm:$0xff]
      %s2156 = scalar_lea.vmem [#allocation4], 32
      %v2157 = vld [vmem:[%s2156] sm:$0xff]
      %v2158 = vld [vmem:[%s2156 + $0x8] sm:$0xff]
      %v2159 = vld [vmem:[%s2156 + $0x10] sm:$0xff]
      %v2160 = vld [vmem:[%s2156 + $0x18] sm:$0xff]
      %v2162 = vsel %vm873, %v2142, 0
      %v2165 = vsel %vm873, %v2143, 0
      %v2168 = vsel %vm873, %v2144, 0
      %v2171 = vsel %vm873, %v2145, 0
      %2173 = vmatprep.subr.mxu0 0.0
      %2174 = vmatpush1.msra.mxu0 0.0
      %2175 = vmatprep.subr.mxu0 0.0
      %2176 = vmatpush1.msra.mxu0 0.0
      %2177 = vmatprep.subr.mxu0 0.0
      %2178 = vmatpush1.msra.mxu0 0.0
      %2179 = vmatprep.subr.mxu0 0.0
      %2180 = vmatpush1.msra.mxu0 0.0
      %2181 = vmatprep.subr.mxu0 0.0
      %2182 = vmatpush1.msra.mxu0 0.0
      %2183 = vmatprep.subr.mxu0 0.0
      %2184 = vmatpush1.msra.mxu0 0.0
      %2185 = vmatprep.subr.mxu0 0.0
      %2186 = vmatpush1.msra.mxu0 0.0
      %2187 = vmatprep.subr.mxu0 0.0
      %2188 = vmatpush1.msra.mxu0 0.0
      %2189 = vmatprep.subr.mxu0 0.0
      %2190 = vmatpush1.msra.mxu0 0.0
      %2191 = vmatprep.subr.mxu0 0.0
      %2192 = vmatpush1.msra.mxu0 0.0
      %2193 = vmatprep.subr.mxu0 0.0
      %2194 = vmatpush1.msra.mxu0 0.0
      %2195 = vmatprep.subr.mxu0 0.0
      %2196 = vmatpush1.msra.mxu0 0.0
      %2197 = vmatprep.subr.mxu0 0.0
      %2198 = vmatpush1.msra.mxu0 %v1773
      %2199 = vmatprep.subr.mxu0 0.0
      %2200 = vmatpush1.msra.mxu0 %v1772
      %2201 = vmatprep.subr.mxu0 0.0
      %2202 = vmatpush1.msra.mxu0 %v1771
      %2203 = vmatprep.subr.mxu0 0.0
      %2204 = vmatpush1.msra.mxu0 %v1770
      %2205 = vmatprep.subr.mxu0 0.0
      %2206 = vmatpush2.msra.mxu0 0.0
      %2207 = vmatprep.subr.mxu0 0.0
      %2208 = vmatpush2.msra.mxu0 0.0
      %2209 = vmatprep.subr.mxu0 0.0
      %2210 = vmatpush2.msra.mxu0 0.0
      %2211 = vmatprep.subr.mxu0 0.0
      %2212 = vmatpush2.msra.mxu0 0.0
      %2213 = vmatprep.subr.mxu0 0.0
      %2214 = vmatpush2.msra.mxu0 0.0
      %2215 = vmatprep.subr.mxu0 0.0
      %2216 = vmatpush2.msra.mxu0 0.0
      %2217 = vmatprep.subr.mxu0 0.0
      %2218 = vmatpush2.msra.mxu0 0.0
      %2219 = vmatprep.subr.mxu0 0.0
      %2220 = vmatpush2.msra.mxu0 0.0
      %2221 = vmatprep.subr.mxu0 0.0
      %2222 = vmatpush2.msra.mxu0 0.0
      %2223 = vmatprep.subr.mxu0 0.0
      %2224 = vmatpush2.msra.mxu0 0.0
      %2225 = vmatprep.subr.mxu0 0.0
      %2226 = vmatpush2.msra.mxu0 0.0
      %2227 = vmatprep.subr.mxu0 0.0
      %2228 = vmatpush2.msra.mxu0 0.0
      %2229 = vmatprep.subr.mxu0 0.0
      %2230 = vmatpush2.msra.mxu0 0.0
      %2231 = vmatprep.subr.mxu0 0.0
      %2232 = vmatpush2.msra.mxu0 0.0
      %2233 = vmatprep.subr.mxu0 0.0
      %2234 = vmatpush2.msra.mxu0 0.0
      %2235 = vmatprep.subr.mxu0 0.0
      %2236 = vmatpush2.msra.mxu0 0.0
      %2237 = vmatprep.mubr.f32.mxu0 0.0
      %2238 = vmatmul.mubr.f32.gmra.mxu0 %v2162
      %v2239 = vpop.f32.mrf.mxu0
      %v2240 = vadd.f32 0.0, %v2239
      %v2241 = vpop.f32.mrf.mxu0
      %2242 = vmatprep.mubr.f32.mxu0 0.0
      %2243 = vmatmul.mubr.f32.gmra.mxu0 %v2165
      %v2244 = vpop.f32.mrf.mxu0
      %v2245 = vadd.f32 0.0, %v2244
      %v2246 = vpop.f32.mrf.mxu0
      %2247 = vmatprep.mubr.f32.mxu0 0.0
      %2248 = vmatmul.mubr.f32.gmra.mxu0 %v2168
      %v2249 = vpop.f32.mrf.mxu0
      %v2250 = vadd.f32 0.0, %v2249
      %v2251 = vpop.f32.mrf.mxu0
      %2252 = vmatprep.mubr.f32.mxu0 0.0
      %2253 = vmatmul.mubr.f32.gmra.mxu0 %v2171
      %v2254 = vpop.f32.mrf.mxu0
      %v2255 = vadd.f32 0.0, %v2254
      %v2256 = vpop.f32.mrf.mxu0
      %2257 = vdwg.mxu0
      %2258 = vmatprep.subr.mxu0 0.0
      %2259 = vmatpush1.msra.mxu0 0.0
      %2260 = vmatprep.subr.mxu0 0.0
      %2261 = vmatpush1.msra.mxu0 0.0
      %2262 = vmatprep.subr.mxu0 0.0
      %2263 = vmatpush1.msra.mxu0 0.0
      %2264 = vmatprep.subr.mxu0 0.0
      %2265 = vmatpush1.msra.mxu0 0.0
      %2266 = vmatprep.subr.mxu0 0.0
      %2267 = vmatpush1.msra.mxu0 0.0
      %2268 = vmatprep.subr.mxu0 0.0
      %2269 = vmatpush1.msra.mxu0 0.0
      %2270 = vmatprep.subr.mxu0 0.0
      %2271 = vmatpush1.msra.mxu0 0.0
      %2272 = vmatprep.subr.mxu0 0.0
      %2273 = vmatpush1.msra.mxu0 0.0
      %2274 = vmatprep.subr.mxu0 0.0
      %2275 = vmatpush1.msra.mxu0 0.0
      %2276 = vmatprep.subr.mxu0 0.0
      %2277 = vmatpush1.msra.mxu0 0.0
      %2278 = vmatprep.subr.mxu0 0.0
      %2279 = vmatpush1.msra.mxu0 0.0
      %2280 = vmatprep.subr.mxu0 0.0
      %2281 = vmatpush1.msra.mxu0 0.0
      %2282 = vmatprep.subr.mxu0 0.0
      %2283 = vmatpush1.msra.mxu0 %v1778
      %2284 = vmatprep.subr.mxu0 0.0
      %2285 = vmatpush1.msra.mxu0 %v1777
      %2286 = vmatprep.subr.mxu0 0.0
      %2287 = vmatpush1.msra.mxu0 %v1776
      %2288 = vmatprep.subr.mxu0 0.0
      %2289 = vmatpush1.msra.mxu0 %v1775
      %2290 = vmatprep.subr.mxu0 0.0
      %2291 = vmatpush2.msra.mxu0 0.0
      %2292 = vmatprep.subr.mxu0 0.0
      %2293 = vmatpush2.msra.mxu0 0.0
      %2294 = vmatprep.subr.mxu0 0.0
      %2295 = vmatpush2.msra.mxu0 0.0
      %2296 = vmatprep.subr.mxu0 0.0
      %2297 = vmatpush2.msra.mxu0 0.0
      %2298 = vmatprep.subr.mxu0 0.0
      %2299 = vmatpush2.msra.mxu0 0.0
      %2300 = vmatprep.subr.mxu0 0.0
      %2301 = vmatpush2.msra.mxu0 0.0
      %2302 = vmatprep.subr.mxu0 0.0
      %2303 = vmatpush2.msra.mxu0 0.0
      %2304 = vmatprep.subr.mxu0 0.0
      %2305 = vmatpush2.msra.mxu0 0.0
      %2306 = vmatprep.subr.mxu0 0.0
      %2307 = vmatpush2.msra.mxu0 0.0
      %2308 = vmatprep.subr.mxu0 0.0
      %2309 = vmatpush2.msra.mxu0 0.0
      %2310 = vmatprep.subr.mxu0 0.0
      %2311 = vmatpush2.msra.mxu0 0.0
      %2312 = vmatprep.subr.mxu0 0.0
      %2313 = vmatpush2.msra.mxu0 0.0
      %2314 = vmatprep.subr.mxu0 0.0
      %2315 = vmatpush2.msra.mxu0 0.0
      %2316 = vmatprep.subr.mxu0 0.0
      %2317 = vmatpush2.msra.mxu0 0.0
      %2318 = vmatprep.subr.mxu0 0.0
      %2319 = vmatpush2.msra.mxu0 0.0
      %2320 = vmatprep.subr.mxu0 0.0
      %2321 = vmatpush2.msra.mxu0 0.0
      %2322 = vmatprep.mubr.f32.mxu0 0.0
      %2323 = vmatmul.mubr.f32.gmra.mxu0 %v2162
      %v2324 = vpop.f32.mrf.mxu0
      %v2325 = vadd.f32 0.0, %v2324
      %v2326 = vpop.f32.mrf.mxu0
      %2327 = vmatprep.mubr.f32.mxu0 0.0
      %2328 = vmatmul.mubr.f32.gmra.mxu0 %v2165
      %v2329 = vpop.f32.mrf.mxu0
      %v2330 = vadd.f32 0.0, %v2329
      %v2331 = vpop.f32.mrf.mxu0
      %2332 = vmatprep.mubr.f32.mxu0 0.0
      %2333 = vmatmul.mubr.f32.gmra.mxu0 %v2168
      %v2334 = vpop.f32.mrf.mxu0
      %v2335 = vadd.f32 0.0, %v2334
      %v2336 = vpop.f32.mrf.mxu0
      %2337 = vmatprep.mubr.f32.mxu0 0.0
      %2338 = vmatmul.mubr.f32.gmra.mxu0 %v2171
      %v2339 = vpop.f32.mrf.mxu0
      %v2340 = vadd.f32 0.0, %v2339
      %v2341 = vpop.f32.mrf.mxu0
      %2342 = vdwg.mxu0
      %2343 = vmatprep.subr.mxu0 0.0
      %2344 = vmatpush1.msra.mxu0 0.0
      %2345 = vmatprep.subr.mxu0 0.0
      %2346 = vmatpush1.msra.mxu0 0.0
      %2347 = vmatprep.subr.mxu0 0.0
      %2348 = vmatpush1.msra.mxu0 0.0
      %2349 = vmatprep.subr.mxu0 0.0
      %2350 = vmatpush1.msra.mxu0 0.0
      %2351 = vmatprep.subr.mxu0 0.0
      %2352 = vmatpush1.msra.mxu0 0.0
      %2353 = vmatprep.subr.mxu0 0.0
      %2354 = vmatpush1.msra.mxu0 0.0
      %2355 = vmatprep.subr.mxu0 0.0
      %2356 = vmatpush1.msra.mxu0 0.0
      %2357 = vmatprep.subr.mxu0 0.0
      %2358 = vmatpush1.msra.mxu0 0.0
      %2359 = vmatprep.subr.mxu0 0.0
      %2360 = vmatpush1.msra.mxu0 0.0
      %2361 = vmatprep.subr.mxu0 0.0
      %2362 = vmatpush1.msra.mxu0 0.0
      %2363 = vmatprep.subr.mxu0 0.0
      %2364 = vmatpush1.msra.mxu0 0.0
      %2365 = vmatprep.subr.mxu0 0.0
      %2366 = vmatpush1.msra.mxu0 0.0
      %2367 = vmatprep.subr.mxu0 0.0
      %2368 = vmatpush1.msra.mxu0 %v1783
      %2369 = vmatprep.subr.mxu0 0.0
      %2370 = vmatpush1.msra.mxu0 %v1782
      %2371 = vmatprep.subr.mxu0 0.0
      %2372 = vmatpush1.msra.mxu0 %v1781
      %2373 = vmatprep.subr.mxu0 0.0
      %2374 = vmatpush1.msra.mxu0 %v1780
      %2375 = vmatprep.subr.mxu0 0.0
      %2376 = vmatpush2.msra.mxu0 0.0
      %2377 = vmatprep.subr.mxu0 0.0
      %2378 = vmatpush2.msra.mxu0 0.0
      %2379 = vmatprep.subr.mxu0 0.0
      %2380 = vmatpush2.msra.mxu0 0.0
      %2381 = vmatprep.subr.mxu0 0.0
      %2382 = vmatpush2.msra.mxu0 0.0
      %2383 = vmatprep.subr.mxu0 0.0
      %2384 = vmatpush2.msra.mxu0 0.0
      %2385 = vmatprep.subr.mxu0 0.0
      %2386 = vmatpush2.msra.mxu0 0.0
      %2387 = vmatprep.subr.mxu0 0.0
      %2388 = vmatpush2.msra.mxu0 0.0
      %2389 = vmatprep.subr.mxu0 0.0
      %2390 = vmatpush2.msra.mxu0 0.0
      %2391 = vmatprep.subr.mxu0 0.0
      %2392 = vmatpush2.msra.mxu0 0.0
      %2393 = vmatprep.subr.mxu0 0.0
      %2394 = vmatpush2.msra.mxu0 0.0
      %2395 = vmatprep.subr.mxu0 0.0
      %2396 = vmatpush2.msra.mxu0 0.0
      %2397 = vmatprep.subr.mxu0 0.0
      %2398 = vmatpush2.msra.mxu0 0.0
      %2399 = vmatprep.subr.mxu0 0.0
      %2400 = vmatpush2.msra.mxu0 0.0
      %2401 = vmatprep.subr.mxu0 0.0
      %2402 = vmatpush2.msra.mxu0 0.0
      %2403 = vmatprep.subr.mxu0 0.0
      %2404 = vmatpush2.msra.mxu0 0.0
      %2405 = vmatprep.subr.mxu0 0.0
      %2406 = vmatpush2.msra.mxu0 0.0
      %2407 = vmatprep.mubr.f32.mxu0 0.0
      %2408 = vmatmul.mubr.f32.gmra.mxu0 %v2162
      %v2409 = vpop.f32.mrf.mxu0
      %v2410 = vadd.f32 %v1790, %v2409
      %v2411 = vpop.f32.mrf.mxu0
      %2412 = vmatprep.mubr.f32.mxu0 0.0
      %2413 = vmatmul.mubr.f32.gmra.mxu0 %v2165
      %v2414 = vpop.f32.mrf.mxu0
      %v2415 = vadd.f32 %v1790, %v2414
      %v2416 = vpop.f32.mrf.mxu0
      %2417 = vmatprep.mubr.f32.mxu0 0.0
      %2418 = vmatmul.mubr.f32.gmra.mxu0 %v2168
      %v2419 = vpop.f32.mrf.mxu0
      %v2420 = vadd.f32 %v1790, %v2419
      %v2421 = vpop.f32.mrf.mxu0
      %2422 = vmatprep.mubr.f32.mxu0 0.0
      %2423 = vmatmul.mubr.f32.gmra.mxu0 %v2171
      %v2424 = vpop.f32.mrf.mxu0
      %v2425 = vadd.f32 %v1790, %v2424
      %v2426 = vpop.f32.mrf.mxu0
      %2427 = vdwg.mxu0
      %v2428 = vadd.f32 %v2147, %v2240
      %v2429 = vadd.f32 %v2148, %v2245
      %v2430 = vadd.f32 %v2149, %v2250
      %v2431 = vadd.f32 %v2150, %v2255
      %v2432 = vxor.u32 %v2428, 2147483648
      %v2433 = vxor.u32 %v2429, 2147483648
      %v2434 = vxor.u32 %v2430, 2147483648
      %v2435 = vxor.u32 %v2431, 2147483648
      %v2436 = vmul.f32 %v2432, 1.442695
      %v2437 = vpow.pop %v2436
      %v2438 = vmul.f32 %v2433, 1.442695
      %v2439 = vpow.pop %v2438
      %v2440 = vmul.f32 %v2434, 1.442695
      %v2441 = vpow.pop %v2440
      %v2442 = vmul.f32 %v2435, 1.442695
      %v2443 = vpow.pop %v2442
      %v2444 = vadd.f32 %v2437, 1.0
      %v2445 = vadd.f32 %v2439, 1.0
      %v2446 = vadd.f32 %v2441, 1.0
      %v2447 = vadd.f32 %v2443, 1.0
      %v2448 = vrcp.pop %v2444
      %v2449 = vmul.f32 1.0, %v2448
      %v2450 = vrcp.pop %v2445
      %v2451 = vmul.f32 1.0, %v2450
      %v2452 = vrcp.pop %v2446
      %v2453 = vmul.f32 1.0, %v2452
      %v2454 = vrcp.pop %v2447
      %v2455 = vmul.f32 1.0, %v2454
      %v2456 = vadd.f32 %v2152, %v2325
      %v2457 = vadd.f32 %v2153, %v2330
      %v2458 = vadd.f32 %v2154, %v2335
      %v2459 = vadd.f32 %v2155, %v2340
      %v2460 = vxor.u32 %v2456, 2147483648
      %v2461 = vxor.u32 %v2457, 2147483648
      %v2462 = vxor.u32 %v2458, 2147483648
      %v2463 = vxor.u32 %v2459, 2147483648
      %v2464 = vmul.f32 %v2460, 1.442695
      %v2465 = vpow.pop %v2464
      %v2466 = vmul.f32 %v2461, 1.442695
      %v2467 = vpow.pop %v2466
      %v2468 = vmul.f32 %v2462, 1.442695
      %v2469 = vpow.pop %v2468
      %v2470 = vmul.f32 %v2463, 1.442695
      %v2471 = vpow.pop %v2470
      %v2472 = vadd.f32 %v2465, 1.0
      %v2473 = vadd.f32 %v2467, 1.0
      %v2474 = vadd.f32 %v2469, 1.0
      %v2475 = vadd.f32 %v2471, 1.0
      %v2476 = vrcp.pop %v2472
      %v2477 = vmul.f32 1.0, %v2476
      %v2478 = vrcp.pop %v2473
      %v2479 = vmul.f32 1.0, %v2478
      %v2480 = vrcp.pop %v2474
      %v2481 = vmul.f32 1.0, %v2480
      %v2482 = vrcp.pop %v2475
      %v2483 = vmul.f32 1.0, %v2482
      %v2484 = vmul.f32 %v2449, %v2410
      %v2485 = vmul.f32 %v2451, %v2415
      %v2486 = vmul.f32 %v2453, %v2420
      %v2487 = vmul.f32 %v2455, %v2425
      %v2488 = vadd.f32 %v2157, %v2484
      %v2489 = vadd.f32 %v2158, %v2485
      %v2490 = vadd.f32 %v2159, %v2486
      %v2491 = vadd.f32 %v2160, %v2487
      %v2492 = vtanh.pop %v2488
      %v2493 = vtanh.pop %v2489
      %v2494 = vtanh.pop %v2490
      %v2495 = vtanh.pop %v2491
      %v2496 = vsub.f32 1.0, %v2477
      %v2497 = vsub.f32 1.0, %v2479
      %v2498 = vsub.f32 1.0, %v2481
      %v2499 = vsub.f32 1.0, %v2483
      %v2500 = vmul.f32 %v2496, %v2492
      %v2501 = vmul.f32 %v2497, %v2493
      %v2502 = vmul.f32 %v2498, %v2494
      %v2503 = vmul.f32 %v2499, %v2495
      %v2504 = vmul.f32 %v2477, %v2142
      %v2505 = vmul.f32 %v2479, %v2143
      %v2506 = vmul.f32 %v2481, %v2144
      %v2507 = vmul.f32 %v2483, %v2145
      %v2508 = vadd.f32 %v2500, %v2504
      %v2509 = vadd.f32 %v2501, %v2505
      %v2510 = vadd.f32 %v2502, %v2506
      %v2511 = vadd.f32 %v2503, %v2507
      %s2512 = scalar_lea.vmem [#allocation2], 64
      %v2513 = vld [vmem:[%s2512] sm:$0xff]
      %v2514 = vld [vmem:[%s2512 + $0x8] sm:$0xff]
      %v2515 = vld [vmem:[%s2512 + $0x10] sm:$0xff]
      %v2516 = vld [vmem:[%s2512 + $0x18] sm:$0xff]
      %s2517 = scalar_lea.vmem [#allocation3], 64
      %v2518 = vld [vmem:[%s2517] sm:$0xff]
      %v2519 = vld [vmem:[%s2517 + $0x8] sm:$0xff]
      %v2520 = vld [vmem:[%s2517 + $0x10] sm:$0xff]
      %v2521 = vld [vmem:[%s2517 + $0x18] sm:$0xff]
      %s2522 = scalar_lea.vmem [#allocation4], 64
      %v2523 = vld [vmem:[%s2522] sm:$0xff]
      %v2524 = vld [vmem:[%s2522 + $0x8] sm:$0xff]
      %v2525 = vld [vmem:[%s2522 + $0x10] sm:$0xff]
      %v2526 = vld [vmem:[%s2522 + $0x18] sm:$0xff]
      %v2528 = vsel %vm873, %v2508, 0
      %v2531 = vsel %vm873, %v2509, 0
      %v2534 = vsel %vm873, %v2510, 0
      %v2537 = vsel %vm873, %v2511, 0
      %2539 = vmatprep.subr.mxu0 0.0
      %2540 = vmatpush1.msra.mxu0 0.0
      %2541 = vmatprep.subr.mxu0 0.0
      %2542 = vmatpush1.msra.mxu0 0.0
      %2543 = vmatprep.subr.mxu0 0.0
      %2544 = vmatpush1.msra.mxu0 0.0
      %2545 = vmatprep.subr.mxu0 0.0
      %2546 = vmatpush1.msra.mxu0 0.0
      %2547 = vmatprep.subr.mxu0 0.0
      %2548 = vmatpush1.msra.mxu0 0.0
      %2549 = vmatprep.subr.mxu0 0.0
      %2550 = vmatpush1.msra.mxu0 0.0
      %2551 = vmatprep.subr.mxu0 0.0
      %2552 = vmatpush1.msra.mxu0 0.0
      %2553 = vmatprep.subr.mxu0 0.0
      %2554 = vmatpush1.msra.mxu0 0.0
      %2555 = vmatprep.subr.mxu0 0.0
      %2556 = vmatpush1.msra.mxu0 0.0
      %2557 = vmatprep.subr.mxu0 0.0
      %2558 = vmatpush1.msra.mxu0 0.0
      %2559 = vmatprep.subr.mxu0 0.0
      %2560 = vmatpush1.msra.mxu0 0.0
      %2561 = vmatprep.subr.mxu0 0.0
      %2562 = vmatpush1.msra.mxu0 0.0
      %2563 = vmatprep.subr.mxu0 0.0
      %2564 = vmatpush1.msra.mxu0 %v1773
      %2565 = vmatprep.subr.mxu0 0.0
      %2566 = vmatpush1.msra.mxu0 %v1772
      %2567 = vmatprep.subr.mxu0 0.0
      %2568 = vmatpush1.msra.mxu0 %v1771
      %2569 = vmatprep.subr.mxu0 0.0
      %2570 = vmatpush1.msra.mxu0 %v1770
      %2571 = vmatprep.subr.mxu0 0.0
      %2572 = vmatpush2.msra.mxu0 0.0
      %2573 = vmatprep.subr.mxu0 0.0
      %2574 = vmatpush2.msra.mxu0 0.0
      %2575 = vmatprep.subr.mxu0 0.0
      %2576 = vmatpush2.msra.mxu0 0.0
      %2577 = vmatprep.subr.mxu0 0.0
      %2578 = vmatpush2.msra.mxu0 0.0
      %2579 = vmatprep.subr.mxu0 0.0
      %2580 = vmatpush2.msra.mxu0 0.0
      %2581 = vmatprep.subr.mxu0 0.0
      %2582 = vmatpush2.msra.mxu0 0.0
      %2583 = vmatprep.subr.mxu0 0.0
      %2584 = vmatpush2.msra.mxu0 0.0
      %2585 = vmatprep.subr.mxu0 0.0
      %2586 = vmatpush2.msra.mxu0 0.0
      %2587 = vmatprep.subr.mxu0 0.0
      %2588 = vmatpush2.msra.mxu0 0.0
      %2589 = vmatprep.subr.mxu0 0.0
      %2590 = vmatpush2.msra.mxu0 0.0
      %2591 = vmatprep.subr.mxu0 0.0
      %2592 = vmatpush2.msra.mxu0 0.0
      %2593 = vmatprep.subr.mxu0 0.0
      %2594 = vmatpush2.msra.mxu0 0.0
      %2595 = vmatprep.subr.mxu0 0.0
      %2596 = vmatpush2.msra.mxu0 0.0
      %2597 = vmatprep.subr.mxu0 0.0
      %2598 = vmatpush2.msra.mxu0 0.0
      %2599 = vmatprep.subr.mxu0 0.0
      %2600 = vmatpush2.msra.mxu0 0.0
      %2601 = vmatprep.subr.mxu0 0.0
      %2602 = vmatpush2.msra.mxu0 0.0
      %2603 = vmatprep.mubr.f32.mxu0 0.0
      %2604 = vmatmul.mubr.f32.gmra.mxu0 %v2528
      %v2605 = vpop.f32.mrf.mxu0
      %v2606 = vadd.f32 0.0, %v2605
      %v2607 = vpop.f32.mrf.mxu0
      %2608 = vmatprep.mubr.f32.mxu0 0.0
      %2609 = vmatmul.mubr.f32.gmra.mxu0 %v2531
      %v2610 = vpop.f32.mrf.mxu0
      %v2611 = vadd.f32 0.0, %v2610
      %v2612 = vpop.f32.mrf.mxu0
      %2613 = vmatprep.mubr.f32.mxu0 0.0
      %2614 = vmatmul.mubr.f32.gmra.mxu0 %v2534
      %v2615 = vpop.f32.mrf.mxu0
      %v2616 = vadd.f32 0.0, %v2615
      %v2617 = vpop.f32.mrf.mxu0
      %2618 = vmatprep.mubr.f32.mxu0 0.0
      %2619 = vmatmul.mubr.f32.gmra.mxu0 %v2537
      %v2620 = vpop.f32.mrf.mxu0
      %v2621 = vadd.f32 0.0, %v2620
      %v2622 = vpop.f32.mrf.mxu0
      %2623 = vdwg.mxu0
      %2624 = vmatprep.subr.mxu0 0.0
      %2625 = vmatpush1.msra.mxu0 0.0
      %2626 = vmatprep.subr.mxu0 0.0
      %2627 = vmatpush1.msra.mxu0 0.0
      %2628 = vmatprep.subr.mxu0 0.0
      %2629 = vmatpush1.msra.mxu0 0.0
      %2630 = vmatprep.subr.mxu0 0.0
      %2631 = vmatpush1.msra.mxu0 0.0
      %2632 = vmatprep.subr.mxu0 0.0
      %2633 = vmatpush1.msra.mxu0 0.0
      %2634 = vmatprep.subr.mxu0 0.0
      %2635 = vmatpush1.msra.mxu0 0.0
      %2636 = vmatprep.subr.mxu0 0.0
      %2637 = vmatpush1.msra.mxu0 0.0
      %2638 = vmatprep.subr.mxu0 0.0
      %2639 = vmatpush1.msra.mxu0 0.0
      %2640 = vmatprep.subr.mxu0 0.0
      %2641 = vmatpush1.msra.mxu0 0.0
      %2642 = vmatprep.subr.mxu0 0.0
      %2643 = vmatpush1.msra.mxu0 0.0
      %2644 = vmatprep.subr.mxu0 0.0
      %2645 = vmatpush1.msra.mxu0 0.0
      %2646 = vmatprep.subr.mxu0 0.0
      %2647 = vmatpush1.msra.mxu0 0.0
      %2648 = vmatprep.subr.mxu0 0.0
      %2649 = vmatpush1.msra.mxu0 %v1778
      %2650 = vmatprep.subr.mxu0 0.0
      %2651 = vmatpush1.msra.mxu0 %v1777
      %2652 = vmatprep.subr.mxu0 0.0
      %2653 = vmatpush1.msra.mxu0 %v1776
      %2654 = vmatprep.subr.mxu0 0.0
      %2655 = vmatpush1.msra.mxu0 %v1775
      %2656 = vmatprep.subr.mxu0 0.0
      %2657 = vmatpush2.msra.mxu0 0.0
      %2658 = vmatprep.subr.mxu0 0.0
      %2659 = vmatpush2.msra.mxu0 0.0
      %2660 = vmatprep.subr.mxu0 0.0
      %2661 = vmatpush2.msra.mxu0 0.0
      %2662 = vmatprep.subr.mxu0 0.0
      %2663 = vmatpush2.msra.mxu0 0.0
      %2664 = vmatprep.subr.mxu0 0.0
      %2665 = vmatpush2.msra.mxu0 0.0
      %2666 = vmatprep.subr.mxu0 0.0
      %2667 = vmatpush2.msra.mxu0 0.0
      %2668 = vmatprep.subr.mxu0 0.0
      %2669 = vmatpush2.msra.mxu0 0.0
      %2670 = vmatprep.subr.mxu0 0.0
      %2671 = vmatpush2.msra.mxu0 0.0
      %2672 = vmatprep.subr.mxu0 0.0
      %2673 = vmatpush2.msra.mxu0 0.0
      %2674 = vmatprep.subr.mxu0 0.0
      %2675 = vmatpush2.msra.mxu0 0.0
      %2676 = vmatprep.subr.mxu0 0.0
      %2677 = vmatpush2.msra.mxu0 0.0
      %2678 = vmatprep.subr.mxu0 0.0
      %2679 = vmatpush2.msra.mxu0 0.0
      %2680 = vmatprep.subr.mxu0 0.0
      %2681 = vmatpush2.msra.mxu0 0.0
      %2682 = vmatprep.subr.mxu0 0.0
      %2683 = vmatpush2.msra.mxu0 0.0
      %2684 = vmatprep.subr.mxu0 0.0
      %2685 = vmatpush2.msra.mxu0 0.0
      %2686 = vmatprep.subr.mxu0 0.0
      %2687 = vmatpush2.msra.mxu0 0.0
      %2688 = vmatprep.mubr.f32.mxu0 0.0
      %2689 = vmatmul.mubr.f32.gmra.mxu0 %v2528
      %v2690 = vpop.f32.mrf.mxu0
      %v2691 = vadd.f32 0.0, %v2690
      %v2692 = vpop.f32.mrf.mxu0
      %2693 = vmatprep.mubr.f32.mxu0 0.0
      %2694 = vmatmul.mubr.f32.gmra.mxu0 %v2531
      %v2695 = vpop.f32.mrf.mxu0
      %v2696 = vadd.f32 0.0, %v2695
      %v2697 = vpop.f32.mrf.mxu0
      %2698 = vmatprep.mubr.f32.mxu0 0.0
      %2699 = vmatmul.mubr.f32.gmra.mxu0 %v2534
      %v2700 = vpop.f32.mrf.mxu0
      %v2701 = vadd.f32 0.0, %v2700
      %v2702 = vpop.f32.mrf.mxu0
      %2703 = vmatprep.mubr.f32.mxu0 0.0
      %2704 = vmatmul.mubr.f32.gmra.mxu0 %v2537
      %v2705 = vpop.f32.mrf.mxu0
      %v2706 = vadd.f32 0.0, %v2705
      %v2707 = vpop.f32.mrf.mxu0
      %2708 = vdwg.mxu0
      %2709 = vmatprep.subr.mxu0 0.0
      %2710 = vmatpush1.msra.mxu0 0.0
      %2711 = vmatprep.subr.mxu0 0.0
      %2712 = vmatpush1.msra.mxu0 0.0
      %2713 = vmatprep.subr.mxu0 0.0
      %2714 = vmatpush1.msra.mxu0 0.0
      %2715 = vmatprep.subr.mxu0 0.0
      %2716 = vmatpush1.msra.mxu0 0.0
      %2717 = vmatprep.subr.mxu0 0.0
      %2718 = vmatpush1.msra.mxu0 0.0
      %2719 = vmatprep.subr.mxu0 0.0
      %2720 = vmatpush1.msra.mxu0 0.0
      %2721 = vmatprep.subr.mxu0 0.0
      %2722 = vmatpush1.msra.mxu0 0.0
      %2723 = vmatprep.subr.mxu0 0.0
      %2724 = vmatpush1.msra.mxu0 0.0
      %2725 = vmatprep.subr.mxu0 0.0
      %2726 = vmatpush1.msra.mxu0 0.0
      %2727 = vmatprep.subr.mxu0 0.0
      %2728 = vmatpush1.msra.mxu0 0.0
      %2729 = vmatprep.subr.mxu0 0.0
      %2730 = vmatpush1.msra.mxu0 0.0
      %2731 = vmatprep.subr.mxu0 0.0
      %2732 = vmatpush1.msra.mxu0 0.0
      %2733 = vmatprep.subr.mxu0 0.0
      %2734 = vmatpush1.msra.mxu0 %v1783
      %2735 = vmatprep.subr.mxu0 0.0
      %2736 = vmatpush1.msra.mxu0 %v1782
      %2737 = vmatprep.subr.mxu0 0.0
      %2738 = vmatpush1.msra.mxu0 %v1781
      %2739 = vmatprep.subr.mxu0 0.0
      %2740 = vmatpush1.msra.mxu0 %v1780
      %2741 = vmatprep.subr.mxu0 0.0
      %2742 = vmatpush2.msra.mxu0 0.0
      %2743 = vmatprep.subr.mxu0 0.0
      %2744 = vmatpush2.msra.mxu0 0.0
      %2745 = vmatprep.subr.mxu0 0.0
      %2746 = vmatpush2.msra.mxu0 0.0
      %2747 = vmatprep.subr.mxu0 0.0
      %2748 = vmatpush2.msra.mxu0 0.0
      %2749 = vmatprep.subr.mxu0 0.0
      %2750 = vmatpush2.msra.mxu0 0.0
      %2751 = vmatprep.subr.mxu0 0.0
      %2752 = vmatpush2.msra.mxu0 0.0
      %2753 = vmatprep.subr.mxu0 0.0
      %2754 = vmatpush2.msra.mxu0 0.0
      %2755 = vmatprep.subr.mxu0 0.0
      %2756 = vmatpush2.msra.mxu0 0.0
      %2757 = vmatprep.subr.mxu0 0.0
      %2758 = vmatpush2.msra.mxu0 0.0
      %2759 = vmatprep.subr.mxu0 0.0
      %2760 = vmatpush2.msra.mxu0 0.0
      %2761 = vmatprep.subr.mxu0 0.0
      %2762 = vmatpush2.msra.mxu0 0.0
      %2763 = vmatprep.subr.mxu0 0.0
      %2764 = vmatpush2.msra.mxu0 0.0
      %2765 = vmatprep.subr.mxu0 0.0
      %2766 = vmatpush2.msra.mxu0 0.0
      %2767 = vmatprep.subr.mxu0 0.0
      %2768 = vmatpush2.msra.mxu0 0.0
      %2769 = vmatprep.subr.mxu0 0.0
      %2770 = vmatpush2.msra.mxu0 0.0
      %2771 = vmatprep.subr.mxu0 0.0
      %2772 = vmatpush2.msra.mxu0 0.0
      %2773 = vmatprep.mubr.f32.mxu0 0.0
      %2774 = vmatmul.mubr.f32.gmra.mxu0 %v2528
      %v2775 = vpop.f32.mrf.mxu0
      %v2776 = vadd.f32 %v1790, %v2775
      %v2777 = vpop.f32.mrf.mxu0
      %2778 = vmatprep.mubr.f32.mxu0 0.0
      %2779 = vmatmul.mubr.f32.gmra.mxu0 %v2531
      %v2780 = vpop.f32.mrf.mxu0
      %v2781 = vadd.f32 %v1790, %v2780
      %v2782 = vpop.f32.mrf.mxu0
      %2783 = vmatprep.mubr.f32.mxu0 0.0
      %2784 = vmatmul.mubr.f32.gmra.mxu0 %v2534
      %v2785 = vpop.f32.mrf.mxu0
      %v2786 = vadd.f32 %v1790, %v2785
      %v2787 = vpop.f32.mrf.mxu0
      %2788 = vmatprep.mubr.f32.mxu0 0.0
      %2789 = vmatmul.mubr.f32.gmra.mxu0 %v2537
      %v2790 = vpop.f32.mrf.mxu0
      %v2791 = vadd.f32 %v1790, %v2790
      %v2792 = vpop.f32.mrf.mxu0
      %2793 = vdwg.mxu0
      %v2794 = vadd.f32 %v2513, %v2606
      %v2795 = vadd.f32 %v2514, %v2611
      %v2796 = vadd.f32 %v2515, %v2616
      %v2797 = vadd.f32 %v2516, %v2621
      %v2798 = vxor.u32 %v2794, 2147483648
      %v2799 = vxor.u32 %v2795, 2147483648
      %v2800 = vxor.u32 %v2796, 2147483648
      %v2801 = vxor.u32 %v2797, 2147483648
      %v2802 = vmul.f32 %v2798, 1.442695
      %v2803 = vpow.pop %v2802
      %v2804 = vmul.f32 %v2799, 1.442695
      %v2805 = vpow.pop %v2804
      %v2806 = vmul.f32 %v2800, 1.442695
      %v2807 = vpow.pop %v2806
      %v2808 = vmul.f32 %v2801, 1.442695
      %v2809 = vpow.pop %v2808
      %v2810 = vadd.f32 %v2803, 1.0
      %v2811 = vadd.f32 %v2805, 1.0
      %v2812 = vadd.f32 %v2807, 1.0
      %v2813 = vadd.f32 %v2809, 1.0
      %v2814 = vrcp.pop %v2810
      %v2815 = vmul.f32 1.0, %v2814
      %v2816 = vrcp.pop %v2811
      %v2817 = vmul.f32 1.0, %v2816
      %v2818 = vrcp.pop %v2812
      %v2819 = vmul.f32 1.0, %v2818
      %v2820 = vrcp.pop %v2813
      %v2821 = vmul.f32 1.0, %v2820
      %v2822 = vadd.f32 %v2518, %v2691
      %v2823 = vadd.f32 %v2519, %v2696
      %v2824 = vadd.f32 %v2520, %v2701
      %v2825 = vadd.f32 %v2521, %v2706
      %v2826 = vxor.u32 %v2822, 2147483648
      %v2827 = vxor.u32 %v2823, 2147483648
      %v2828 = vxor.u32 %v2824, 2147483648
      %v2829 = vxor.u32 %v2825, 2147483648
      %v2830 = vmul.f32 %v2826, 1.442695
      %v2831 = vpow.pop %v2830
      %v2832 = vmul.f32 %v2827, 1.442695
      %v2833 = vpow.pop %v2832
      %v2834 = vmul.f32 %v2828, 1.442695
      %v2835 = vpow.pop %v2834
      %v2836 = vmul.f32 %v2829, 1.442695
      %v2837 = vpow.pop %v2836
      %v2838 = vadd.f32 %v2831, 1.0
      %v2839 = vadd.f32 %v2833, 1.0
      %v2840 = vadd.f32 %v2835, 1.0
      %v2841 = vadd.f32 %v2837, 1.0
      %v2842 = vrcp.pop %v2838
      %v2843 = vmul.f32 1.0, %v2842
      %v2844 = vrcp.pop %v2839
      %v2845 = vmul.f32 1.0, %v2844
      %v2846 = vrcp.pop %v2840
      %v2847 = vmul.f32 1.0, %v2846
      %v2848 = vrcp.pop %v2841
      %v2849 = vmul.f32 1.0, %v2848
      %v2850 = vmul.f32 %v2815, %v2776
      %v2851 = vmul.f32 %v2817, %v2781
      %v2852 = vmul.f32 %v2819, %v2786
      %v2853 = vmul.f32 %v2821, %v2791
      %v2854 = vadd.f32 %v2523, %v2850
      %v2855 = vadd.f32 %v2524, %v2851
      %v2856 = vadd.f32 %v2525, %v2852
      %v2857 = vadd.f32 %v2526, %v2853
      %v2858 = vtanh.pop %v2854
      %v2859 = vtanh.pop %v2855
      %v2860 = vtanh.pop %v2856
      %v2861 = vtanh.pop %v2857
      %v2862 = vsub.f32 1.0, %v2843
      %v2863 = vsub.f32 1.0, %v2845
      %v2864 = vsub.f32 1.0, %v2847
      %v2865 = vsub.f32 1.0, %v2849
      %v2866 = vmul.f32 %v2862, %v2858
      %v2867 = vmul.f32 %v2863, %v2859
      %v2868 = vmul.f32 %v2864, %v2860
      %v2869 = vmul.f32 %v2865, %v2861
      %v2870 = vmul.f32 %v2843, %v2508
      %v2871 = vmul.f32 %v2845, %v2509
      %v2872 = vmul.f32 %v2847, %v2510
      %v2873 = vmul.f32 %v2849, %v2511
      %v2874 = vadd.f32 %v2866, %v2870
      %v2875 = vadd.f32 %v2867, %v2871
      %v2876 = vadd.f32 %v2868, %v2872
      %v2877 = vadd.f32 %v2869, %v2873
      %s2878 = scalar_lea.vmem [#allocation2], 96
      %v2879 = vld [vmem:[%s2878] sm:$0xff]
      %v2880 = vld [vmem:[%s2878 + $0x8] sm:$0xff]
      %v2881 = vld [vmem:[%s2878 + $0x10] sm:$0xff]
      %v2882 = vld [vmem:[%s2878 + $0x18] sm:$0xff]
      %s2883 = scalar_lea.vmem [#allocation3], 96
      %v2884 = vld [vmem:[%s2883] sm:$0xff]
      %v2885 = vld [vmem:[%s2883 + $0x8] sm:$0xff]
      %v2886 = vld [vmem:[%s2883 + $0x10] sm:$0xff]
      %v2887 = vld [vmem:[%s2883 + $0x18] sm:$0xff]
      %s2888 = scalar_lea.vmem [#allocation4], 96
      %v2889 = vld [vmem:[%s2888] sm:$0xff]
      %v2890 = vld [vmem:[%s2888 + $0x8] sm:$0xff]
      %v2891 = vld [vmem:[%s2888 + $0x10] sm:$0xff]
      %v2892 = vld [vmem:[%s2888 + $0x18] sm:$0xff]
      %v2894 = vsel %vm873, %v2874, 0
      %v2897 = vsel %vm873, %v2875, 0
      %v2900 = vsel %vm873, %v2876, 0
      %v2903 = vsel %vm873, %v2877, 0
      %2905 = vmatprep.subr.mxu0 0.0
      %2906 = vmatpush1.msra.mxu0 0.0
      %2907 = vmatprep.subr.mxu0 0.0
      %2908 = vmatpush1.msra.mxu0 0.0
      %2909 = vmatprep.subr.mxu0 0.0
      %2910 = vmatpush1.msra.mxu0 0.0
      %2911 = vmatprep.subr.mxu0 0.0
      %2912 = vmatpush1.msra.mxu0 0.0
      %2913 = vmatprep.subr.mxu0 0.0
      %2914 = vmatpush1.msra.mxu0 0.0
      %2915 = vmatprep.subr.mxu0 0.0
      %2916 = vmatpush1.msra.mxu0 0.0
      %2917 = vmatprep.subr.mxu0 0.0
      %2918 = vmatpush1.msra.mxu0 0.0
      %2919 = vmatprep.subr.mxu0 0.0
      %2920 = vmatpush1.msra.mxu0 0.0
      %2921 = vmatprep.subr.mxu0 0.0
      %2922 = vmatpush1.msra.mxu0 0.0
      %2923 = vmatprep.subr.mxu0 0.0
      %2924 = vmatpush1.msra.mxu0 0.0
      %2925 = vmatprep.subr.mxu0 0.0
      %2926 = vmatpush1.msra.mxu0 0.0
      %2927 = vmatprep.subr.mxu0 0.0
      %2928 = vmatpush1.msra.mxu0 0.0
      %2929 = vmatprep.subr.mxu0 0.0
      %2930 = vmatpush1.msra.mxu0 %v1773
      %2931 = vmatprep.subr.mxu0 0.0
      %2932 = vmatpush1.msra.mxu0 %v1772
      %2933 = vmatprep.subr.mxu0 0.0
      %2934 = vmatpush1.msra.mxu0 %v1771
      %2935 = vmatprep.subr.mxu0 0.0
      %2936 = vmatpush1.msra.mxu0 %v1770
      %2937 = vmatprep.subr.mxu0 0.0
      %2938 = vmatpush2.msra.mxu0 0.0
      %2939 = vmatprep.subr.mxu0 0.0
      %2940 = vmatpush2.msra.mxu0 0.0
      %2941 = vmatprep.subr.mxu0 0.0
      %2942 = vmatpush2.msra.mxu0 0.0
      %2943 = vmatprep.subr.mxu0 0.0
      %2944 = vmatpush2.msra.mxu0 0.0
      %2945 = vmatprep.subr.mxu0 0.0
      %2946 = vmatpush2.msra.mxu0 0.0
      %2947 = vmatprep.subr.mxu0 0.0
      %2948 = vmatpush2.msra.mxu0 0.0
      %2949 = vmatprep.subr.mxu0 0.0
      %2950 = vmatpush2.msra.mxu0 0.0
      %2951 = vmatprep.subr.mxu0 0.0
      %2952 = vmatpush2.msra.mxu0 0.0
      %2953 = vmatprep.subr.mxu0 0.0
      %2954 = vmatpush2.msra.mxu0 0.0
      %2955 = vmatprep.subr.mxu0 0.0
      %2956 = vmatpush2.msra.mxu0 0.0
      %2957 = vmatprep.subr.mxu0 0.0
      %2958 = vmatpush2.msra.mxu0 0.0
      %2959 = vmatprep.subr.mxu0 0.0
      %2960 = vmatpush2.msra.mxu0 0.0
      %2961 = vmatprep.subr.mxu0 0.0
      %2962 = vmatpush2.msra.mxu0 0.0
      %2963 = vmatprep.subr.mxu0 0.0
      %2964 = vmatpush2.msra.mxu0 0.0
      %2965 = vmatprep.subr.mxu0 0.0
      %2966 = vmatpush2.msra.mxu0 0.0
      %2967 = vmatprep.subr.mxu0 0.0
      %2968 = vmatpush2.msra.mxu0 0.0
      %2969 = vmatprep.mubr.f32.mxu0 0.0
      %2970 = vmatmul.mubr.f32.gmra.mxu0 %v2894
      %v2971 = vpop.f32.mrf.mxu0
      %v2972 = vadd.f32 0.0, %v2971
      %v2973 = vpop.f32.mrf.mxu0
      %2974 = vmatprep.mubr.f32.mxu0 0.0
      %2975 = vmatmul.mubr.f32.gmra.mxu0 %v2897
      %v2976 = vpop.f32.mrf.mxu0
      %v2977 = vadd.f32 0.0, %v2976
      %v2978 = vpop.f32.mrf.mxu0
      %2979 = vmatprep.mubr.f32.mxu0 0.0
      %2980 = vmatmul.mubr.f32.gmra.mxu0 %v2900
      %v2981 = vpop.f32.mrf.mxu0
      %v2982 = vadd.f32 0.0, %v2981
      %v2983 = vpop.f32.mrf.mxu0
      %2984 = vmatprep.mubr.f32.mxu0 0.0
      %2985 = vmatmul.mubr.f32.gmra.mxu0 %v2903
      %v2986 = vpop.f32.mrf.mxu0
      %v2987 = vadd.f32 0.0, %v2986
      %v2988 = vpop.f32.mrf.mxu0
      %2989 = vdwg.mxu0
      %2990 = vmatprep.subr.mxu0 0.0
      %2991 = vmatpush1.msra.mxu0 0.0
      %2992 = vmatprep.subr.mxu0 0.0
      %2993 = vmatpush1.msra.mxu0 0.0
      %2994 = vmatprep.subr.mxu0 0.0
      %2995 = vmatpush1.msra.mxu0 0.0
      %2996 = vmatprep.subr.mxu0 0.0
      %2997 = vmatpush1.msra.mxu0 0.0
      %2998 = vmatprep.subr.mxu0 0.0
      %2999 = vmatpush1.msra.mxu0 0.0
      %3000 = vmatprep.subr.mxu0 0.0
      %3001 = vmatpush1.msra.mxu0 0.0
      %3002 = vmatprep.subr.mxu0 0.0
      %3003 = vmatpush1.msra.mxu0 0.0
      %3004 = vmatprep.subr.mxu0 0.0
      %3005 = vmatpush1.msra.mxu0 0.0
      %3006 = vmatprep.subr.mxu0 0.0
      %3007 = vmatpush1.msra.mxu0 0.0
      %3008 = vmatprep.subr.mxu0 0.0
      %3009 = vmatpush1.msra.mxu0 0.0
      %3010 = vmatprep.subr.mxu0 0.0
      %3011 = vmatpush1.msra.mxu0 0.0
      %3012 = vmatprep.subr.mxu0 0.0
      %3013 = vmatpush1.msra.mxu0 0.0
      %3014 = vmatprep.subr.mxu0 0.0
      %3015 = vmatpush1.msra.mxu0 %v1778
      %3016 = vmatprep.subr.mxu0 0.0
      %3017 = vmatpush1.msra.mxu0 %v1777
      %3018 = vmatprep.subr.mxu0 0.0
      %3019 = vmatpush1.msra.mxu0 %v1776
      %3020 = vmatprep.subr.mxu0 0.0
      %3021 = vmatpush1.msra.mxu0 %v1775
      %3022 = vmatprep.subr.mxu0 0.0
      %3023 = vmatpush2.msra.mxu0 0.0
      %3024 = vmatprep.subr.mxu0 0.0
      %3025 = vmatpush2.msra.mxu0 0.0
      %3026 = vmatprep.subr.mxu0 0.0
      %3027 = vmatpush2.msra.mxu0 0.0
      %3028 = vmatprep.subr.mxu0 0.0
      %3029 = vmatpush2.msra.mxu0 0.0
      %3030 = vmatprep.subr.mxu0 0.0
      %3031 = vmatpush2.msra.mxu0 0.0
      %3032 = vmatprep.subr.mxu0 0.0
      %3033 = vmatpush2.msra.mxu0 0.0
      %3034 = vmatprep.subr.mxu0 0.0
      %3035 = vmatpush2.msra.mxu0 0.0
      %3036 = vmatprep.subr.mxu0 0.0
      %3037 = vmatpush2.msra.mxu0 0.0
      %3038 = vmatprep.subr.mxu0 0.0
      %3039 = vmatpush2.msra.mxu0 0.0
      %3040 = vmatprep.subr.mxu0 0.0
      %3041 = vmatpush2.msra.mxu0 0.0
      %3042 = vmatprep.subr.mxu0 0.0
      %3043 = vmatpush2.msra.mxu0 0.0
      %3044 = vmatprep.subr.mxu0 0.0
      %3045 = vmatpush2.msra.mxu0 0.0
      %3046 = vmatprep.subr.mxu0 0.0
      %3047 = vmatpush2.msra.mxu0 0.0
      %3048 = vmatprep.subr.mxu0 0.0
      %3049 = vmatpush2.msra.mxu0 0.0
      %3050 = vmatprep.subr.mxu0 0.0
      %3051 = vmatpush2.msra.mxu0 0.0
      %3052 = vmatprep.subr.mxu0 0.0
      %3053 = vmatpush2.msra.mxu0 0.0
      %3054 = vmatprep.mubr.f32.mxu0 0.0
      %3055 = vmatmul.mubr.f32.gmra.mxu0 %v2894
      %v3056 = vpop.f32.mrf.mxu0
      %v3057 = vadd.f32 0.0, %v3056
      %v3058 = vpop.f32.mrf.mxu0
      %3059 = vmatprep.mubr.f32.mxu0 0.0
      %3060 = vmatmul.mubr.f32.gmra.mxu0 %v2897
      %v3061 = vpop.f32.mrf.mxu0
      %v3062 = vadd.f32 0.0, %v3061
      %v3063 = vpop.f32.mrf.mxu0
      %3064 = vmatprep.mubr.f32.mxu0 0.0
      %3065 = vmatmul.mubr.f32.gmra.mxu0 %v2900
      %v3066 = vpop.f32.mrf.mxu0
      %v3067 = vadd.f32 0.0, %v3066
      %v3068 = vpop.f32.mrf.mxu0
      %3069 = vmatprep.mubr.f32.mxu0 0.0
      %3070 = vmatmul.mubr.f32.gmra.mxu0 %v2903
      %v3071 = vpop.f32.mrf.mxu0
      %v3072 = vadd.f32 0.0, %v3071
      %v3073 = vpop.f32.mrf.mxu0
      %3074 = vdwg.mxu0
      %3075 = vmatprep.subr.mxu0 0.0
      %3076 = vmatpush1.msra.mxu0 0.0
      %3077 = vmatprep.subr.mxu0 0.0
      %3078 = vmatpush1.msra.mxu0 0.0
      %3079 = vmatprep.subr.mxu0 0.0
      %3080 = vmatpush1.msra.mxu0 0.0
      %3081 = vmatprep.subr.mxu0 0.0
      %3082 = vmatpush1.msra.mxu0 0.0
      %3083 = vmatprep.subr.mxu0 0.0
      %3084 = vmatpush1.msra.mxu0 0.0
      %3085 = vmatprep.subr.mxu0 0.0
      %3086 = vmatpush1.msra.mxu0 0.0
      %3087 = vmatprep.subr.mxu0 0.0
      %3088 = vmatpush1.msra.mxu0 0.0
      %3089 = vmatprep.subr.mxu0 0.0
      %3090 = vmatpush1.msra.mxu0 0.0
      %3091 = vmatprep.subr.mxu0 0.0
      %3092 = vmatpush1.msra.mxu0 0.0
      %3093 = vmatprep.subr.mxu0 0.0
      %3094 = vmatpush1.msra.mxu0 0.0
      %3095 = vmatprep.subr.mxu0 0.0
      %3096 = vmatpush1.msra.mxu0 0.0
      %3097 = vmatprep.subr.mxu0 0.0
      %3098 = vmatpush1.msra.mxu0 0.0
      %3099 = vmatprep.subr.mxu0 0.0
      %3100 = vmatpush1.msra.mxu0 %v1783
      %3101 = vmatprep.subr.mxu0 0.0
      %3102 = vmatpush1.msra.mxu0 %v1782
      %3103 = vmatprep.subr.mxu0 0.0
      %3104 = vmatpush1.msra.mxu0 %v1781
      %3105 = vmatprep.subr.mxu0 0.0
      %3106 = vmatpush1.msra.mxu0 %v1780
      %3107 = vmatprep.subr.mxu0 0.0
      %3108 = vmatpush2.msra.mxu0 0.0
      %3109 = vmatprep.subr.mxu0 0.0
      %3110 = vmatpush2.msra.mxu0 0.0
      %3111 = vmatprep.subr.mxu0 0.0
      %3112 = vmatpush2.msra.mxu0 0.0
      %3113 = vmatprep.subr.mxu0 0.0
      %3114 = vmatpush2.msra.mxu0 0.0
      %3115 = vmatprep.subr.mxu0 0.0
      %3116 = vmatpush2.msra.mxu0 0.0
      %3117 = vmatprep.subr.mxu0 0.0
      %3118 = vmatpush2.msra.mxu0 0.0
      %3119 = vmatprep.subr.mxu0 0.0
      %3120 = vmatpush2.msra.mxu0 0.0
      %3121 = vmatprep.subr.mxu0 0.0
      %3122 = vmatpush2.msra.mxu0 0.0
      %3123 = vmatprep.subr.mxu0 0.0
      %3124 = vmatpush2.msra.mxu0 0.0
      %3125 = vmatprep.subr.mxu0 0.0
      %3126 = vmatpush2.msra.mxu0 0.0
      %3127 = vmatprep.subr.mxu0 0.0
      %3128 = vmatpush2.msra.mxu0 0.0
      %3129 = vmatprep.subr.mxu0 0.0
      %3130 = vmatpush2.msra.mxu0 0.0
      %3131 = vmatprep.subr.mxu0 0.0
      %3132 = vmatpush2.msra.mxu0 0.0
      %3133 = vmatprep.subr.mxu0 0.0
      %3134 = vmatpush2.msra.mxu0 0.0
      %3135 = vmatprep.subr.mxu0 0.0
      %3136 = vmatpush2.msra.mxu0 0.0
      %3137 = vmatprep.subr.mxu0 0.0
      %3138 = vmatpush2.msra.mxu0 0.0
      %3139 = vmatprep.mubr.f32.mxu0 0.0
      %3140 = vmatmul.mubr.f32.gmra.mxu0 %v2894
      %v3141 = vpop.f32.mrf.mxu0
      %v3142 = vadd.f32 %v1790, %v3141
      %v3143 = vpop.f32.mrf.mxu0
      %3144 = vmatprep.mubr.f32.mxu0 0.0
      %3145 = vmatmul.mubr.f32.gmra.mxu0 %v2897
      %v3146 = vpop.f32.mrf.mxu0
      %v3147 = vadd.f32 %v1790, %v3146
      %v3148 = vpop.f32.mrf.mxu0
      %3149 = vmatprep.mubr.f32.mxu0 0.0
      %3150 = vmatmul.mubr.f32.gmra.mxu0 %v2900
      %v3151 = vpop.f32.mrf.mxu0
      %v3152 = vadd.f32 %v1790, %v3151
      %v3153 = vpop.f32.mrf.mxu0
      %3154 = vmatprep.mubr.f32.mxu0 0.0
      %3155 = vmatmul.mubr.f32.gmra.mxu0 %v2903
      %v3156 = vpop.f32.mrf.mxu0
      %v3157 = vadd.f32 %v1790, %v3156
      %v3158 = vpop.f32.mrf.mxu0
      %3159 = vdwg.mxu0
      %v3160 = vadd.f32 %v2879, %v2972
      %v3161 = vadd.f32 %v2880, %v2977
      %v3162 = vadd.f32 %v2881, %v2982
      %v3163 = vadd.f32 %v2882, %v2987
      %v3164 = vxor.u32 %v3160, 2147483648
      %v3165 = vxor.u32 %v3161, 2147483648
      %v3166 = vxor.u32 %v3162, 2147483648
      %v3167 = vxor.u32 %v3163, 2147483648
      %v3168 = vmul.f32 %v3164, 1.442695
      %v3169 = vpow.pop %v3168
      %v3170 = vmul.f32 %v3165, 1.442695
      %v3171 = vpow.pop %v3170
      %v3172 = vmul.f32 %v3166, 1.442695
      %v3173 = vpow.pop %v3172
      %v3174 = vmul.f32 %v3167, 1.442695
      %v3175 = vpow.pop %v3174
      %v3176 = vadd.f32 %v3169, 1.0
      %v3177 = vadd.f32 %v3171, 1.0
      %v3178 = vadd.f32 %v3173, 1.0
      %v3179 = vadd.f32 %v3175, 1.0
      %v3180 = vrcp.pop %v3176
      %v3181 = vmul.f32 1.0, %v3180
      %v3182 = vrcp.pop %v3177
      %v3183 = vmul.f32 1.0, %v3182
      %v3184 = vrcp.pop %v3178
      %v3185 = vmul.f32 1.0, %v3184
      %v3186 = vrcp.pop %v3179
      %v3187 = vmul.f32 1.0, %v3186
      %v3188 = vadd.f32 %v2884, %v3057
      %v3189 = vadd.f32 %v2885, %v3062
      %v3190 = vadd.f32 %v2886, %v3067
      %v3191 = vadd.f32 %v2887, %v3072
      %v3192 = vxor.u32 %v3188, 2147483648
      %v3193 = vxor.u32 %v3189, 2147483648
      %v3194 = vxor.u32 %v3190, 2147483648
      %v3195 = vxor.u32 %v3191, 2147483648
      %v3196 = vmul.f32 %v3192, 1.442695
      %v3197 = vpow.pop %v3196
      %v3198 = vmul.f32 %v3193, 1.442695
      %v3199 = vpow.pop %v3198
      %v3200 = vmul.f32 %v3194, 1.442695
      %v3201 = vpow.pop %v3200
      %v3202 = vmul.f32 %v3195, 1.442695
      %v3203 = vpow.pop %v3202
      %v3204 = vadd.f32 %v3197, 1.0
      %v3205 = vadd.f32 %v3199, 1.0
      %v3206 = vadd.f32 %v3201, 1.0
      %v3207 = vadd.f32 %v3203, 1.0
      %v3208 = vrcp.pop %v3204
      %v3209 = vmul.f32 1.0, %v3208
      %v3210 = vrcp.pop %v3205
      %v3211 = vmul.f32 1.0, %v3210
      %v3212 = vrcp.pop %v3206
      %v3213 = vmul.f32 1.0, %v3212
      %v3214 = vrcp.pop %v3207
      %v3215 = vmul.f32 1.0, %v3214
      %v3216 = vmul.f32 %v3181, %v3142
      %v3217 = vmul.f32 %v3183, %v3147
      %v3218 = vmul.f32 %v3185, %v3152
      %v3219 = vmul.f32 %v3187, %v3157
      %v3220 = vadd.f32 %v2889, %v3216
      %v3221 = vadd.f32 %v2890, %v3217
      %v3222 = vadd.f32 %v2891, %v3218
      %v3223 = vadd.f32 %v2892, %v3219
      %v3224 = vtanh.pop %v3220
      %v3225 = vtanh.pop %v3221
      %v3226 = vtanh.pop %v3222
      %v3227 = vtanh.pop %v3223
      %v3228 = vsub.f32 1.0, %v3209
      %v3229 = vsub.f32 1.0, %v3211
      %v3230 = vsub.f32 1.0, %v3213
      %v3231 = vsub.f32 1.0, %v3215
      %v3232 = vmul.f32 %v3228, %v3224
      %v3233 = vmul.f32 %v3229, %v3225
      %v3234 = vmul.f32 %v3230, %v3226
      %v3235 = vmul.f32 %v3231, %v3227
      %v3236 = vmul.f32 %v3209, %v2874
      %v3237 = vmul.f32 %v3211, %v2875
      %v3238 = vmul.f32 %v3213, %v2876
      %v3239 = vmul.f32 %v3215, %v2877
      %v3240 = vadd.f32 %v3232, %v3236
      %v3241 = vadd.f32 %v3233, %v3237
      %v3242 = vadd.f32 %v3234, %v3238
      %v3243 = vadd.f32 %v3235, %v3239
      %s3244 = scalar_lea.vmem [#allocation2], 128
      %v3245 = vld [vmem:[%s3244] sm:$0xff]
      %v3246 = vld [vmem:[%s3244 + $0x8] sm:$0xff]
      %v3247 = vld [vmem:[%s3244 + $0x10] sm:$0xff]
      %v3248 = vld [vmem:[%s3244 + $0x18] sm:$0xff]
      %s3249 = scalar_lea.vmem [#allocation3], 128
      %v3250 = vld [vmem:[%s3249] sm:$0xff]
      %v3251 = vld [vmem:[%s3249 + $0x8] sm:$0xff]
      %v3252 = vld [vmem:[%s3249 + $0x10] sm:$0xff]
      %v3253 = vld [vmem:[%s3249 + $0x18] sm:$0xff]
      %s3254 = scalar_lea.vmem [#allocation4], 128
      %v3255 = vld [vmem:[%s3254] sm:$0xff]
      %v3256 = vld [vmem:[%s3254 + $0x8] sm:$0xff]
      %v3257 = vld [vmem:[%s3254 + $0x10] sm:$0xff]
      %v3258 = vld [vmem:[%s3254 + $0x18] sm:$0xff]
      %v3260 = vsel %vm873, %v3240, 0
      %v3263 = vsel %vm873, %v3241, 0
      %v3266 = vsel %vm873, %v3242, 0
      %v3269 = vsel %vm873, %v3243, 0
      %3271 = vmatprep.subr.mxu0 0.0
      %3272 = vmatpush1.msra.mxu0 0.0
      %3273 = vmatprep.subr.mxu0 0.0
      %3274 = vmatpush1.msra.mxu0 0.0
      %3275 = vmatprep.subr.mxu0 0.0
      %3276 = vmatpush1.msra.mxu0 0.0
      %3277 = vmatprep.subr.mxu0 0.0
      %3278 = vmatpush1.msra.mxu0 0.0
      %3279 = vmatprep.subr.mxu0 0.0
      %3280 = vmatpush1.msra.mxu0 0.0
      %3281 = vmatprep.subr.mxu0 0.0
      %3282 = vmatpush1.msra.mxu0 0.0
      %3283 = vmatprep.subr.mxu0 0.0
      %3284 = vmatpush1.msra.mxu0 0.0
      %3285 = vmatprep.subr.mxu0 0.0
      %3286 = vmatpush1.msra.mxu0 0.0
      %3287 = vmatprep.subr.mxu0 0.0
      %3288 = vmatpush1.msra.mxu0 0.0
      %3289 = vmatprep.subr.mxu0 0.0
      %3290 = vmatpush1.msra.mxu0 0.0
      %3291 = vmatprep.subr.mxu0 0.0
      %3292 = vmatpush1.msra.mxu0 0.0
      %3293 = vmatprep.subr.mxu0 0.0
      %3294 = vmatpush1.msra.mxu0 0.0
      %3295 = vmatprep.subr.mxu0 0.0
      %3296 = vmatpush1.msra.mxu0 %v1773
      %3297 = vmatprep.subr.mxu0 0.0
      %3298 = vmatpush1.msra.mxu0 %v1772
      %3299 = vmatprep.subr.mxu0 0.0
      %3300 = vmatpush1.msra.mxu0 %v1771
      %3301 = vmatprep.subr.mxu0 0.0
      %3302 = vmatpush1.msra.mxu0 %v1770
      %3303 = vmatprep.subr.mxu0 0.0
      %3304 = vmatpush2.msra.mxu0 0.0
      %3305 = vmatprep.subr.mxu0 0.0
      %3306 = vmatpush2.msra.mxu0 0.0
      %3307 = vmatprep.subr.mxu0 0.0
      %3308 = vmatpush2.msra.mxu0 0.0
      %3309 = vmatprep.subr.mxu0 0.0
      %3310 = vmatpush2.msra.mxu0 0.0
      %3311 = vmatprep.subr.mxu0 0.0
      %3312 = vmatpush2.msra.mxu0 0.0
      %3313 = vmatprep.subr.mxu0 0.0
      %3314 = vmatpush2.msra.mxu0 0.0
      %3315 = vmatprep.subr.mxu0 0.0
      %3316 = vmatpush2.msra.mxu0 0.0
      %3317 = vmatprep.subr.mxu0 0.0
      %3318 = vmatpush2.msra.mxu0 0.0
      %3319 = vmatprep.subr.mxu0 0.0
      %3320 = vmatpush2.msra.mxu0 0.0
      %3321 = vmatprep.subr.mxu0 0.0
      %3322 = vmatpush2.msra.mxu0 0.0
      %3323 = vmatprep.subr.mxu0 0.0
      %3324 = vmatpush2.msra.mxu0 0.0
      %3325 = vmatprep.subr.mxu0 0.0
      %3326 = vmatpush2.msra.mxu0 0.0
      %3327 = vmatprep.subr.mxu0 0.0
      %3328 = vmatpush2.msra.mxu0 0.0
      %3329 = vmatprep.subr.mxu0 0.0
      %3330 = vmatpush2.msra.mxu0 0.0
      %3331 = vmatprep.subr.mxu0 0.0
      %3332 = vmatpush2.msra.mxu0 0.0
      %3333 = vmatprep.subr.mxu0 0.0
      %3334 = vmatpush2.msra.mxu0 0.0
      %3335 = vmatprep.mubr.f32.mxu0 0.0
      %3336 = vmatmul.mubr.f32.gmra.mxu0 %v3260
      %v3337 = vpop.f32.mrf.mxu0
      %v3338 = vadd.f32 0.0, %v3337
      %v3339 = vpop.f32.mrf.mxu0
      %3340 = vmatprep.mubr.f32.mxu0 0.0
      %3341 = vmatmul.mubr.f32.gmra.mxu0 %v3263
      %v3342 = vpop.f32.mrf.mxu0
      %v3343 = vadd.f32 0.0, %v3342
      %v3344 = vpop.f32.mrf.mxu0
      %3345 = vmatprep.mubr.f32.mxu0 0.0
      %3346 = vmatmul.mubr.f32.gmra.mxu0 %v3266
      %v3347 = vpop.f32.mrf.mxu0
      %v3348 = vadd.f32 0.0, %v3347
      %v3349 = vpop.f32.mrf.mxu0
      %3350 = vmatprep.mubr.f32.mxu0 0.0
      %3351 = vmatmul.mubr.f32.gmra.mxu0 %v3269
      %v3352 = vpop.f32.mrf.mxu0
      %v3353 = vadd.f32 0.0, %v3352
      %v3354 = vpop.f32.mrf.mxu0
      %3355 = vdwg.mxu0
      %3356 = vmatprep.subr.mxu0 0.0
      %3357 = vmatpush1.msra.mxu0 0.0
      %3358 = vmatprep.subr.mxu0 0.0
      %3359 = vmatpush1.msra.mxu0 0.0
      %3360 = vmatprep.subr.mxu0 0.0
      %3361 = vmatpush1.msra.mxu0 0.0
      %3362 = vmatprep.subr.mxu0 0.0
      %3363 = vmatpush1.msra.mxu0 0.0
      %3364 = vmatprep.subr.mxu0 0.0
      %3365 = vmatpush1.msra.mxu0 0.0
      %3366 = vmatprep.subr.mxu0 0.0
      %3367 = vmatpush1.msra.mxu0 0.0
      %3368 = vmatprep.subr.mxu0 0.0
      %3369 = vmatpush1.msra.mxu0 0.0
      %3370 = vmatprep.subr.mxu0 0.0
      %3371 = vmatpush1.msra.mxu0 0.0
      %3372 = vmatprep.subr.mxu0 0.0
      %3373 = vmatpush1.msra.mxu0 0.0
      %3374 = vmatprep.subr.mxu0 0.0
      %3375 = vmatpush1.msra.mxu0 0.0
      %3376 = vmatprep.subr.mxu0 0.0
      %3377 = vmatpush1.msra.mxu0 0.0
      %3378 = vmatprep.subr.mxu0 0.0
      %3379 = vmatpush1.msra.mxu0 0.0
      %3380 = vmatprep.subr.mxu0 0.0
      %3381 = vmatpush1.msra.mxu0 %v1778
      %3382 = vmatprep.subr.mxu0 0.0
      %3383 = vmatpush1.msra.mxu0 %v1777
      %3384 = vmatprep.subr.mxu0 0.0
      %3385 = vmatpush1.msra.mxu0 %v1776
      %3386 = vmatprep.subr.mxu0 0.0
      %3387 = vmatpush1.msra.mxu0 %v1775
      %3388 = vmatprep.subr.mxu0 0.0
      %3389 = vmatpush2.msra.mxu0 0.0
      %3390 = vmatprep.subr.mxu0 0.0
      %3391 = vmatpush2.msra.mxu0 0.0
      %3392 = vmatprep.subr.mxu0 0.0
      %3393 = vmatpush2.msra.mxu0 0.0
      %3394 = vmatprep.subr.mxu0 0.0
      %3395 = vmatpush2.msra.mxu0 0.0
      %3396 = vmatprep.subr.mxu0 0.0
      %3397 = vmatpush2.msra.mxu0 0.0
      %3398 = vmatprep.subr.mxu0 0.0
      %3399 = vmatpush2.msra.mxu0 0.0
      %3400 = vmatprep.subr.mxu0 0.0
      %3401 = vmatpush2.msra.mxu0 0.0
      %3402 = vmatprep.subr.mxu0 0.0
      %3403 = vmatpush2.msra.mxu0 0.0
      %3404 = vmatprep.subr.mxu0 0.0
      %3405 = vmatpush2.msra.mxu0 0.0
      %3406 = vmatprep.subr.mxu0 0.0
      %3407 = vmatpush2.msra.mxu0 0.0
      %3408 = vmatprep.subr.mxu0 0.0
      %3409 = vmatpush2.msra.mxu0 0.0
      %3410 = vmatprep.subr.mxu0 0.0
      %3411 = vmatpush2.msra.mxu0 0.0
      %3412 = vmatprep.subr.mxu0 0.0
      %3413 = vmatpush2.msra.mxu0 0.0
      %3414 = vmatprep.subr.mxu0 0.0
      %3415 = vmatpush2.msra.mxu0 0.0
      %3416 = vmatprep.subr.mxu0 0.0
      %3417 = vmatpush2.msra.mxu0 0.0
      %3418 = vmatprep.subr.mxu0 0.0
      %3419 = vmatpush2.msra.mxu0 0.0
      %3420 = vmatprep.mubr.f32.mxu0 0.0
      %3421 = vmatmul.mubr.f32.gmra.mxu0 %v3260
      %v3422 = vpop.f32.mrf.mxu0
      %v3423 = vadd.f32 0.0, %v3422
      %v3424 = vpop.f32.mrf.mxu0
      %3425 = vmatprep.mubr.f32.mxu0 0.0
      %3426 = vmatmul.mubr.f32.gmra.mxu0 %v3263
      %v3427 = vpop.f32.mrf.mxu0
      %v3428 = vadd.f32 0.0, %v3427
      %v3429 = vpop.f32.mrf.mxu0
      %3430 = vmatprep.mubr.f32.mxu0 0.0
      %3431 = vmatmul.mubr.f32.gmra.mxu0 %v3266
      %v3432 = vpop.f32.mrf.mxu0
      %v3433 = vadd.f32 0.0, %v3432
      %v3434 = vpop.f32.mrf.mxu0
      %3435 = vmatprep.mubr.f32.mxu0 0.0
      %3436 = vmatmul.mubr.f32.gmra.mxu0 %v3269
      %v3437 = vpop.f32.mrf.mxu0
      %v3438 = vadd.f32 0.0, %v3437
      %v3439 = vpop.f32.mrf.mxu0
      %3440 = vdwg.mxu0
      %3441 = vmatprep.subr.mxu0 0.0
      %3442 = vmatpush1.msra.mxu0 0.0
      %3443 = vmatprep.subr.mxu0 0.0
      %3444 = vmatpush1.msra.mxu0 0.0
      %3445 = vmatprep.subr.mxu0 0.0
      %3446 = vmatpush1.msra.mxu0 0.0
      %3447 = vmatprep.subr.mxu0 0.0
      %3448 = vmatpush1.msra.mxu0 0.0
      %3449 = vmatprep.subr.mxu0 0.0
      %3450 = vmatpush1.msra.mxu0 0.0
      %3451 = vmatprep.subr.mxu0 0.0
      %3452 = vmatpush1.msra.mxu0 0.0
      %3453 = vmatprep.subr.mxu0 0.0
      %3454 = vmatpush1.msra.mxu0 0.0
      %3455 = vmatprep.subr.mxu0 0.0
      %3456 = vmatpush1.msra.mxu0 0.0
      %3457 = vmatprep.subr.mxu0 0.0
      %3458 = vmatpush1.msra.mxu0 0.0
      %3459 = vmatprep.subr.mxu0 0.0
      %3460 = vmatpush1.msra.mxu0 0.0
      %3461 = vmatprep.subr.mxu0 0.0
      %3462 = vmatpush1.msra.mxu0 0.0
      %3463 = vmatprep.subr.mxu0 0.0
      %3464 = vmatpush1.msra.mxu0 0.0
      %3465 = vmatprep.subr.mxu0 0.0
      %3466 = vmatpush1.msra.mxu0 %v1783
      %3467 = vmatprep.subr.mxu0 0.0
      %3468 = vmatpush1.msra.mxu0 %v1782
      %3469 = vmatprep.subr.mxu0 0.0
      %3470 = vmatpush1.msra.mxu0 %v1781
      %3471 = vmatprep.subr.mxu0 0.0
      %3472 = vmatpush1.msra.mxu0 %v1780
      %3473 = vmatprep.subr.mxu0 0.0
      %3474 = vmatpush2.msra.mxu0 0.0
      %3475 = vmatprep.subr.mxu0 0.0
      %3476 = vmatpush2.msra.mxu0 0.0
      %3477 = vmatprep.subr.mxu0 0.0
      %3478 = vmatpush2.msra.mxu0 0.0
      %3479 = vmatprep.subr.mxu0 0.0
      %3480 = vmatpush2.msra.mxu0 0.0
      %3481 = vmatprep.subr.mxu0 0.0
      %3482 = vmatpush2.msra.mxu0 0.0
      %3483 = vmatprep.subr.mxu0 0.0
      %3484 = vmatpush2.msra.mxu0 0.0
      %3485 = vmatprep.subr.mxu0 0.0
      %3486 = vmatpush2.msra.mxu0 0.0
      %3487 = vmatprep.subr.mxu0 0.0
      %3488 = vmatpush2.msra.mxu0 0.0
      %3489 = vmatprep.subr.mxu0 0.0
      %3490 = vmatpush2.msra.mxu0 0.0
      %3491 = vmatprep.subr.mxu0 0.0
      %3492 = vmatpush2.msra.mxu0 0.0
      %3493 = vmatprep.subr.mxu0 0.0
      %3494 = vmatpush2.msra.mxu0 0.0
      %3495 = vmatprep.subr.mxu0 0.0
      %3496 = vmatpush2.msra.mxu0 0.0
      %3497 = vmatprep.subr.mxu0 0.0
      %3498 = vmatpush2.msra.mxu0 0.0
      %3499 = vmatprep.subr.mxu0 0.0
      %3500 = vmatpush2.msra.mxu0 0.0
      %3501 = vmatprep.subr.mxu0 0.0
      %3502 = vmatpush2.msra.mxu0 0.0
      %3503 = vmatprep.subr.mxu0 0.0
      %3504 = vmatpush2.msra.mxu0 0.0
      %3505 = vmatprep.mubr.f32.mxu0 0.0
      %3506 = vmatmul.mubr.f32.gmra.mxu0 %v3260
      %v3507 = vpop.f32.mrf.mxu0
      %v3508 = vadd.f32 %v1790, %v3507
      %v3509 = vpop.f32.mrf.mxu0
      %3510 = vmatprep.mubr.f32.mxu0 0.0
      %3511 = vmatmul.mubr.f32.gmra.mxu0 %v3263
      %v3512 = vpop.f32.mrf.mxu0
      %v3513 = vadd.f32 %v1790, %v3512
      %v3514 = vpop.f32.mrf.mxu0
      %3515 = vmatprep.mubr.f32.mxu0 0.0
      %3516 = vmatmul.mubr.f32.gmra.mxu0 %v3266
      %v3517 = vpop.f32.mrf.mxu0
      %v3518 = vadd.f32 %v1790, %v3517
      %v3519 = vpop.f32.mrf.mxu0
      %3520 = vmatprep.mubr.f32.mxu0 0.0
      %3521 = vmatmul.mubr.f32.gmra.mxu0 %v3269
      %v3522 = vpop.f32.mrf.mxu0
      %v3523 = vadd.f32 %v1790, %v3522
      %v3524 = vpop.f32.mrf.mxu0
      %3525 = vdwg.mxu0
      %v3526 = vadd.f32 %v3245, %v3338
      %v3527 = vadd.f32 %v3246, %v3343
      %v3528 = vadd.f32 %v3247, %v3348
      %v3529 = vadd.f32 %v3248, %v3353
      %v3530 = vxor.u32 %v3526, 2147483648
      %v3531 = vxor.u32 %v3527, 2147483648
      %v3532 = vxor.u32 %v3528, 2147483648
      %v3533 = vxor.u32 %v3529, 2147483648
      %v3534 = vmul.f32 %v3530, 1.442695
      %v3535 = vpow.pop %v3534
      %v3536 = vmul.f32 %v3531, 1.442695
      %v3537 = vpow.pop %v3536
      %v3538 = vmul.f32 %v3532, 1.442695
      %v3539 = vpow.pop %v3538
      %v3540 = vmul.f32 %v3533, 1.442695
      %v3541 = vpow.pop %v3540
      %v3542 = vadd.f32 %v3535, 1.0
      %v3543 = vadd.f32 %v3537, 1.0
      %v3544 = vadd.f32 %v3539, 1.0
      %v3545 = vadd.f32 %v3541, 1.0
      %v3546 = vrcp.pop %v3542
      %v3547 = vmul.f32 1.0, %v3546
      %v3548 = vrcp.pop %v3543
      %v3549 = vmul.f32 1.0, %v3548
      %v3550 = vrcp.pop %v3544
      %v3551 = vmul.f32 1.0, %v3550
      %v3552 = vrcp.pop %v3545
      %v3553 = vmul.f32 1.0, %v3552
      %v3554 = vadd.f32 %v3250, %v3423
      %v3555 = vadd.f32 %v3251, %v3428
      %v3556 = vadd.f32 %v3252, %v3433
      %v3557 = vadd.f32 %v3253, %v3438
      %v3558 = vxor.u32 %v3554, 2147483648
      %v3559 = vxor.u32 %v3555, 2147483648
      %v3560 = vxor.u32 %v3556, 2147483648
      %v3561 = vxor.u32 %v3557, 2147483648
      %v3562 = vmul.f32 %v3558, 1.442695
      %v3563 = vpow.pop %v3562
      %v3564 = vmul.f32 %v3559, 1.442695
      %v3565 = vpow.pop %v3564
      %v3566 = vmul.f32 %v3560, 1.442695
      %v3567 = vpow.pop %v3566
      %v3568 = vmul.f32 %v3561, 1.442695
      %v3569 = vpow.pop %v3568
      %v3570 = vadd.f32 %v3563, 1.0
      %v3571 = vadd.f32 %v3565, 1.0
      %v3572 = vadd.f32 %v3567, 1.0
      %v3573 = vadd.f32 %v3569, 1.0
      %v3574 = vrcp.pop %v3570
      %v3575 = vmul.f32 1.0, %v3574
      %v3576 = vrcp.pop %v3571
      %v3577 = vmul.f32 1.0, %v3576
      %v3578 = vrcp.pop %v3572
      %v3579 = vmul.f32 1.0, %v3578
      %v3580 = vrcp.pop %v3573
      %v3581 = vmul.f32 1.0, %v3580
      %v3582 = vmul.f32 %v3547, %v3508
      %v3583 = vmul.f32 %v3549, %v3513
      %v3584 = vmul.f32 %v3551, %v3518
      %v3585 = vmul.f32 %v3553, %v3523
      %v3586 = vadd.f32 %v3255, %v3582
      %v3587 = vadd.f32 %v3256, %v3583
      %v3588 = vadd.f32 %v3257, %v3584
      %v3589 = vadd.f32 %v3258, %v3585
      %v3590 = vtanh.pop %v3586
      %v3591 = vtanh.pop %v3587
      %v3592 = vtanh.pop %v3588
      %v3593 = vtanh.pop %v3589
      %v3594 = vsub.f32 1.0, %v3575
      %v3595 = vsub.f32 1.0, %v3577
      %v3596 = vsub.f32 1.0, %v3579
      %v3597 = vsub.f32 1.0, %v3581
      %v3598 = vmul.f32 %v3594, %v3590
      %v3599 = vmul.f32 %v3595, %v3591
      %v3600 = vmul.f32 %v3596, %v3592
      %v3601 = vmul.f32 %v3597, %v3593
      %v3602 = vmul.f32 %v3575, %v3240
      %v3603 = vmul.f32 %v3577, %v3241
      %v3604 = vmul.f32 %v3579, %v3242
      %v3605 = vmul.f32 %v3581, %v3243
      %v3606 = vadd.f32 %v3598, %v3602
      %v3607 = vadd.f32 %v3599, %v3603
      %v3608 = vadd.f32 %v3600, %v3604
      %v3609 = vadd.f32 %v3601, %v3605
      %s3610 = scalar_lea.vmem [#allocation2], 160
      %v3611 = vld [vmem:[%s3610] sm:$0xff]
      %v3612 = vld [vmem:[%s3610 + $0x8] sm:$0xff]
      %v3613 = vld [vmem:[%s3610 + $0x10] sm:$0xff]
      %v3614 = vld [vmem:[%s3610 + $0x18] sm:$0xff]
      %s3615 = scalar_lea.vmem [#allocation3], 160
      %v3616 = vld [vmem:[%s3615] sm:$0xff]
      %v3617 = vld [vmem:[%s3615 + $0x8] sm:$0xff]
      %v3618 = vld [vmem:[%s3615 + $0x10] sm:$0xff]
      %v3619 = vld [vmem:[%s3615 + $0x18] sm:$0xff]
      %s3620 = scalar_lea.vmem [#allocation4], 160
      %v3621 = vld [vmem:[%s3620] sm:$0xff]
      %v3622 = vld [vmem:[%s3620 + $0x8] sm:$0xff]
      %v3623 = vld [vmem:[%s3620 + $0x10] sm:$0xff]
      %v3624 = vld [vmem:[%s3620 + $0x18] sm:$0xff]
      %v3626 = vsel %vm873, %v3606, 0
      %v3629 = vsel %vm873, %v3607, 0
      %v3632 = vsel %vm873, %v3608, 0
      %v3635 = vsel %vm873, %v3609, 0
      %3637 = vmatprep.subr.mxu0 0.0
      %3638 = vmatpush1.msra.mxu0 0.0
      %3639 = vmatprep.subr.mxu0 0.0
      %3640 = vmatpush1.msra.mxu0 0.0
      %3641 = vmatprep.subr.mxu0 0.0
      %3642 = vmatpush1.msra.mxu0 0.0
      %3643 = vmatprep.subr.mxu0 0.0
      %3644 = vmatpush1.msra.mxu0 0.0
      %3645 = vmatprep.subr.mxu0 0.0
      %3646 = vmatpush1.msra.mxu0 0.0
      %3647 = vmatprep.subr.mxu0 0.0
      %3648 = vmatpush1.msra.mxu0 0.0
      %3649 = vmatprep.subr.mxu0 0.0
      %3650 = vmatpush1.msra.mxu0 0.0
      %3651 = vmatprep.subr.mxu0 0.0
      %3652 = vmatpush1.msra.mxu0 0.0
      %3653 = vmatprep.subr.mxu0 0.0
      %3654 = vmatpush1.msra.mxu0 0.0
      %3655 = vmatprep.subr.mxu0 0.0
      %3656 = vmatpush1.msra.mxu0 0.0
      %3657 = vmatprep.subr.mxu0 0.0
      %3658 = vmatpush1.msra.mxu0 0.0
      %3659 = vmatprep.subr.mxu0 0.0
      %3660 = vmatpush1.msra.mxu0 0.0
      %3661 = vmatprep.subr.mxu0 0.0
      %3662 = vmatpush1.msra.mxu0 %v1773
      %3663 = vmatprep.subr.mxu0 0.0
      %3664 = vmatpush1.msra.mxu0 %v1772
      %3665 = vmatprep.subr.mxu0 0.0
      %3666 = vmatpush1.msra.mxu0 %v1771
      %3667 = vmatprep.subr.mxu0 0.0
      %3668 = vmatpush1.msra.mxu0 %v1770
      %3669 = vmatprep.subr.mxu0 0.0
      %3670 = vmatpush2.msra.mxu0 0.0
      %3671 = vmatprep.subr.mxu0 0.0
      %3672 = vmatpush2.msra.mxu0 0.0
      %3673 = vmatprep.subr.mxu0 0.0
      %3674 = vmatpush2.msra.mxu0 0.0
      %3675 = vmatprep.subr.mxu0 0.0
      %3676 = vmatpush2.msra.mxu0 0.0
      %3677 = vmatprep.subr.mxu0 0.0
      %3678 = vmatpush2.msra.mxu0 0.0
      %3679 = vmatprep.subr.mxu0 0.0
      %3680 = vmatpush2.msra.mxu0 0.0
      %3681 = vmatprep.subr.mxu0 0.0
      %3682 = vmatpush2.msra.mxu0 0.0
      %3683 = vmatprep.subr.mxu0 0.0
      %3684 = vmatpush2.msra.mxu0 0.0
      %3685 = vmatprep.subr.mxu0 0.0
      %3686 = vmatpush2.msra.mxu0 0.0
      %3687 = vmatprep.subr.mxu0 0.0
      %3688 = vmatpush2.msra.mxu0 0.0
      %3689 = vmatprep.subr.mxu0 0.0
      %3690 = vmatpush2.msra.mxu0 0.0
      %3691 = vmatprep.subr.mxu0 0.0
      %3692 = vmatpush2.msra.mxu0 0.0
      %3693 = vmatprep.subr.mxu0 0.0
      %3694 = vmatpush2.msra.mxu0 0.0
      %3695 = vmatprep.subr.mxu0 0.0
      %3696 = vmatpush2.msra.mxu0 0.0
      %3697 = vmatprep.subr.mxu0 0.0
      %3698 = vmatpush2.msra.mxu0 0.0
      %3699 = vmatprep.subr.mxu0 0.0
      %3700 = vmatpush2.msra.mxu0 0.0
      %3701 = vmatprep.mubr.f32.mxu0 0.0
      %3702 = vmatmul.mubr.f32.gmra.mxu0 %v3626
      %v3703 = vpop.f32.mrf.mxu0
      %v3704 = vadd.f32 0.0, %v3703
      %v3705 = vpop.f32.mrf.mxu0
      %3706 = vmatprep.mubr.f32.mxu0 0.0
      %3707 = vmatmul.mubr.f32.gmra.mxu0 %v3629
      %v3708 = vpop.f32.mrf.mxu0
      %v3709 = vadd.f32 0.0, %v3708
      %v3710 = vpop.f32.mrf.mxu0
      %3711 = vmatprep.mubr.f32.mxu0 0.0
      %3712 = vmatmul.mubr.f32.gmra.mxu0 %v3632
      %v3713 = vpop.f32.mrf.mxu0
      %v3714 = vadd.f32 0.0, %v3713
      %v3715 = vpop.f32.mrf.mxu0
      %3716 = vmatprep.mubr.f32.mxu0 0.0
      %3717 = vmatmul.mubr.f32.gmra.mxu0 %v3635
      %v3718 = vpop.f32.mrf.mxu0
      %v3719 = vadd.f32 0.0, %v3718
      %v3720 = vpop.f32.mrf.mxu0
      %3721 = vdwg.mxu0
      %3722 = vmatprep.subr.mxu0 0.0
      %3723 = vmatpush1.msra.mxu0 0.0
      %3724 = vmatprep.subr.mxu0 0.0
      %3725 = vmatpush1.msra.mxu0 0.0
      %3726 = vmatprep.subr.mxu0 0.0
      %3727 = vmatpush1.msra.mxu0 0.0
      %3728 = vmatprep.subr.mxu0 0.0
      %3729 = vmatpush1.msra.mxu0 0.0
      %3730 = vmatprep.subr.mxu0 0.0
      %3731 = vmatpush1.msra.mxu0 0.0
      %3732 = vmatprep.subr.mxu0 0.0
      %3733 = vmatpush1.msra.mxu0 0.0
      %3734 = vmatprep.subr.mxu0 0.0
      %3735 = vmatpush1.msra.mxu0 0.0
      %3736 = vmatprep.subr.mxu0 0.0
      %3737 = vmatpush1.msra.mxu0 0.0
      %3738 = vmatprep.subr.mxu0 0.0
      %3739 = vmatpush1.msra.mxu0 0.0
      %3740 = vmatprep.subr.mxu0 0.0
      %3741 = vmatpush1.msra.mxu0 0.0
      %3742 = vmatprep.subr.mxu0 0.0
      %3743 = vmatpush1.msra.mxu0 0.0
      %3744 = vmatprep.subr.mxu0 0.0
      %3745 = vmatpush1.msra.mxu0 0.0
      %3746 = vmatprep.subr.mxu0 0.0
      %3747 = vmatpush1.msra.mxu0 %v1778
      %3748 = vmatprep.subr.mxu0 0.0
      %3749 = vmatpush1.msra.mxu0 %v1777
      %3750 = vmatprep.subr.mxu0 0.0
      %3751 = vmatpush1.msra.mxu0 %v1776
      %3752 = vmatprep.subr.mxu0 0.0
      %3753 = vmatpush1.msra.mxu0 %v1775
      %3754 = vmatprep.subr.mxu0 0.0
      %3755 = vmatpush2.msra.mxu0 0.0
      %3756 = vmatprep.subr.mxu0 0.0
      %3757 = vmatpush2.msra.mxu0 0.0
      %3758 = vmatprep.subr.mxu0 0.0
      %3759 = vmatpush2.msra.mxu0 0.0
      %3760 = vmatprep.subr.mxu0 0.0
      %3761 = vmatpush2.msra.mxu0 0.0
      %3762 = vmatprep.subr.mxu0 0.0
      %3763 = vmatpush2.msra.mxu0 0.0
      %3764 = vmatprep.subr.mxu0 0.0
      %3765 = vmatpush2.msra.mxu0 0.0
      %3766 = vmatprep.subr.mxu0 0.0
      %3767 = vmatpush2.msra.mxu0 0.0
      %3768 = vmatprep.subr.mxu0 0.0
      %3769 = vmatpush2.msra.mxu0 0.0
      %3770 = vmatprep.subr.mxu0 0.0
      %3771 = vmatpush2.msra.mxu0 0.0
      %3772 = vmatprep.subr.mxu0 0.0
      %3773 = vmatpush2.msra.mxu0 0.0
      %3774 = vmatprep.subr.mxu0 0.0
      %3775 = vmatpush2.msra.mxu0 0.0
      %3776 = vmatprep.subr.mxu0 0.0
      %3777 = vmatpush2.msra.mxu0 0.0
      %3778 = vmatprep.subr.mxu0 0.0
      %3779 = vmatpush2.msra.mxu0 0.0
      %3780 = vmatprep.subr.mxu0 0.0
      %3781 = vmatpush2.msra.mxu0 0.0
      %3782 = vmatprep.subr.mxu0 0.0
      %3783 = vmatpush2.msra.mxu0 0.0
      %3784 = vmatprep.subr.mxu0 0.0
      %3785 = vmatpush2.msra.mxu0 0.0
      %3786 = vmatprep.mubr.f32.mxu0 0.0
      %3787 = vmatmul.mubr.f32.gmra.mxu0 %v3626
      %v3788 = vpop.f32.mrf.mxu0
      %v3789 = vadd.f32 0.0, %v3788
      %v3790 = vpop.f32.mrf.mxu0
      %3791 = vmatprep.mubr.f32.mxu0 0.0
      %3792 = vmatmul.mubr.f32.gmra.mxu0 %v3629
      %v3793 = vpop.f32.mrf.mxu0
      %v3794 = vadd.f32 0.0, %v3793
      %v3795 = vpop.f32.mrf.mxu0
      %3796 = vmatprep.mubr.f32.mxu0 0.0
      %3797 = vmatmul.mubr.f32.gmra.mxu0 %v3632
      %v3798 = vpop.f32.mrf.mxu0
      %v3799 = vadd.f32 0.0, %v3798
      %v3800 = vpop.f32.mrf.mxu0
      %3801 = vmatprep.mubr.f32.mxu0 0.0
      %3802 = vmatmul.mubr.f32.gmra.mxu0 %v3635
      %v3803 = vpop.f32.mrf.mxu0
      %v3804 = vadd.f32 0.0, %v3803
      %v3805 = vpop.f32.mrf.mxu0
      %3806 = vdwg.mxu0
      %3807 = vmatprep.subr.mxu0 0.0
      %3808 = vmatpush1.msra.mxu0 0.0
      %3809 = vmatprep.subr.mxu0 0.0
      %3810 = vmatpush1.msra.mxu0 0.0
      %3811 = vmatprep.subr.mxu0 0.0
      %3812 = vmatpush1.msra.mxu0 0.0
      %3813 = vmatprep.subr.mxu0 0.0
      %3814 = vmatpush1.msra.mxu0 0.0
      %3815 = vmatprep.subr.mxu0 0.0
      %3816 = vmatpush1.msra.mxu0 0.0
      %3817 = vmatprep.subr.mxu0 0.0
      %3818 = vmatpush1.msra.mxu0 0.0
      %3819 = vmatprep.subr.mxu0 0.0
      %3820 = vmatpush1.msra.mxu0 0.0
      %3821 = vmatprep.subr.mxu0 0.0
      %3822 = vmatpush1.msra.mxu0 0.0
      %3823 = vmatprep.subr.mxu0 0.0
      %3824 = vmatpush1.msra.mxu0 0.0
      %3825 = vmatprep.subr.mxu0 0.0
      %3826 = vmatpush1.msra.mxu0 0.0
      %3827 = vmatprep.subr.mxu0 0.0
      %3828 = vmatpush1.msra.mxu0 0.0
      %3829 = vmatprep.subr.mxu0 0.0
      %3830 = vmatpush1.msra.mxu0 0.0
      %3831 = vmatprep.subr.mxu0 0.0
      %3832 = vmatpush1.msra.mxu0 %v1783
      %3833 = vmatprep.subr.mxu0 0.0
      %3834 = vmatpush1.msra.mxu0 %v1782
      %3835 = vmatprep.subr.mxu0 0.0
      %3836 = vmatpush1.msra.mxu0 %v1781
      %3837 = vmatprep.subr.mxu0 0.0
      %3838 = vmatpush1.msra.mxu0 %v1780
      %3839 = vmatprep.subr.mxu0 0.0
      %3840 = vmatpush2.msra.mxu0 0.0
      %3841 = vmatprep.subr.mxu0 0.0
      %3842 = vmatpush2.msra.mxu0 0.0
      %3843 = vmatprep.subr.mxu0 0.0
      %3844 = vmatpush2.msra.mxu0 0.0
      %3845 = vmatprep.subr.mxu0 0.0
      %3846 = vmatpush2.msra.mxu0 0.0
      %3847 = vmatprep.subr.mxu0 0.0
      %3848 = vmatpush2.msra.mxu0 0.0
      %3849 = vmatprep.subr.mxu0 0.0
      %3850 = vmatpush2.msra.mxu0 0.0
      %3851 = vmatprep.subr.mxu0 0.0
      %3852 = vmatpush2.msra.mxu0 0.0
      %3853 = vmatprep.subr.mxu0 0.0
      %3854 = vmatpush2.msra.mxu0 0.0
      %3855 = vmatprep.subr.mxu0 0.0
      %3856 = vmatpush2.msra.mxu0 0.0
      %3857 = vmatprep.subr.mxu0 0.0
      %3858 = vmatpush2.msra.mxu0 0.0
      %3859 = vmatprep.subr.mxu0 0.0
      %3860 = vmatpush2.msra.mxu0 0.0
      %3861 = vmatprep.subr.mxu0 0.0
      %3862 = vmatpush2.msra.mxu0 0.0
      %3863 = vmatprep.subr.mxu0 0.0
      %3864 = vmatpush2.msra.mxu0 0.0
      %3865 = vmatprep.subr.mxu0 0.0
      %3866 = vmatpush2.msra.mxu0 0.0
      %3867 = vmatprep.subr.mxu0 0.0
      %3868 = vmatpush2.msra.mxu0 0.0
      %3869 = vmatprep.subr.mxu0 0.0
      %3870 = vmatpush2.msra.mxu0 0.0
      %3871 = vmatprep.mubr.f32.mxu0 0.0
      %3872 = vmatmul.mubr.f32.gmra.mxu0 %v3626
      %v3873 = vpop.f32.mrf.mxu0
      %v3874 = vadd.f32 %v1790, %v3873
      %v3875 = vpop.f32.mrf.mxu0
      %3876 = vmatprep.mubr.f32.mxu0 0.0
      %3877 = vmatmul.mubr.f32.gmra.mxu0 %v3629
      %v3878 = vpop.f32.mrf.mxu0
      %v3879 = vadd.f32 %v1790, %v3878
      %v3880 = vpop.f32.mrf.mxu0
      %3881 = vmatprep.mubr.f32.mxu0 0.0
      %3882 = vmatmul.mubr.f32.gmra.mxu0 %v3632
      %v3883 = vpop.f32.mrf.mxu0
      %v3884 = vadd.f32 %v1790, %v3883
      %v3885 = vpop.f32.mrf.mxu0
      %3886 = vmatprep.mubr.f32.mxu0 0.0
      %3887 = vmatmul.mubr.f32.gmra.mxu0 %v3635
      %v3888 = vpop.f32.mrf.mxu0
      %v3889 = vadd.f32 %v1790, %v3888
      %v3890 = vpop.f32.mrf.mxu0
      %3891 = vdwg.mxu0
      %v3892 = vadd.f32 %v3611, %v3704
      %v3893 = vadd.f32 %v3612, %v3709
      %v3894 = vadd.f32 %v3613, %v3714
      %v3895 = vadd.f32 %v3614, %v3719
      %v3896 = vxor.u32 %v3892, 2147483648
      %v3897 = vxor.u32 %v3893, 2147483648
      %v3898 = vxor.u32 %v3894, 2147483648
      %v3899 = vxor.u32 %v3895, 2147483648
      %v3900 = vmul.f32 %v3896, 1.442695
      %v3901 = vpow.pop %v3900
      %v3902 = vmul.f32 %v3897, 1.442695
      %v3903 = vpow.pop %v3902
      %v3904 = vmul.f32 %v3898, 1.442695
      %v3905 = vpow.pop %v3904
      %v3906 = vmul.f32 %v3899, 1.442695
      %v3907 = vpow.pop %v3906
      %v3908 = vadd.f32 %v3901, 1.0
      %v3909 = vadd.f32 %v3903, 1.0
      %v3910 = vadd.f32 %v3905, 1.0
      %v3911 = vadd.f32 %v3907, 1.0
      %v3912 = vrcp.pop %v3908
      %v3913 = vmul.f32 1.0, %v3912
      %v3914 = vrcp.pop %v3909
      %v3915 = vmul.f32 1.0, %v3914
      %v3916 = vrcp.pop %v3910
      %v3917 = vmul.f32 1.0, %v3916
      %v3918 = vrcp.pop %v3911
      %v3919 = vmul.f32 1.0, %v3918
      %v3920 = vadd.f32 %v3616, %v3789
      %v3921 = vadd.f32 %v3617, %v3794
      %v3922 = vadd.f32 %v3618, %v3799
      %v3923 = vadd.f32 %v3619, %v3804
      %v3924 = vxor.u32 %v3920, 2147483648
      %v3925 = vxor.u32 %v3921, 2147483648
      %v3926 = vxor.u32 %v3922, 2147483648
      %v3927 = vxor.u32 %v3923, 2147483648
      %v3928 = vmul.f32 %v3924, 1.442695
      %v3929 = vpow.pop %v3928
      %v3930 = vmul.f32 %v3925, 1.442695
      %v3931 = vpow.pop %v3930
      %v3932 = vmul.f32 %v3926, 1.442695
      %v3933 = vpow.pop %v3932
      %v3934 = vmul.f32 %v3927, 1.442695
      %v3935 = vpow.pop %v3934
      %v3936 = vadd.f32 %v3929, 1.0
      %v3937 = vadd.f32 %v3931, 1.0
      %v3938 = vadd.f32 %v3933, 1.0
      %v3939 = vadd.f32 %v3935, 1.0
      %v3940 = vrcp.pop %v3936
      %v3941 = vmul.f32 1.0, %v3940
      %v3942 = vrcp.pop %v3937
      %v3943 = vmul.f32 1.0, %v3942
      %v3944 = vrcp.pop %v3938
      %v3945 = vmul.f32 1.0, %v3944
      %v3946 = vrcp.pop %v3939
      %v3947 = vmul.f32 1.0, %v3946
      %v3948 = vmul.f32 %v3913, %v3874
      %v3949 = vmul.f32 %v3915, %v3879
      %v3950 = vmul.f32 %v3917, %v3884
      %v3951 = vmul.f32 %v3919, %v3889
      %v3952 = vadd.f32 %v3621, %v3948
      %v3953 = vadd.f32 %v3622, %v3949
      %v3954 = vadd.f32 %v3623, %v3950
      %v3955 = vadd.f32 %v3624, %v3951
      %v3956 = vtanh.pop %v3952
      %v3957 = vtanh.pop %v3953
      %v3958 = vtanh.pop %v3954
      %v3959 = vtanh.pop %v3955
      %v3960 = vsub.f32 1.0, %v3941
      %v3961 = vsub.f32 1.0, %v3943
      %v3962 = vsub.f32 1.0, %v3945
      %v3963 = vsub.f32 1.0, %v3947
      %v3964 = vmul.f32 %v3960, %v3956
      %v3965 = vmul.f32 %v3961, %v3957
      %v3966 = vmul.f32 %v3962, %v3958
      %v3967 = vmul.f32 %v3963, %v3959
      %v3968 = vmul.f32 %v3941, %v3606
      %v3969 = vmul.f32 %v3943, %v3607
      %v3970 = vmul.f32 %v3945, %v3608
      %v3971 = vmul.f32 %v3947, %v3609
      %v3972 = vadd.f32 %v3964, %v3968
      %v3973 = vadd.f32 %v3965, %v3969
      %v3974 = vadd.f32 %v3966, %v3970
      %v3975 = vadd.f32 %v3967, %v3971
      %s3976 = scalar_lea.vmem [#allocation2], 192
      %v3977 = vld [vmem:[%s3976] sm:$0xff]
      %v3978 = vld [vmem:[%s3976 + $0x8] sm:$0xff]
      %v3979 = vld [vmem:[%s3976 + $0x10] sm:$0xff]
      %v3980 = vld [vmem:[%s3976 + $0x18] sm:$0xff]
      %s3981 = scalar_lea.vmem [#allocation3], 192
      %v3982 = vld [vmem:[%s3981] sm:$0xff]
      %v3983 = vld [vmem:[%s3981 + $0x8] sm:$0xff]
      %v3984 = vld [vmem:[%s3981 + $0x10] sm:$0xff]
      %v3985 = vld [vmem:[%s3981 + $0x18] sm:$0xff]
      %s3986 = scalar_lea.vmem [#allocation4], 192
      %v3987 = vld [vmem:[%s3986] sm:$0xff]
      %v3988 = vld [vmem:[%s3986 + $0x8] sm:$0xff]
      %v3989 = vld [vmem:[%s3986 + $0x10] sm:$0xff]
      %v3990 = vld [vmem:[%s3986 + $0x18] sm:$0xff]
      %v3992 = vsel %vm873, %v3972, 0
      %v3995 = vsel %vm873, %v3973, 0
      %v3998 = vsel %vm873, %v3974, 0
      %v4001 = vsel %vm873, %v3975, 0
      %4003 = vmatprep.subr.mxu0 0.0
      %4004 = vmatpush1.msra.mxu0 0.0
      %4005 = vmatprep.subr.mxu0 0.0
      %4006 = vmatpush1.msra.mxu0 0.0
      %4007 = vmatprep.subr.mxu0 0.0
      %4008 = vmatpush1.msra.mxu0 0.0
      %4009 = vmatprep.subr.mxu0 0.0
      %4010 = vmatpush1.msra.mxu0 0.0
      %4011 = vmatprep.subr.mxu0 0.0
      %4012 = vmatpush1.msra.mxu0 0.0
      %4013 = vmatprep.subr.mxu0 0.0
      %4014 = vmatpush1.msra.mxu0 0.0
      %4015 = vmatprep.subr.mxu0 0.0
      %4016 = vmatpush1.msra.mxu0 0.0
      %4017 = vmatprep.subr.mxu0 0.0
      %4018 = vmatpush1.msra.mxu0 0.0
      %4019 = vmatprep.subr.mxu0 0.0
      %4020 = vmatpush1.msra.mxu0 0.0
      %4021 = vmatprep.subr.mxu0 0.0
      %4022 = vmatpush1.msra.mxu0 0.0
      %4023 = vmatprep.subr.mxu0 0.0
      %4024 = vmatpush1.msra.mxu0 0.0
      %4025 = vmatprep.subr.mxu0 0.0
      %4026 = vmatpush1.msra.mxu0 0.0
      %4027 = vmatprep.subr.mxu0 0.0
      %4028 = vmatpush1.msra.mxu0 %v1773
      %4029 = vmatprep.subr.mxu0 0.0
      %4030 = vmatpush1.msra.mxu0 %v1772
      %4031 = vmatprep.subr.mxu0 0.0
      %4032 = vmatpush1.msra.mxu0 %v1771
      %4033 = vmatprep.subr.mxu0 0.0
      %4034 = vmatpush1.msra.mxu0 %v1770
      %4035 = vmatprep.subr.mxu0 0.0
      %4036 = vmatpush2.msra.mxu0 0.0
      %4037 = vmatprep.subr.mxu0 0.0
      %4038 = vmatpush2.msra.mxu0 0.0
      %4039 = vmatprep.subr.mxu0 0.0
      %4040 = vmatpush2.msra.mxu0 0.0
      %4041 = vmatprep.subr.mxu0 0.0
      %4042 = vmatpush2.msra.mxu0 0.0
      %4043 = vmatprep.subr.mxu0 0.0
      %4044 = vmatpush2.msra.mxu0 0.0
      %4045 = vmatprep.subr.mxu0 0.0
      %4046 = vmatpush2.msra.mxu0 0.0
      %4047 = vmatprep.subr.mxu0 0.0
      %4048 = vmatpush2.msra.mxu0 0.0
      %4049 = vmatprep.subr.mxu0 0.0
      %4050 = vmatpush2.msra.mxu0 0.0
      %4051 = vmatprep.subr.mxu0 0.0
      %4052 = vmatpush2.msra.mxu0 0.0
      %4053 = vmatprep.subr.mxu0 0.0
      %4054 = vmatpush2.msra.mxu0 0.0
      %4055 = vmatprep.subr.mxu0 0.0
      %4056 = vmatpush2.msra.mxu0 0.0
      %4057 = vmatprep.subr.mxu0 0.0
      %4058 = vmatpush2.msra.mxu0 0.0
      %4059 = vmatprep.subr.mxu0 0.0
      %4060 = vmatpush2.msra.mxu0 0.0
      %4061 = vmatprep.subr.mxu0 0.0
      %4062 = vmatpush2.msra.mxu0 0.0
      %4063 = vmatprep.subr.mxu0 0.0
      %4064 = vmatpush2.msra.mxu0 0.0
      %4065 = vmatprep.subr.mxu0 0.0
      %4066 = vmatpush2.msra.mxu0 0.0
      %4067 = vmatprep.mubr.f32.mxu0 0.0
      %4068 = vmatmul.mubr.f32.gmra.mxu0 %v3992
      %v4069 = vpop.f32.mrf.mxu0
      %v4070 = vadd.f32 0.0, %v4069
      %v4071 = vpop.f32.mrf.mxu0
      %4072 = vmatprep.mubr.f32.mxu0 0.0
      %4073 = vmatmul.mubr.f32.gmra.mxu0 %v3995
      %v4074 = vpop.f32.mrf.mxu0
      %v4075 = vadd.f32 0.0, %v4074
      %v4076 = vpop.f32.mrf.mxu0
      %4077 = vmatprep.mubr.f32.mxu0 0.0
      %4078 = vmatmul.mubr.f32.gmra.mxu0 %v3998
      %v4079 = vpop.f32.mrf.mxu0
      %v4080 = vadd.f32 0.0, %v4079
      %v4081 = vpop.f32.mrf.mxu0
      %4082 = vmatprep.mubr.f32.mxu0 0.0
      %4083 = vmatmul.mubr.f32.gmra.mxu0 %v4001
      %v4084 = vpop.f32.mrf.mxu0
      %v4085 = vadd.f32 0.0, %v4084
      %v4086 = vpop.f32.mrf.mxu0
      %4087 = vdwg.mxu0
      %4088 = vmatprep.subr.mxu0 0.0
      %4089 = vmatpush1.msra.mxu0 0.0
      %4090 = vmatprep.subr.mxu0 0.0
      %4091 = vmatpush1.msra.mxu0 0.0
      %4092 = vmatprep.subr.mxu0 0.0
      %4093 = vmatpush1.msra.mxu0 0.0
      %4094 = vmatprep.subr.mxu0 0.0
      %4095 = vmatpush1.msra.mxu0 0.0
      %4096 = vmatprep.subr.mxu0 0.0
      %4097 = vmatpush1.msra.mxu0 0.0
      %4098 = vmatprep.subr.mxu0 0.0
      %4099 = vmatpush1.msra.mxu0 0.0
      %4100 = vmatprep.subr.mxu0 0.0
      %4101 = vmatpush1.msra.mxu0 0.0
      %4102 = vmatprep.subr.mxu0 0.0
      %4103 = vmatpush1.msra.mxu0 0.0
      %4104 = vmatprep.subr.mxu0 0.0
      %4105 = vmatpush1.msra.mxu0 0.0
      %4106 = vmatprep.subr.mxu0 0.0
      %4107 = vmatpush1.msra.mxu0 0.0
      %4108 = vmatprep.subr.mxu0 0.0
      %4109 = vmatpush1.msra.mxu0 0.0
      %4110 = vmatprep.subr.mxu0 0.0
      %4111 = vmatpush1.msra.mxu0 0.0
      %4112 = vmatprep.subr.mxu0 0.0
      %4113 = vmatpush1.msra.mxu0 %v1778
      %4114 = vmatprep.subr.mxu0 0.0
      %4115 = vmatpush1.msra.mxu0 %v1777
      %4116 = vmatprep.subr.mxu0 0.0
      %4117 = vmatpush1.msra.mxu0 %v1776
      %4118 = vmatprep.subr.mxu0 0.0
      %4119 = vmatpush1.msra.mxu0 %v1775
      %4120 = vmatprep.subr.mxu0 0.0
      %4121 = vmatpush2.msra.mxu0 0.0
      %4122 = vmatprep.subr.mxu0 0.0
      %4123 = vmatpush2.msra.mxu0 0.0
      %4124 = vmatprep.subr.mxu0 0.0
      %4125 = vmatpush2.msra.mxu0 0.0
      %4126 = vmatprep.subr.mxu0 0.0
      %4127 = vmatpush2.msra.mxu0 0.0
      %4128 = vmatprep.subr.mxu0 0.0
      %4129 = vmatpush2.msra.mxu0 0.0
      %4130 = vmatprep.subr.mxu0 0.0
      %4131 = vmatpush2.msra.mxu0 0.0
      %4132 = vmatprep.subr.mxu0 0.0
      %4133 = vmatpush2.msra.mxu0 0.0
      %4134 = vmatprep.subr.mxu0 0.0
      %4135 = vmatpush2.msra.mxu0 0.0
      %4136 = vmatprep.subr.mxu0 0.0
      %4137 = vmatpush2.msra.mxu0 0.0
      %4138 = vmatprep.subr.mxu0 0.0
      %4139 = vmatpush2.msra.mxu0 0.0
      %4140 = vmatprep.subr.mxu0 0.0
      %4141 = vmatpush2.msra.mxu0 0.0
      %4142 = vmatprep.subr.mxu0 0.0
      %4143 = vmatpush2.msra.mxu0 0.0
      %4144 = vmatprep.subr.mxu0 0.0
      %4145 = vmatpush2.msra.mxu0 0.0
      %4146 = vmatprep.subr.mxu0 0.0
      %4147 = vmatpush2.msra.mxu0 0.0
      %4148 = vmatprep.subr.mxu0 0.0
      %4149 = vmatpush2.msra.mxu0 0.0
      %4150 = vmatprep.subr.mxu0 0.0
      %4151 = vmatpush2.msra.mxu0 0.0
      %4152 = vmatprep.mubr.f32.mxu0 0.0
      %4153 = vmatmul.mubr.f32.gmra.mxu0 %v3992
      %v4154 = vpop.f32.mrf.mxu0
      %v4155 = vadd.f32 0.0, %v4154
      %v4156 = vpop.f32.mrf.mxu0
      %4157 = vmatprep.mubr.f32.mxu0 0.0
      %4158 = vmatmul.mubr.f32.gmra.mxu0 %v3995
      %v4159 = vpop.f32.mrf.mxu0
      %v4160 = vadd.f32 0.0, %v4159
      %v4161 = vpop.f32.mrf.mxu0
      %4162 = vmatprep.mubr.f32.mxu0 0.0
      %4163 = vmatmul.mubr.f32.gmra.mxu0 %v3998
      %v4164 = vpop.f32.mrf.mxu0
      %v4165 = vadd.f32 0.0, %v4164
      %v4166 = vpop.f32.mrf.mxu0
      %4167 = vmatprep.mubr.f32.mxu0 0.0
      %4168 = vmatmul.mubr.f32.gmra.mxu0 %v4001
      %v4169 = vpop.f32.mrf.mxu0
      %v4170 = vadd.f32 0.0, %v4169
      %v4171 = vpop.f32.mrf.mxu0
      %4172 = vdwg.mxu0
      %4173 = vmatprep.subr.mxu0 0.0
      %4174 = vmatpush1.msra.mxu0 0.0
      %4175 = vmatprep.subr.mxu0 0.0
      %4176 = vmatpush1.msra.mxu0 0.0
      %4177 = vmatprep.subr.mxu0 0.0
      %4178 = vmatpush1.msra.mxu0 0.0
      %4179 = vmatprep.subr.mxu0 0.0
      %4180 = vmatpush1.msra.mxu0 0.0
      %4181 = vmatprep.subr.mxu0 0.0
      %4182 = vmatpush1.msra.mxu0 0.0
      %4183 = vmatprep.subr.mxu0 0.0
      %4184 = vmatpush1.msra.mxu0 0.0
      %4185 = vmatprep.subr.mxu0 0.0
      %4186 = vmatpush1.msra.mxu0 0.0
      %4187 = vmatprep.subr.mxu0 0.0
      %4188 = vmatpush1.msra.mxu0 0.0
      %4189 = vmatprep.subr.mxu0 0.0
      %4190 = vmatpush1.msra.mxu0 0.0
      %4191 = vmatprep.subr.mxu0 0.0
      %4192 = vmatpush1.msra.mxu0 0.0
      %4193 = vmatprep.subr.mxu0 0.0
      %4194 = vmatpush1.msra.mxu0 0.0
      %4195 = vmatprep.subr.mxu0 0.0
      %4196 = vmatpush1.msra.mxu0 0.0
      %4197 = vmatprep.subr.mxu0 0.0
      %4198 = vmatpush1.msra.mxu0 %v1783
      %4199 = vmatprep.subr.mxu0 0.0
      %4200 = vmatpush1.msra.mxu0 %v1782
      %4201 = vmatprep.subr.mxu0 0.0
      %4202 = vmatpush1.msra.mxu0 %v1781
      %4203 = vmatprep.subr.mxu0 0.0
      %4204 = vmatpush1.msra.mxu0 %v1780
      %4205 = vmatprep.subr.mxu0 0.0
      %4206 = vmatpush2.msra.mxu0 0.0
      %4207 = vmatprep.subr.mxu0 0.0
      %4208 = vmatpush2.msra.mxu0 0.0
      %4209 = vmatprep.subr.mxu0 0.0
      %4210 = vmatpush2.msra.mxu0 0.0
      %4211 = vmatprep.subr.mxu0 0.0
      %4212 = vmatpush2.msra.mxu0 0.0
      %4213 = vmatprep.subr.mxu0 0.0
      %4214 = vmatpush2.msra.mxu0 0.0
      %4215 = vmatprep.subr.mxu0 0.0
      %4216 = vmatpush2.msra.mxu0 0.0
      %4217 = vmatprep.subr.mxu0 0.0
      %4218 = vmatpush2.msra.mxu0 0.0
      %4219 = vmatprep.subr.mxu0 0.0
      %4220 = vmatpush2.msra.mxu0 0.0
      %4221 = vmatprep.subr.mxu0 0.0
      %4222 = vmatpush2.msra.mxu0 0.0
      %4223 = vmatprep.subr.mxu0 0.0
      %4224 = vmatpush2.msra.mxu0 0.0
      %4225 = vmatprep.subr.mxu0 0.0
      %4226 = vmatpush2.msra.mxu0 0.0
      %4227 = vmatprep.subr.mxu0 0.0
      %4228 = vmatpush2.msra.mxu0 0.0
      %4229 = vmatprep.subr.mxu0 0.0
      %4230 = vmatpush2.msra.mxu0 0.0
      %4231 = vmatprep.subr.mxu0 0.0
      %4232 = vmatpush2.msra.mxu0 0.0
      %4233 = vmatprep.subr.mxu0 0.0
      %4234 = vmatpush2.msra.mxu0 0.0
      %4235 = vmatprep.subr.mxu0 0.0
      %4236 = vmatpush2.msra.mxu0 0.0
      %4237 = vmatprep.mubr.f32.mxu0 0.0
      %4238 = vmatmul.mubr.f32.gmra.mxu0 %v3992
      %v4239 = vpop.f32.mrf.mxu0
      %v4240 = vadd.f32 %v1790, %v4239
      %v4241 = vpop.f32.mrf.mxu0
      %4242 = vmatprep.mubr.f32.mxu0 0.0
      %4243 = vmatmul.mubr.f32.gmra.mxu0 %v3995
      %v4244 = vpop.f32.mrf.mxu0
      %v4245 = vadd.f32 %v1790, %v4244
      %v4246 = vpop.f32.mrf.mxu0
      %4247 = vmatprep.mubr.f32.mxu0 0.0
      %4248 = vmatmul.mubr.f32.gmra.mxu0 %v3998
      %v4249 = vpop.f32.mrf.mxu0
      %v4250 = vadd.f32 %v1790, %v4249
      %v4251 = vpop.f32.mrf.mxu0
      %4252 = vmatprep.mubr.f32.mxu0 0.0
      %4253 = vmatmul.mubr.f32.gmra.mxu0 %v4001
      %v4254 = vpop.f32.mrf.mxu0
      %v4255 = vadd.f32 %v1790, %v4254
      %v4256 = vpop.f32.mrf.mxu0
      %4257 = vdwg.mxu0
      %v4258 = vadd.f32 %v3977, %v4070
      %v4259 = vadd.f32 %v3978, %v4075
      %v4260 = vadd.f32 %v3979, %v4080
      %v4261 = vadd.f32 %v3980, %v4085
      %v4262 = vxor.u32 %v4258, 2147483648
      %v4263 = vxor.u32 %v4259, 2147483648
      %v4264 = vxor.u32 %v4260, 2147483648
      %v4265 = vxor.u32 %v4261, 2147483648
      %v4266 = vmul.f32 %v4262, 1.442695
      %v4267 = vpow.pop %v4266
      %v4268 = vmul.f32 %v4263, 1.442695
      %v4269 = vpow.pop %v4268
      %v4270 = vmul.f32 %v4264, 1.442695
      %v4271 = vpow.pop %v4270
      %v4272 = vmul.f32 %v4265, 1.442695
      %v4273 = vpow.pop %v4272
      %v4274 = vadd.f32 %v4267, 1.0
      %v4275 = vadd.f32 %v4269, 1.0
      %v4276 = vadd.f32 %v4271, 1.0
      %v4277 = vadd.f32 %v4273, 1.0
      %v4278 = vrcp.pop %v4274
      %v4279 = vmul.f32 1.0, %v4278
      %v4280 = vrcp.pop %v4275
      %v4281 = vmul.f32 1.0, %v4280
      %v4282 = vrcp.pop %v4276
      %v4283 = vmul.f32 1.0, %v4282
      %v4284 = vrcp.pop %v4277
      %v4285 = vmul.f32 1.0, %v4284
      %v4286 = vadd.f32 %v3982, %v4155
      %v4287 = vadd.f32 %v3983, %v4160
      %v4288 = vadd.f32 %v3984, %v4165
      %v4289 = vadd.f32 %v3985, %v4170
      %v4290 = vxor.u32 %v4286, 2147483648
      %v4291 = vxor.u32 %v4287, 2147483648
      %v4292 = vxor.u32 %v4288, 2147483648
      %v4293 = vxor.u32 %v4289, 2147483648
      %v4294 = vmul.f32 %v4290, 1.442695
      %v4295 = vpow.pop %v4294
      %v4296 = vmul.f32 %v4291, 1.442695
      %v4297 = vpow.pop %v4296
      %v4298 = vmul.f32 %v4292, 1.442695
      %v4299 = vpow.pop %v4298
      %v4300 = vmul.f32 %v4293, 1.442695
      %v4301 = vpow.pop %v4300
      %v4302 = vadd.f32 %v4295, 1.0
      %v4303 = vadd.f32 %v4297, 1.0
      %v4304 = vadd.f32 %v4299, 1.0
      %v4305 = vadd.f32 %v4301, 1.0
      %v4306 = vrcp.pop %v4302
      %v4307 = vmul.f32 1.0, %v4306
      %v4308 = vrcp.pop %v4303
      %v4309 = vmul.f32 1.0, %v4308
      %v4310 = vrcp.pop %v4304
      %v4311 = vmul.f32 1.0, %v4310
      %v4312 = vrcp.pop %v4305
      %v4313 = vmul.f32 1.0, %v4312
      %v4314 = vmul.f32 %v4279, %v4240
      %v4315 = vmul.f32 %v4281, %v4245
      %v4316 = vmul.f32 %v4283, %v4250
      %v4317 = vmul.f32 %v4285, %v4255
      %v4318 = vadd.f32 %v3987, %v4314
      %v4319 = vadd.f32 %v3988, %v4315
      %v4320 = vadd.f32 %v3989, %v4316
      %v4321 = vadd.f32 %v3990, %v4317
      %v4322 = vtanh.pop %v4318
      %v4323 = vtanh.pop %v4319
      %v4324 = vtanh.pop %v4320
      %v4325 = vtanh.pop %v4321
      %v4326 = vsub.f32 1.0, %v4307
      %v4327 = vsub.f32 1.0, %v4309
      %v4328 = vsub.f32 1.0, %v4311
      %v4329 = vsub.f32 1.0, %v4313
      %v4330 = vmul.f32 %v4326, %v4322
      %v4331 = vmul.f32 %v4327, %v4323
      %v4332 = vmul.f32 %v4328, %v4324
      %v4333 = vmul.f32 %v4329, %v4325
      %v4334 = vmul.f32 %v4307, %v3972
      %v4335 = vmul.f32 %v4309, %v3973
      %v4336 = vmul.f32 %v4311, %v3974
      %v4337 = vmul.f32 %v4313, %v3975
      %v4338 = vadd.f32 %v4330, %v4334
      %v4339 = vadd.f32 %v4331, %v4335
      %v4340 = vadd.f32 %v4332, %v4336
      %v4341 = vadd.f32 %v4333, %v4337
      %s4342 = scalar_lea.vmem [#allocation2], 224
      %v4343 = vld [vmem:[%s4342] sm:$0xff]
      %v4344 = vld [vmem:[%s4342 + $0x8] sm:$0xff]
      %v4345 = vld [vmem:[%s4342 + $0x10] sm:$0xff]
      %v4346 = vld [vmem:[%s4342 + $0x18] sm:$0xff]
      %s4347 = scalar_lea.vmem [#allocation3], 224
      %v4348 = vld [vmem:[%s4347] sm:$0xff]
      %v4349 = vld [vmem:[%s4347 + $0x8] sm:$0xff]
      %v4350 = vld [vmem:[%s4347 + $0x10] sm:$0xff]
      %v4351 = vld [vmem:[%s4347 + $0x18] sm:$0xff]
      %s4352 = scalar_lea.vmem [#allocation4], 224
      %v4353 = vld [vmem:[%s4352] sm:$0xff]
      %v4354 = vld [vmem:[%s4352 + $0x8] sm:$0xff]
      %v4355 = vld [vmem:[%s4352 + $0x10] sm:$0xff]
      %v4356 = vld [vmem:[%s4352 + $0x18] sm:$0xff]
      %v4358 = vsel %vm873, %v4338, 0
      %v4361 = vsel %vm873, %v4339, 0
      %v4364 = vsel %vm873, %v4340, 0
      %v4367 = vsel %vm873, %v4341, 0
      %4369 = vmatprep.subr.mxu0 0.0
      %4370 = vmatpush1.msra.mxu0 0.0
      %4371 = vmatprep.subr.mxu0 0.0
      %4372 = vmatpush1.msra.mxu0 0.0
      %4373 = vmatprep.subr.mxu0 0.0
      %4374 = vmatpush1.msra.mxu0 0.0
      %4375 = vmatprep.subr.mxu0 0.0
      %4376 = vmatpush1.msra.mxu0 0.0
      %4377 = vmatprep.subr.mxu0 0.0
      %4378 = vmatpush1.msra.mxu0 0.0
      %4379 = vmatprep.subr.mxu0 0.0
      %4380 = vmatpush1.msra.mxu0 0.0
      %4381 = vmatprep.subr.mxu0 0.0
      %4382 = vmatpush1.msra.mxu0 0.0
      %4383 = vmatprep.subr.mxu0 0.0
      %4384 = vmatpush1.msra.mxu0 0.0
      %4385 = vmatprep.subr.mxu0 0.0
      %4386 = vmatpush1.msra.mxu0 0.0
      %4387 = vmatprep.subr.mxu0 0.0
      %4388 = vmatpush1.msra.mxu0 0.0
      %4389 = vmatprep.subr.mxu0 0.0
      %4390 = vmatpush1.msra.mxu0 0.0
      %4391 = vmatprep.subr.mxu0 0.0
      %4392 = vmatpush1.msra.mxu0 0.0
      %4393 = vmatprep.subr.mxu0 0.0
      %4394 = vmatpush1.msra.mxu0 %v1773
      %4395 = vmatprep.subr.mxu0 0.0
      %4396 = vmatpush1.msra.mxu0 %v1772
      %4397 = vmatprep.subr.mxu0 0.0
      %4398 = vmatpush1.msra.mxu0 %v1771
      %4399 = vmatprep.subr.mxu0 0.0
      %4400 = vmatpush1.msra.mxu0 %v1770
      %4401 = vmatprep.subr.mxu0 0.0
      %4402 = vmatpush2.msra.mxu0 0.0
      %4403 = vmatprep.subr.mxu0 0.0
      %4404 = vmatpush2.msra.mxu0 0.0
      %4405 = vmatprep.subr.mxu0 0.0
      %4406 = vmatpush2.msra.mxu0 0.0
      %4407 = vmatprep.subr.mxu0 0.0
      %4408 = vmatpush2.msra.mxu0 0.0
      %4409 = vmatprep.subr.mxu0 0.0
      %4410 = vmatpush2.msra.mxu0 0.0
      %4411 = vmatprep.subr.mxu0 0.0
      %4412 = vmatpush2.msra.mxu0 0.0
      %4413 = vmatprep.subr.mxu0 0.0
      %4414 = vmatpush2.msra.mxu0 0.0
      %4415 = vmatprep.subr.mxu0 0.0
      %4416 = vmatpush2.msra.mxu0 0.0
      %4417 = vmatprep.subr.mxu0 0.0
      %4418 = vmatpush2.msra.mxu0 0.0
      %4419 = vmatprep.subr.mxu0 0.0
      %4420 = vmatpush2.msra.mxu0 0.0
      %4421 = vmatprep.subr.mxu0 0.0
      %4422 = vmatpush2.msra.mxu0 0.0
      %4423 = vmatprep.subr.mxu0 0.0
      %4424 = vmatpush2.msra.mxu0 0.0
      %4425 = vmatprep.subr.mxu0 0.0
      %4426 = vmatpush2.msra.mxu0 0.0
      %4427 = vmatprep.subr.mxu0 0.0
      %4428 = vmatpush2.msra.mxu0 0.0
      %4429 = vmatprep.subr.mxu0 0.0
      %4430 = vmatpush2.msra.mxu0 0.0
      %4431 = vmatprep.subr.mxu0 0.0
      %4432 = vmatpush2.msra.mxu0 0.0
      %4433 = vmatprep.mubr.f32.mxu0 0.0
      %4434 = vmatmul.mubr.f32.gmra.mxu0 %v4358
      %v4435 = vpop.f32.mrf.mxu0
      %v4436 = vadd.f32 0.0, %v4435
      %v4437 = vpop.f32.mrf.mxu0
      %4438 = vmatprep.mubr.f32.mxu0 0.0
      %4439 = vmatmul.mubr.f32.gmra.mxu0 %v4361
      %v4440 = vpop.f32.mrf.mxu0
      %v4441 = vadd.f32 0.0, %v4440
      %v4442 = vpop.f32.mrf.mxu0
      %4443 = vmatprep.mubr.f32.mxu0 0.0
      %4444 = vmatmul.mubr.f32.gmra.mxu0 %v4364
      %v4445 = vpop.f32.mrf.mxu0
      %v4446 = vadd.f32 0.0, %v4445
      %v4447 = vpop.f32.mrf.mxu0
      %4448 = vmatprep.mubr.f32.mxu0 0.0
      %4449 = vmatmul.mubr.f32.gmra.mxu0 %v4367
      %v4450 = vpop.f32.mrf.mxu0
      %v4451 = vadd.f32 0.0, %v4450
      %v4452 = vpop.f32.mrf.mxu0
      %4453 = vdwg.mxu0
      %4454 = vmatprep.subr.mxu0 0.0
      %4455 = vmatpush1.msra.mxu0 0.0
      %4456 = vmatprep.subr.mxu0 0.0
      %4457 = vmatpush1.msra.mxu0 0.0
      %4458 = vmatprep.subr.mxu0 0.0
      %4459 = vmatpush1.msra.mxu0 0.0
      %4460 = vmatprep.subr.mxu0 0.0
      %4461 = vmatpush1.msra.mxu0 0.0
      %4462 = vmatprep.subr.mxu0 0.0
      %4463 = vmatpush1.msra.mxu0 0.0
      %4464 = vmatprep.subr.mxu0 0.0
      %4465 = vmatpush1.msra.mxu0 0.0
      %4466 = vmatprep.subr.mxu0 0.0
      %4467 = vmatpush1.msra.mxu0 0.0
      %4468 = vmatprep.subr.mxu0 0.0
      %4469 = vmatpush1.msra.mxu0 0.0
      %4470 = vmatprep.subr.mxu0 0.0
      %4471 = vmatpush1.msra.mxu0 0.0
      %4472 = vmatprep.subr.mxu0 0.0
      %4473 = vmatpush1.msra.mxu0 0.0
      %4474 = vmatprep.subr.mxu0 0.0
      %4475 = vmatpush1.msra.mxu0 0.0
      %4476 = vmatprep.subr.mxu0 0.0
      %4477 = vmatpush1.msra.mxu0 0.0
      %4478 = vmatprep.subr.mxu0 0.0
      %4479 = vmatpush1.msra.mxu0 %v1778
      %4480 = vmatprep.subr.mxu0 0.0
      %4481 = vmatpush1.msra.mxu0 %v1777
      %4482 = vmatprep.subr.mxu0 0.0
      %4483 = vmatpush1.msra.mxu0 %v1776
      %4484 = vmatprep.subr.mxu0 0.0
      %4485 = vmatpush1.msra.mxu0 %v1775
      %4486 = vmatprep.subr.mxu0 0.0
      %4487 = vmatpush2.msra.mxu0 0.0
      %4488 = vmatprep.subr.mxu0 0.0
      %4489 = vmatpush2.msra.mxu0 0.0
      %4490 = vmatprep.subr.mxu0 0.0
      %4491 = vmatpush2.msra.mxu0 0.0
      %4492 = vmatprep.subr.mxu0 0.0
      %4493 = vmatpush2.msra.mxu0 0.0
      %4494 = vmatprep.subr.mxu0 0.0
      %4495 = vmatpush2.msra.mxu0 0.0
      %4496 = vmatprep.subr.mxu0 0.0
      %4497 = vmatpush2.msra.mxu0 0.0
      %4498 = vmatprep.subr.mxu0 0.0
      %4499 = vmatpush2.msra.mxu0 0.0
      %4500 = vmatprep.subr.mxu0 0.0
      %4501 = vmatpush2.msra.mxu0 0.0
      %4502 = vmatprep.subr.mxu0 0.0
      %4503 = vmatpush2.msra.mxu0 0.0
      %4504 = vmatprep.subr.mxu0 0.0
      %4505 = vmatpush2.msra.mxu0 0.0
      %4506 = vmatprep.subr.mxu0 0.0
      %4507 = vmatpush2.msra.mxu0 0.0
      %4508 = vmatprep.subr.mxu0 0.0
      %4509 = vmatpush2.msra.mxu0 0.0
      %4510 = vmatprep.subr.mxu0 0.0
      %4511 = vmatpush2.msra.mxu0 0.0
      %4512 = vmatprep.subr.mxu0 0.0
      %4513 = vmatpush2.msra.mxu0 0.0
      %4514 = vmatprep.subr.mxu0 0.0
      %4515 = vmatpush2.msra.mxu0 0.0
      %4516 = vmatprep.subr.mxu0 0.0
      %4517 = vmatpush2.msra.mxu0 0.0
      %4518 = vmatprep.mubr.f32.mxu0 0.0
      %4519 = vmatmul.mubr.f32.gmra.mxu0 %v4358
      %v4520 = vpop.f32.mrf.mxu0
      %v4521 = vadd.f32 0.0, %v4520
      %v4522 = vpop.f32.mrf.mxu0
      %4523 = vmatprep.mubr.f32.mxu0 0.0
      %4524 = vmatmul.mubr.f32.gmra.mxu0 %v4361
      %v4525 = vpop.f32.mrf.mxu0
      %v4526 = vadd.f32 0.0, %v4525
      %v4527 = vpop.f32.mrf.mxu0
      %4528 = vmatprep.mubr.f32.mxu0 0.0
      %4529 = vmatmul.mubr.f32.gmra.mxu0 %v4364
      %v4530 = vpop.f32.mrf.mxu0
      %v4531 = vadd.f32 0.0, %v4530
      %v4532 = vpop.f32.mrf.mxu0
      %4533 = vmatprep.mubr.f32.mxu0 0.0
      %4534 = vmatmul.mubr.f32.gmra.mxu0 %v4367
      %v4535 = vpop.f32.mrf.mxu0
      %v4536 = vadd.f32 0.0, %v4535
      %v4537 = vpop.f32.mrf.mxu0
      %4538 = vdwg.mxu0
      %4539 = vmatprep.subr.mxu0 0.0
      %4540 = vmatpush1.msra.mxu0 0.0
      %4541 = vmatprep.subr.mxu0 0.0
      %4542 = vmatpush1.msra.mxu0 0.0
      %4543 = vmatprep.subr.mxu0 0.0
      %4544 = vmatpush1.msra.mxu0 0.0
      %4545 = vmatprep.subr.mxu0 0.0
      %4546 = vmatpush1.msra.mxu0 0.0
      %4547 = vmatprep.subr.mxu0 0.0
      %4548 = vmatpush1.msra.mxu0 0.0
      %4549 = vmatprep.subr.mxu0 0.0
      %4550 = vmatpush1.msra.mxu0 0.0
      %4551 = vmatprep.subr.mxu0 0.0
      %4552 = vmatpush1.msra.mxu0 0.0
      %4553 = vmatprep.subr.mxu0 0.0
      %4554 = vmatpush1.msra.mxu0 0.0
      %4555 = vmatprep.subr.mxu0 0.0
      %4556 = vmatpush1.msra.mxu0 0.0
      %4557 = vmatprep.subr.mxu0 0.0
      %4558 = vmatpush1.msra.mxu0 0.0
      %4559 = vmatprep.subr.mxu0 0.0
      %4560 = vmatpush1.msra.mxu0 0.0
      %4561 = vmatprep.subr.mxu0 0.0
      %4562 = vmatpush1.msra.mxu0 0.0
      %4563 = vmatprep.subr.mxu0 0.0
      %4564 = vmatpush1.msra.mxu0 %v1783
      %4565 = vmatprep.subr.mxu0 0.0
      %4566 = vmatpush1.msra.mxu0 %v1782
      %4567 = vmatprep.subr.mxu0 0.0
      %4568 = vmatpush1.msra.mxu0 %v1781
      %4569 = vmatprep.subr.mxu0 0.0
      %4570 = vmatpush1.msra.mxu0 %v1780
      %4571 = vmatprep.subr.mxu0 0.0
      %4572 = vmatpush2.msra.mxu0 0.0
      %4573 = vmatprep.subr.mxu0 0.0
      %4574 = vmatpush2.msra.mxu0 0.0
      %4575 = vmatprep.subr.mxu0 0.0
      %4576 = vmatpush2.msra.mxu0 0.0
      %4577 = vmatprep.subr.mxu0 0.0
      %4578 = vmatpush2.msra.mxu0 0.0
      %4579 = vmatprep.subr.mxu0 0.0
      %4580 = vmatpush2.msra.mxu0 0.0
      %4581 = vmatprep.subr.mxu0 0.0
      %4582 = vmatpush2.msra.mxu0 0.0
      %4583 = vmatprep.subr.mxu0 0.0
      %4584 = vmatpush2.msra.mxu0 0.0
      %4585 = vmatprep.subr.mxu0 0.0
      %4586 = vmatpush2.msra.mxu0 0.0
      %4587 = vmatprep.subr.mxu0 0.0
      %4588 = vmatpush2.msra.mxu0 0.0
      %4589 = vmatprep.subr.mxu0 0.0
      %4590 = vmatpush2.msra.mxu0 0.0
      %4591 = vmatprep.subr.mxu0 0.0
      %4592 = vmatpush2.msra.mxu0 0.0
      %4593 = vmatprep.subr.mxu0 0.0
      %4594 = vmatpush2.msra.mxu0 0.0
      %4595 = vmatprep.subr.mxu0 0.0
      %4596 = vmatpush2.msra.mxu0 0.0
      %4597 = vmatprep.subr.mxu0 0.0
      %4598 = vmatpush2.msra.mxu0 0.0
      %4599 = vmatprep.subr.mxu0 0.0
      %4600 = vmatpush2.msra.mxu0 0.0
      %4601 = vmatprep.subr.mxu0 0.0
      %4602 = vmatpush2.msra.mxu0 0.0
      %4603 = vmatprep.mubr.f32.mxu0 0.0
      %4604 = vmatmul.mubr.f32.gmra.mxu0 %v4358
      %v4605 = vpop.f32.mrf.mxu0
      %v4606 = vadd.f32 %v1790, %v4605
      %v4607 = vpop.f32.mrf.mxu0
      %4608 = vmatprep.mubr.f32.mxu0 0.0
      %4609 = vmatmul.mubr.f32.gmra.mxu0 %v4361
      %v4610 = vpop.f32.mrf.mxu0
      %v4611 = vadd.f32 %v1790, %v4610
      %v4612 = vpop.f32.mrf.mxu0
      %4613 = vmatprep.mubr.f32.mxu0 0.0
      %4614 = vmatmul.mubr.f32.gmra.mxu0 %v4364
      %v4615 = vpop.f32.mrf.mxu0
      %v4616 = vadd.f32 %v1790, %v4615
      %v4617 = vpop.f32.mrf.mxu0
      %4618 = vmatprep.mubr.f32.mxu0 0.0
      %4619 = vmatmul.mubr.f32.gmra.mxu0 %v4367
      %v4620 = vpop.f32.mrf.mxu0
      %v4621 = vadd.f32 %v1790, %v4620
      %v4622 = vpop.f32.mrf.mxu0
      %4623 = vdwg.mxu0
      %v4624 = vadd.f32 %v4343, %v4436
      %v4625 = vadd.f32 %v4344, %v4441
      %v4626 = vadd.f32 %v4345, %v4446
      %v4627 = vadd.f32 %v4346, %v4451
      %v4628 = vxor.u32 %v4624, 2147483648
      %v4629 = vxor.u32 %v4625, 2147483648
      %v4630 = vxor.u32 %v4626, 2147483648
      %v4631 = vxor.u32 %v4627, 2147483648
      %v4632 = vmul.f32 %v4628, 1.442695
      %v4633 = vpow.pop %v4632
      %v4634 = vmul.f32 %v4629, 1.442695
      %v4635 = vpow.pop %v4634
      %v4636 = vmul.f32 %v4630, 1.442695
      %v4637 = vpow.pop %v4636
      %v4638 = vmul.f32 %v4631, 1.442695
      %v4639 = vpow.pop %v4638
      %v4640 = vadd.f32 %v4633, 1.0
      %v4641 = vadd.f32 %v4635, 1.0
      %v4642 = vadd.f32 %v4637, 1.0
      %v4643 = vadd.f32 %v4639, 1.0
      %v4644 = vrcp.pop %v4640
      %v4645 = vmul.f32 1.0, %v4644
      %v4646 = vrcp.pop %v4641
      %v4647 = vmul.f32 1.0, %v4646
      %v4648 = vrcp.pop %v4642
      %v4649 = vmul.f32 1.0, %v4648
      %v4650 = vrcp.pop %v4643
      %v4651 = vmul.f32 1.0, %v4650
      %v4652 = vadd.f32 %v4348, %v4521
      %v4653 = vadd.f32 %v4349, %v4526
      %v4654 = vadd.f32 %v4350, %v4531
      %v4655 = vadd.f32 %v4351, %v4536
      %v4656 = vxor.u32 %v4652, 2147483648
      %v4657 = vxor.u32 %v4653, 2147483648
      %v4658 = vxor.u32 %v4654, 2147483648
      %v4659 = vxor.u32 %v4655, 2147483648
      %v4660 = vmul.f32 %v4656, 1.442695
      %v4661 = vpow.pop %v4660
      %v4662 = vmul.f32 %v4657, 1.442695
      %v4663 = vpow.pop %v4662
      %v4664 = vmul.f32 %v4658, 1.442695
      %v4665 = vpow.pop %v4664
      %v4666 = vmul.f32 %v4659, 1.442695
      %v4667 = vpow.pop %v4666
      %v4668 = vadd.f32 %v4661, 1.0
      %v4669 = vadd.f32 %v4663, 1.0
      %v4670 = vadd.f32 %v4665, 1.0
      %v4671 = vadd.f32 %v4667, 1.0
      %v4672 = vrcp.pop %v4668
      %v4673 = vmul.f32 1.0, %v4672
      %v4674 = vrcp.pop %v4669
      %v4675 = vmul.f32 1.0, %v4674
      %v4676 = vrcp.pop %v4670
      %v4677 = vmul.f32 1.0, %v4676
      %v4678 = vrcp.pop %v4671
      %v4679 = vmul.f32 1.0, %v4678
      %v4680 = vmul.f32 %v4645, %v4606
      %v4681 = vmul.f32 %v4647, %v4611
      %v4682 = vmul.f32 %v4649, %v4616
      %v4683 = vmul.f32 %v4651, %v4621
      %v4684 = vadd.f32 %v4353, %v4680
      %v4685 = vadd.f32 %v4354, %v4681
      %v4686 = vadd.f32 %v4355, %v4682
      %v4687 = vadd.f32 %v4356, %v4683
      %v4688 = vtanh.pop %v4684
      %v4689 = vtanh.pop %v4685
      %v4690 = vtanh.pop %v4686
      %v4691 = vtanh.pop %v4687
      %v4692 = vsub.f32 1.0, %v4673
      %v4693 = vsub.f32 1.0, %v4675
      %v4694 = vsub.f32 1.0, %v4677
      %v4695 = vsub.f32 1.0, %v4679
      %v4696 = vmul.f32 %v4692, %v4688
      %v4697 = vmul.f32 %v4693, %v4689
      %v4698 = vmul.f32 %v4694, %v4690
      %v4699 = vmul.f32 %v4695, %v4691
      %v4700 = vmul.f32 %v4673, %v4338
      %v4701 = vmul.f32 %v4675, %v4339
      %v4702 = vmul.f32 %v4677, %v4340
      %v4703 = vmul.f32 %v4679, %v4341
      %v4704 = vadd.f32 %v4696, %v4700
      %v4705 = vadd.f32 %v4697, %v4701
      %v4706 = vadd.f32 %v4698, %v4702
      %v4707 = vadd.f32 %v4699, %v4703
      %v4708 = vld [vmem:[%s6] sm:$0xff]
      %v4709 = vld [vmem:[%s7] sm:$0xff]
      %v4711 = vsel %vm873, %v4704, 0
      %4713 = vmatprep.subr.mxu0 0.0
      %4714 = vmatpush1.xpose.msra.mxu0 0.0
      %4715 = vmatprep.subr.mxu0 0.0
      %4716 = vmatpush1.xpose.msra.mxu0 0.0
      %4717 = vmatprep.subr.mxu0 0.0
      %4718 = vmatpush1.xpose.msra.mxu0 0.0
      %4719 = vmatprep.subr.mxu0 0.0
      %4720 = vmatpush1.xpose.msra.mxu0 0.0
      %4721 = vmatprep.subr.mxu0 0.0
      %4722 = vmatpush1.xpose.msra.mxu0 0.0
      %4723 = vmatprep.subr.mxu0 0.0
      %4724 = vmatpush1.xpose.msra.mxu0 0.0
      %4725 = vmatprep.subr.mxu0 0.0
      %4726 = vmatpush1.xpose.msra.mxu0 0.0
      %4727 = vmatprep.subr.mxu0 0.0
      %4728 = vmatpush1.xpose.msra.mxu0 0.0
      %4729 = vmatprep.subr.mxu0 0.0
      %4730 = vmatpush1.xpose.msra.mxu0 0.0
      %4731 = vmatprep.subr.mxu0 0.0
      %4732 = vmatpush1.xpose.msra.mxu0 0.0
      %4733 = vmatprep.subr.mxu0 0.0
      %4734 = vmatpush1.xpose.msra.mxu0 0.0
      %4735 = vmatprep.subr.mxu0 0.0
      %4736 = vmatpush1.xpose.msra.mxu0 0.0
      %4737 = vmatprep.subr.mxu0 0.0
      %4738 = vmatpush1.xpose.msra.mxu0 0.0
      %4739 = vmatprep.subr.mxu0 0.0
      %4740 = vmatpush1.xpose.msra.mxu0 0.0
      %4741 = vmatprep.subr.mxu0 0.0
      %4742 = vmatpush1.xpose.msra.mxu0 0.0
      %4743 = vmatprep.subr.mxu0 0.0
      %4744 = vmatpush1.xpose.msra.mxu0 %v4711
      %4745 = vmatprep.subr.mxu0 0.0
      %4746 = vmatpush2.xpose.msra.mxu0 0.0
      %4747 = vmatprep.subr.mxu0 0.0
      %4748 = vmatpush2.xpose.msra.mxu0 0.0
      %4749 = vmatprep.subr.mxu0 0.0
      %4750 = vmatpush2.xpose.msra.mxu0 0.0
      %4751 = vmatprep.subr.mxu0 0.0
      %4752 = vmatpush2.xpose.msra.mxu0 0.0
      %4753 = vmatprep.subr.mxu0 0.0
      %4754 = vmatpush2.xpose.msra.mxu0 0.0
      %4755 = vmatprep.subr.mxu0 0.0
      %4756 = vmatpush2.xpose.msra.mxu0 0.0
      %4757 = vmatprep.subr.mxu0 0.0
      %4758 = vmatpush2.xpose.msra.mxu0 0.0
      %4759 = vmatprep.subr.mxu0 0.0
      %4760 = vmatpush2.xpose.msra.mxu0 0.0
      %4761 = vmatprep.subr.mxu0 0.0
      %4762 = vmatpush2.xpose.msra.mxu0 0.0
      %4763 = vmatprep.subr.mxu0 0.0
      %4764 = vmatpush2.xpose.msra.mxu0 0.0
      %4765 = vmatprep.subr.mxu0 0.0
      %4766 = vmatpush2.xpose.msra.mxu0 0.0
      %4767 = vmatprep.subr.mxu0 0.0
      %4768 = vmatpush2.xpose.msra.mxu0 0.0
      %4769 = vmatprep.subr.mxu0 0.0
      %4770 = vmatpush2.xpose.msra.mxu0 0.0
      %4771 = vmatprep.subr.mxu0 0.0
      %4772 = vmatpush2.xpose.msra.mxu0 0.0
      %4773 = vmatprep.subr.mxu0 0.0
      %4774 = vmatpush2.xpose.msra.mxu0 0.0
      %4775 = vmatprep.subr.mxu0 0.0
      %4776 = vmatpush2.xpose.msra.mxu0 0.0
      %4777 = vmatprep.mubr.f32.mxu0 0.0
      %4778 = vmatmul.mubr.f32.gmra.mxu0 %v4711
      %v4779 = vpop.f32.mrf.mxu0
      %v4780 = vadd.f32 0.0, %v4779
      %v4781 = vpop.f32.mrf.mxu0
      %4782 = vdwg.mxu0
      %v4783 = vmul.f32 %v4780, %v4709
      %vm4784 = vcmask 64512
      %v4785 = vsel %vm4784, %v4783, -inf
      %4786 = vmax.xlane.f32.xlu0 %v4785
      %v4787 = vpop.xlane.xlu0 %4786
      %v4788 = vsub.f32 %v4783, %v4787
      %v4789 = vmul.f32 %v4788, 1.442695
      %v4790 = vpow.pop %v4789
      %v4791 = vsel %vm4784, %v4790, 0.0
      %4792 = vadd.xlane.f32.xlu0 %v4791
      %v4793 = vpop.xlane.xlu0 %4792
      %v4794 = vlog2.pop %v4793
      %v4795 = vmul.f32 %v4794, 0.6931472
      %v4796 = vadd.f32 %v4787, %v4795
      %v4797 = vsub.f32 %v4783, %v4796
      %v4798 = vmul.f32 %v4708, %v4797
      %v4799 = vsel %vm4784, %v4798, 0.0
      %4800 = vadd.xlane.f32.xlu0 %v4799
      %v4801 = vpop.xlane.xlu0 %4800
      %v4802 = vrot.slane %v4801, 4
      %v4803 = vadd.f32 %v4801, %v4802
      %v4804 = vrot.slane %v4803, 2
      %v4805 = vadd.f32 %v4803, %v4804
      %v4806 = vrot.slane %v4805, 1
      %v4807 = vadd.f32 %v4805, %v4806
      %s4808 = vtos %v4807
      %v4809 = vstv %s4808
      %v4810 = vmul.f32 %v4809, -0.125
      %vm4811 = vcmask 0
      %4812 = vst.msk [vmem:[%s303] sm:$0x1] %vm4811, %v4810
      %v4814 = vsel %vm873, %v4705, 0
      %4816 = vmatprep.subr.mxu0 0.0
      %4817 = vmatpush1.xpose.msra.mxu0 0.0
      %4818 = vmatprep.subr.mxu0 0.0
      %4819 = vmatpush1.xpose.msra.mxu0 0.0
      %4820 = vmatprep.subr.mxu0 0.0
      %4821 = vmatpush1.xpose.msra.mxu0 0.0
      %4822 = vmatprep.subr.mxu0 0.0
      %4823 = vmatpush1.xpose.msra.mxu0 0.0
      %4824 = vmatprep.subr.mxu0 0.0
      %4825 = vmatpush1.xpose.msra.mxu0 0.0
      %4826 = vmatprep.subr.mxu0 0.0
      %4827 = vmatpush1.xpose.msra.mxu0 0.0
      %4828 = vmatprep.subr.mxu0 0.0
      %4829 = vmatpush1.xpose.msra.mxu0 0.0
      %4830 = vmatprep.subr.mxu0 0.0
      %4831 = vmatpush1.xpose.msra.mxu0 0.0
      %4832 = vmatprep.subr.mxu0 0.0
      %4833 = vmatpush1.xpose.msra.mxu0 0.0
      %4834 = vmatprep.subr.mxu0 0.0
      %4835 = vmatpush1.xpose.msra.mxu0 0.0
      %4836 = vmatprep.subr.mxu0 0.0
      %4837 = vmatpush1.xpose.msra.mxu0 0.0
      %4838 = vmatprep.subr.mxu0 0.0
      %4839 = vmatpush1.xpose.msra.mxu0 0.0
      %4840 = vmatprep.subr.mxu0 0.0
      %4841 = vmatpush1.xpose.msra.mxu0 0.0
      %4842 = vmatprep.subr.mxu0 0.0
      %4843 = vmatpush1.xpose.msra.mxu0 0.0
      %4844 = vmatprep.subr.mxu0 0.0
      %4845 = vmatpush1.xpose.msra.mxu0 0.0
      %4846 = vmatprep.subr.mxu0 0.0
      %4847 = vmatpush1.xpose.msra.mxu0 %v4814
      %4848 = vmatprep.subr.mxu0 0.0
      %4849 = vmatpush2.xpose.msra.mxu0 0.0
      %4850 = vmatprep.subr.mxu0 0.0
      %4851 = vmatpush2.xpose.msra.mxu0 0.0
      %4852 = vmatprep.subr.mxu0 0.0
      %4853 = vmatpush2.xpose.msra.mxu0 0.0
      %4854 = vmatprep.subr.mxu0 0.0
      %4855 = vmatpush2.xpose.msra.mxu0 0.0
      %4856 = vmatprep.subr.mxu0 0.0
      %4857 = vmatpush2.xpose.msra.mxu0 0.0
      %4858 = vmatprep.subr.mxu0 0.0
      %4859 = vmatpush2.xpose.msra.mxu0 0.0
      %4860 = vmatprep.subr.mxu0 0.0
      %4861 = vmatpush2.xpose.msra.mxu0 0.0
      %4862 = vmatprep.subr.mxu0 0.0
      %4863 = vmatpush2.xpose.msra.mxu0 0.0
      %4864 = vmatprep.subr.mxu0 0.0
      %4865 = vmatpush2.xpose.msra.mxu0 0.0
      %4866 = vmatprep.subr.mxu0 0.0
      %4867 = vmatpush2.xpose.msra.mxu0 0.0
      %4868 = vmatprep.subr.mxu0 0.0
      %4869 = vmatpush2.xpose.msra.mxu0 0.0
      %4870 = vmatprep.subr.mxu0 0.0
      %4871 = vmatpush2.xpose.msra.mxu0 0.0
      %4872 = vmatprep.subr.mxu0 0.0
      %4873 = vmatpush2.xpose.msra.mxu0 0.0
      %4874 = vmatprep.subr.mxu0 0.0
      %4875 = vmatpush2.xpose.msra.mxu0 0.0
      %4876 = vmatprep.subr.mxu0 0.0
      %4877 = vmatpush2.xpose.msra.mxu0 0.0
      %4878 = vmatprep.subr.mxu0 0.0
      %4879 = vmatpush2.xpose.msra.mxu0 0.0
      %4880 = vmatprep.mubr.f32.mxu0 0.0
      %4881 = vmatmul.mubr.f32.gmra.mxu0 %v4814
      %v4882 = vpop.f32.mrf.mxu0
      %v4883 = vadd.f32 0.0, %v4882
      %v4884 = vpop.f32.mrf.mxu0
      %4885 = vdwg.mxu0
      %v4886 = vmul.f32 %v4883, %v4709
      %v4887 = vsel %vm4784, %v4886, -inf
      %4888 = vmax.xlane.f32.xlu0 %v4887
      %v4889 = vpop.xlane.xlu0 %4888
      %v4890 = vsub.f32 %v4886, %v4889
      %v4891 = vmul.f32 %v4890, 1.442695
      %v4892 = vpow.pop %v4891
      %v4893 = vsel %vm4784, %v4892, 0.0
      %4894 = vadd.xlane.f32.xlu0 %v4893
      %v4895 = vpop.xlane.xlu0 %4894
      %v4896 = vlog2.pop %v4895
      %v4897 = vmul.f32 %v4896, 0.6931472
      %v4898 = vadd.f32 %v4889, %v4897
      %v4899 = vsub.f32 %v4886, %v4898
      %v4900 = vmul.f32 %v4708, %v4899
      %v4901 = vsel %vm4784, %v4900, 0.0
      %4902 = vadd.xlane.f32.xlu0 %v4901
      %v4903 = vpop.xlane.xlu0 %4902
      %v4904 = vrot.slane %v4903, 4
      %v4905 = vadd.f32 %v4903, %v4904
      %v4906 = vrot.slane %v4905, 2
      %v4907 = vadd.f32 %v4905, %v4906
      %v4908 = vrot.slane %v4907, 1
      %v4909 = vadd.f32 %v4907, %v4908
      %s4910 = vtos %v4909
      %v4911 = vstv %s4910
      %v4912 = vmul.f32 %v4911, -0.125
      %4913 = vst.msk [vmem:[%s303 + $0x1] sm:$0x1] %vm4811, %v4912
      %v4915 = vsel %vm873, %v4706, 0
      %4917 = vmatprep.subr.mxu0 0.0
      %4918 = vmatpush1.xpose.msra.mxu0 0.0
      %4919 = vmatprep.subr.mxu0 0.0
      %4920 = vmatpush1.xpose.msra.mxu0 0.0
      %4921 = vmatprep.subr.mxu0 0.0
      %4922 = vmatpush1.xpose.msra.mxu0 0.0
      %4923 = vmatprep.subr.mxu0 0.0
      %4924 = vmatpush1.xpose.msra.mxu0 0.0
      %4925 = vmatprep.subr.mxu0 0.0
      %4926 = vmatpush1.xpose.msra.mxu0 0.0
      %4927 = vmatprep.subr.mxu0 0.0
      %4928 = vmatpush1.xpose.msra.mxu0 0.0
      %4929 = vmatprep.subr.mxu0 0.0
      %4930 = vmatpush1.xpose.msra.mxu0 0.0
      %4931 = vmatprep.subr.mxu0 0.0
      %4932 = vmatpush1.xpose.msra.mxu0 0.0
      %4933 = vmatprep.subr.mxu0 0.0
      %4934 = vmatpush1.xpose.msra.mxu0 0.0
      %4935 = vmatprep.subr.mxu0 0.0
      %4936 = vmatpush1.xpose.msra.mxu0 0.0
      %4937 = vmatprep.subr.mxu0 0.0
      %4938 = vmatpush1.xpose.msra.mxu0 0.0
      %4939 = vmatprep.subr.mxu0 0.0
      %4940 = vmatpush1.xpose.msra.mxu0 0.0
      %4941 = vmatprep.subr.mxu0 0.0
      %4942 = vmatpush1.xpose.msra.mxu0 0.0
      %4943 = vmatprep.subr.mxu0 0.0
      %4944 = vmatpush1.xpose.msra.mxu0 0.0
      %4945 = vmatprep.subr.mxu0 0.0
      %4946 = vmatpush1.xpose.msra.mxu0 0.0
      %4947 = vmatprep.subr.mxu0 0.0
      %4948 = vmatpush1.xpose.msra.mxu0 %v4915
      %4949 = vmatprep.subr.mxu0 0.0
      %4950 = vmatpush2.xpose.msra.mxu0 0.0
      %4951 = vmatprep.subr.mxu0 0.0
      %4952 = vmatpush2.xpose.msra.mxu0 0.0
      %4953 = vmatprep.subr.mxu0 0.0
      %4954 = vmatpush2.xpose.msra.mxu0 0.0
      %4955 = vmatprep.subr.mxu0 0.0
      %4956 = vmatpush2.xpose.msra.mxu0 0.0
      %4957 = vmatprep.subr.mxu0 0.0
      %4958 = vmatpush2.xpose.msra.mxu0 0.0
      %4959 = vmatprep.subr.mxu0 0.0
      %4960 = vmatpush2.xpose.msra.mxu0 0.0
      %4961 = vmatprep.subr.mxu0 0.0
      %4962 = vmatpush2.xpose.msra.mxu0 0.0
      %4963 = vmatprep.subr.mxu0 0.0
      %4964 = vmatpush2.xpose.msra.mxu0 0.0
      %4965 = vmatprep.subr.mxu0 0.0
      %4966 = vmatpush2.xpose.msra.mxu0 0.0
      %4967 = vmatprep.subr.mxu0 0.0
      %4968 = vmatpush2.xpose.msra.mxu0 0.0
      %4969 = vmatprep.subr.mxu0 0.0
      %4970 = vmatpush2.xpose.msra.mxu0 0.0
      %4971 = vmatprep.subr.mxu0 0.0
      %4972 = vmatpush2.xpose.msra.mxu0 0.0
      %4973 = vmatprep.subr.mxu0 0.0
      %4974 = vmatpush2.xpose.msra.mxu0 0.0
      %4975 = vmatprep.subr.mxu0 0.0
      %4976 = vmatpush2.xpose.msra.mxu0 0.0
      %4977 = vmatprep.subr.mxu0 0.0
      %4978 = vmatpush2.xpose.msra.mxu0 0.0
      %4979 = vmatprep.subr.mxu0 0.0
      %4980 = vmatpush2.xpose.msra.mxu0 0.0
      %4981 = vmatprep.mubr.f32.mxu0 0.0
      %4982 = vmatmul.mubr.f32.gmra.mxu0 %v4915
      %v4983 = vpop.f32.mrf.mxu0
      %v4984 = vadd.f32 0.0, %v4983
      %v4985 = vpop.f32.mrf.mxu0
      %4986 = vdwg.mxu0
      %v4987 = vmul.f32 %v4984, %v4709
      %v4988 = vsel %vm4784, %v4987, -inf
      %4989 = vmax.xlane.f32.xlu0 %v4988
      %v4990 = vpop.xlane.xlu0 %4989
      %v4991 = vsub.f32 %v4987, %v4990
      %v4992 = vmul.f32 %v4991, 1.442695
      %v4993 = vpow.pop %v4992
      %v4994 = vsel %vm4784, %v4993, 0.0
      %4995 = vadd.xlane.f32.xlu0 %v4994
      %v4996 = vpop.xlane.xlu0 %4995
      %v4997 = vlog2.pop %v4996
      %v4998 = vmul.f32 %v4997, 0.6931472
      %v4999 = vadd.f32 %v4990, %v4998
      %v5000 = vsub.f32 %v4987, %v4999
      %v5001 = vmul.f32 %v4708, %v5000
      %v5002 = vsel %vm4784, %v5001, 0.0
      %5003 = vadd.xlane.f32.xlu0 %v5002
      %v5004 = vpop.xlane.xlu0 %5003
      %v5005 = vrot.slane %v5004, 4
      %v5006 = vadd.f32 %v5004, %v5005
      %v5007 = vrot.slane %v5006, 2
      %v5008 = vadd.f32 %v5006, %v5007
      %v5009 = vrot.slane %v5008, 1
      %v5010 = vadd.f32 %v5008, %v5009
      %s5011 = vtos %v5010
      %v5012 = vstv %s5011
      %v5013 = vmul.f32 %v5012, -0.125
      %5014 = vst.msk [vmem:[%s303 + $0x2] sm:$0x1] %vm4811, %v5013
      %v5016 = vsel %vm873, %v4707, 0
      %5018 = vmatprep.subr.mxu0 0.0
      %5019 = vmatpush1.xpose.msra.mxu0 0.0
      %5020 = vmatprep.subr.mxu0 0.0
      %5021 = vmatpush1.xpose.msra.mxu0 0.0
      %5022 = vmatprep.subr.mxu0 0.0
      %5023 = vmatpush1.xpose.msra.mxu0 0.0
      %5024 = vmatprep.subr.mxu0 0.0
      %5025 = vmatpush1.xpose.msra.mxu0 0.0
      %5026 = vmatprep.subr.mxu0 0.0
      %5027 = vmatpush1.xpose.msra.mxu0 0.0
      %5028 = vmatprep.subr.mxu0 0.0
      %5029 = vmatpush1.xpose.msra.mxu0 0.0
      %5030 = vmatprep.subr.mxu0 0.0
      %5031 = vmatpush1.xpose.msra.mxu0 0.0
      %5032 = vmatprep.subr.mxu0 0.0
      %5033 = vmatpush1.xpose.msra.mxu0 0.0
      %5034 = vmatprep.subr.mxu0 0.0
      %5035 = vmatpush1.xpose.msra.mxu0 0.0
      %5036 = vmatprep.subr.mxu0 0.0
      %5037 = vmatpush1.xpose.msra.mxu0 0.0
      %5038 = vmatprep.subr.mxu0 0.0
      %5039 = vmatpush1.xpose.msra.mxu0 0.0
      %5040 = vmatprep.subr.mxu0 0.0
      %5041 = vmatpush1.xpose.msra.mxu0 0.0
      %5042 = vmatprep.subr.mxu0 0.0
      %5043 = vmatpush1.xpose.msra.mxu0 0.0
      %5044 = vmatprep.subr.mxu0 0.0
      %5045 = vmatpush1.xpose.msra.mxu0 0.0
      %5046 = vmatprep.subr.mxu0 0.0
      %5047 = vmatpush1.xpose.msra.mxu0 0.0
      %5048 = vmatprep.subr.mxu0 0.0
      %5049 = vmatpush1.xpose.msra.mxu0 %v5016
      %5050 = vmatprep.subr.mxu0 0.0
      %5051 = vmatpush2.xpose.msra.mxu0 0.0
      %5052 = vmatprep.subr.mxu0 0.0
      %5053 = vmatpush2.xpose.msra.mxu0 0.0
      %5054 = vmatprep.subr.mxu0 0.0
      %5055 = vmatpush2.xpose.msra.mxu0 0.0
      %5056 = vmatprep.subr.mxu0 0.0
      %5057 = vmatpush2.xpose.msra.mxu0 0.0
      %5058 = vmatprep.subr.mxu0 0.0
      %5059 = vmatpush2.xpose.msra.mxu0 0.0
      %5060 = vmatprep.subr.mxu0 0.0
      %5061 = vmatpush2.xpose.msra.mxu0 0.0
      %5062 = vmatprep.subr.mxu0 0.0
      %5063 = vmatpush2.xpose.msra.mxu0 0.0
      %5064 = vmatprep.subr.mxu0 0.0
      %5065 = vmatpush2.xpose.msra.mxu0 0.0
      %5066 = vmatprep.subr.mxu0 0.0
      %5067 = vmatpush2.xpose.msra.mxu0 0.0
      %5068 = vmatprep.subr.mxu0 0.0
      %5069 = vmatpush2.xpose.msra.mxu0 0.0
      %5070 = vmatprep.subr.mxu0 0.0
      %5071 = vmatpush2.xpose.msra.mxu0 0.0
      %5072 = vmatprep.subr.mxu0 0.0
      %5073 = vmatpush2.xpose.msra.mxu0 0.0
      %5074 = vmatprep.subr.mxu0 0.0
      %5075 = vmatpush2.xpose.msra.mxu0 0.0
      %5076 = vmatprep.subr.mxu0 0.0
      %5077 = vmatpush2.xpose.msra.mxu0 0.0
      %5078 = vmatprep.subr.mxu0 0.0
      %5079 = vmatpush2.xpose.msra.mxu0 0.0
      %5080 = vmatprep.subr.mxu0 0.0
      %5081 = vmatpush2.xpose.msra.mxu0 0.0
      %5082 = vmatprep.mubr.f32.mxu0 0.0
      %5083 = vmatmul.mubr.f32.gmra.mxu0 %v5016
      %v5084 = vpop.f32.mrf.mxu0
      %v5085 = vadd.f32 0.0, %v5084
      %v5086 = vpop.f32.mrf.mxu0
      %5087 = vdwg.mxu0
      %v5088 = vmul.f32 %v5085, %v4709
      %v5089 = vsel %vm4784, %v5088, -inf
      %5090 = vmax.xlane.f32.xlu0 %v5089
      %v5091 = vpop.xlane.xlu0 %5090
      %v5092 = vsub.f32 %v5088, %v5091
      %v5093 = vmul.f32 %v5092, 1.442695
      %v5094 = vpow.pop %v5093
      %v5095 = vsel %vm4784, %v5094, 0.0
      %5096 = vadd.xlane.f32.xlu0 %v5095
      %v5097 = vpop.xlane.xlu0 %5096
      %v5098 = vlog2.pop %v5097
      %v5099 = vmul.f32 %v5098, 0.6931472
      %v5100 = vadd.f32 %v5091, %v5099
      %v5101 = vsub.f32 %v5088, %v5100
      %v5102 = vmul.f32 %v4708, %v5101
      %v5103 = vsel %vm4784, %v5102, 0.0
      %5104 = vadd.xlane.f32.xlu0 %v5103
      %v5105 = vpop.xlane.xlu0 %5104
      %v5106 = vrot.slane %v5105, 4
      %v5107 = vadd.f32 %v5105, %v5106
      %v5108 = vrot.slane %v5107, 2
      %v5109 = vadd.f32 %v5107, %v5108
      %v5110 = vrot.slane %v5109, 1
      %v5111 = vadd.f32 %v5109, %v5110
      %s5112 = vtos %v5111
      %v5113 = vstv %s5112
      %v5114 = vmul.f32 %v5113, -0.125
      %5115 = vst.msk [vmem:[%s303 + $0x3] sm:$0x1] %vm4811, %v5114
      %p5116 = scmp.lt.s32.totalorder %s19, 1
      %s5117 = scalar_select %p5116, %s19, 1
      %s5118 = smul.addr %s5117, 4
      %s5119 = scalar_lea.vmem %s8, %s5118
      // Predicated region
      $region53: #{quickthoughts_forward_batched.1} parent=51 // pred_check
        %p5120 = pneg %p210
      $region54: #{quickthoughts_forward_batched.1} parent=51 // pred_check_branch
        %5122 = sbr.rel (%p5120) target = $region56
      $region55: #{quickthoughts_forward_batched.1} parent=51 // pred_region
        _
      $region56: #{quickthoughts_forward_batched.1} parent=51 // pred_fallthru
        _
    $region52: #{quickthoughts_forward_batched.1} parent=5 // pred_fallthru
      _
    %p5123 = scmp.le.s32.totalorder 2, %s14
    // Predicated region
    $region57: #{quickthoughts_forward_batched.1} parent=5 // pred_check
      %p5124 = pneg %p5123
    $region58: #{quickthoughts_forward_batched.1} parent=5 // pred_check_branch
      %5126 = sbr.rel (%p5124) target = $region60
    $region59: #{quickthoughts_forward_batched.1} parent=5 // pred_region
      %s5127 = ssub.s32 %s14, 2
      // Predicated region
      $region61: #{quickthoughts_forward_batched.1} parent=59 // pred_check
        %p5128 = pneg %p216
      $region62: #{quickthoughts_forward_batched.1} parent=59 // pred_check_branch
        %5130 = sbr.rel (%p5128) target = $region64
      $region63: #{quickthoughts_forward_batched.1} parent=59 // pred_region
        %p5131 = scmp.lt.s32.totalorder %s20, 1
        %s5132 = scalar_select %p5131, %s20, 1
        %s5133 = smul.addr %s5132, 4
        %s5134 = scalar_lea.vmem %s8, %s5133
      $region64: #{quickthoughts_forward_batched.1} parent=59 // pred_fallthru
        _
    $region60: #{quickthoughts_forward_batched.1} parent=5 // pred_fallthru
      _
  $region6: #{quickthoughts_forward_batched.1} parent=0 // loop_footer
    %s18 = sadd.s32 1, %s14
  $region7: #{quickthoughts_forward_batched.1} parent=0 // loop_footer_branch
    %13 = sbr.rel target = $region3
  $region8: #{quickthoughts_forward_batched.1} parent=0 // loop_exit
    _

</llo_original>
